<compile_context>
chip_gen: v6e
topology: v6e:2x2x1
jax: 0.10.0
libtpu: 0.0.40
codegen_flags: <defaults>
</compile_context>

<pallas_src>
import jax
import jax.numpy as jnp
from jax.experimental import pallas as pl
from jax.experimental.pallas import tpu as pltpu

CONV_OUT = 32
HIDDEN = 400


# ----------------------------------------------------------------------------
# Fused fc1 (int8-dequant) + bias + ReLU + fc2 kernel, K-tiled reduction
# ----------------------------------------------------------------------------
def _mlp_kernel(y_ref, w1q_ref, scale_ref, b1_ref, w2_ref, b2_ref, o_ref, acc_ref):
    k = pl.program_id(0)

    @pl.when(k == 0)
    def _():
        acc_ref[...] = jnp.zeros_like(acc_ref)

    # int8 weight tile -> bf16 (VPU), then (M, tk) bf16 @ (tk, 400) bf16 with f32 acc (MXU).
    w1 = w1q_ref[...].astype(jnp.bfloat16)
    acc_ref[...] += jnp.dot(y_ref[...], w1, preferred_element_type=jnp.float32)

    @pl.when(k == pl.num_programs(0) - 1)
    def _():
        # per-column dequant scale applied once on the small accumulator, then bias + ReLU
        h = jnp.maximum(acc_ref[...] * scale_ref[...] + b1_ref[...], 0.0)   # (M, 400) f32
        h = h.astype(w2_ref.dtype)                                          # bf16 for MXU
        out = jnp.dot(h, w2_ref[...], preferred_element_type=jnp.float32)
        o_ref[...] = (out + b2_ref[...]).astype(o_ref.dtype)


def _pick_tk(K):
    for tk in (4096, 2048, 1024, 512, 256, 128):
        if K % tk == 0:
            return tk
    return K


def fused_mlp(y, w1q, scale, b1, w2, b2):
    """out = relu((y @ dequant(w1q)) * scale + b1) @ w2 + b2, one pallas_call.

    y: (M, K) bf16, w1q: (K, H) int8, scale/b1: (1, H) f32, w2: (H, A) bf16, b2: (1, A) f32.
    """
    M, K = y.shape
    Hd = w1q.shape[1]
    A = w2.shape[1]
    tk = _pick_tk(K)

    return pl.pallas_call(
        _mlp_kernel,
        out_shape=jax.ShapeDtypeStruct((M, A), jnp.float32),
        grid_spec=pltpu.PrefetchScalarGridSpec(
            num_scalar_prefetch=0,
            grid=(K // tk,),
            in_specs=[
                pl.BlockSpec((M, tk), lambda k: (0, k)),     # activations, per-K slice
                pl.BlockSpec((tk, Hd), lambda k: (k, 0)),    # int8 fc1 weight tile (big stream)
                pl.BlockSpec((1, Hd), lambda k: (0, 0)),     # per-column dequant scale (resident)
                pl.BlockSpec((1, Hd), lambda k: (0, 0)),     # fc1 bias (resident)
                pl.BlockSpec((Hd, A), lambda k: (0, 0)),     # fc2 weight (resident)
                pl.BlockSpec((1, A), lambda k: (0, 0)),      # fc2 bias (resident)
            ],
            out_specs=pl.BlockSpec((M, A), lambda k: (0, 0)),
            scratch_shapes=[pltpu.VMEM((M, Hd), jnp.float32)],
        ),
        compiler_params=pltpu.CompilerParams(
            dimension_semantics=("arbitrary",),
            vmem_limit_bytes=32 * 1024 * 1024,
        ),
    )(y, w1q, scale, b1, w2, b2)


# ----------------------------------------------------------------------------
# Parameters (master f32, torch-equivalent layout) and one-time packing
# ----------------------------------------------------------------------------
def init_params(key, input_shape, num_actions):
    c_in, h, w = input_shape
    feat = CONV_OUT * h * w
    k1, k2, k3, k4, k5, k6 = jax.random.split(key, 6)
    return {
        # conv weight as (C_in, 32): == torch Conv2d(C_in, 32, 1).weight[:, :, 0, 0].T
        "conv_w": jax.random.normal(k1, (c_in, CONV_OUT), jnp.float32) * 0.1,
        "conv_b": jax.random.normal(k2, (CONV_OUT,), jnp.float32) * 0.1,
        # fc1: Linear(feat, 400), rows in torch NCHW-flatten order, stored (in, out)
        "fc1_w": jax.random.normal(k3, (feat, HIDDEN), jnp.float32) * 0.02,
        "fc1_b": jax.random.normal(k4, (HIDDEN,), jnp.float32) * 0.02,
        # fc2: Linear(400, num_actions)
        "fc2_w": jax.random.normal(k5, (HIDDEN, num_actions), jnp.float32) * 0.05,
        "fc2_b": jax.random.normal(k6, (num_actions,), jnp.float32) * 0.05,
    }


def prepare_params(params, input_shape):
    """One-time packing: permute fc1 rows NCHW->NHWC flatten order (zero runtime cost),
    per-output-column int8 quantization of fc1_w, bf16 for conv/fc2 weights."""
    _, h, w = input_shape
    hw = h * w

    # rows indexed (co, p)  ->  rows indexed (p, co)   (matches NHWC flatten of conv output)
    w1 = params["fc1_w"].reshape(CONV_OUT, hw, HIDDEN)
    w1 = jnp.transpose(w1, (1, 0, 2)).reshape(hw * CONV_OUT, HIDDEN)

    # per-output-column symmetric int8 quantization
    col_max = jnp.max(jnp.abs(w1), axis=0)
    scale = jnp.maximum(col_max, 1e-8) / 127.0                 # (400,) f32
    w1q = jnp.clip(jnp.round(w1 / scale), -127, 127).astype(jnp.int8)

    return {
        "conv_w": params["conv_w"].astype(jnp.bfloat16),
        "conv_b": params["conv_b"].astype(jnp.float32),
        "fc1_wq": w1q,                                          # (feat, 400) int8
        "fc1_scale": scale.reshape(1, HIDDEN).astype(jnp.float32),
        "fc1_b": params["fc1_b"].reshape(1, HIDDEN).astype(jnp.float32),
        "fc2_w": params["fc2_w"].astype(jnp.bfloat16),
        "fc2_b": params["fc2_b"].reshape(1, -1).astype(jnp.float32),
    }


# ----------------------------------------------------------------------------
# CnnDQN forward
# ----------------------------------------------------------------------------
def cnn_dqn_forward(x, packed):
    """x: (N, C, H, W) float32 (NCHW, matching the PyTorch module)."""
    n = x.shape[0]
    # features: Conv2d(C, 32, 1) + ReLU as a tiny per-pixel bf16 matmul (NHWC output); XLA fuses it.
    y = jnp.einsum("nchw,ck->nhwk", x.astype(jnp.bfloat16), packed["conv_w"],
                   preferred_element_type=jnp.float32)
    y = jnp.maximum(y + packed["conv_b"], 0.0)
    # flatten in NHWC order (fc1 weight rows were permuted offline to match) + bf16 for the MXU
    y = y.reshape(n, -1).astype(jnp.bfloat16)
    # fused fc1 (int8-dequant) + bias + ReLU + fc2 in one pallas_call
    return fused_mlp(y, packed["fc1_wq"], packed["fc1_scale"], packed["fc1_b"],
                     packed["fc2_w"], packed["fc2_b"])


# ----------------------------------------------------------------------------
# References
# ----------------------------------------------------------------------------
def cnn_dqn_reference_f32(x, params):
    """Pure f32 reference in the original torch layout (NCHW flatten)."""
    n = x.shape[0]
    y = jnp.einsum("nchw,ck->nkhw", x, params["conv_w"],
                   precision=jax.lax.Precision.HIGHEST)
    y = jnp.maximum(y + params["conv_b"][None, :, None, None], 0.0).reshape(n, -1)
    h = jnp.maximum(
        jnp.dot(y, params["fc1_w"], precision=jax.lax.Precision.HIGHEST) + params["fc1_b"], 0.0)
    return jnp.dot(h, params["fc2_w"], precision=jax.lax.Precision.HIGHEST) + params["fc2_b"]


def cnn_dqn_reference_quant(x, packed):
    """Quantization/bf16-matched reference mirroring the kernel path exactly (in f32 math)."""
    f32, bf16 = jnp.float32, jnp.bfloat16
    n = x.shape[0]
    xb = x.astype(bf16).astype(f32)
    cw = packed["conv_w"].astype(f32)
    y = jnp.einsum("nchw,ck->nhwk", xb, cw, precision=jax.lax.Precision.HIGHEST)
    y = jnp.maximum(y + packed["conv_b"], 0.0).reshape(n, -1)
    yb = y.astype(bf16).astype(f32)
    w1 = packed["fc1_wq"].astype(f32)                       # int8 values are exact in bf16 too
    h = jnp.dot(yb, w1, precision=jax.lax.Precision.HIGHEST) * packed["fc1_scale"] + packed["fc1_b"]
    h = jnp.maximum(h, 0.0)
    hb = h.astype(bf16).astype(f32)
    w2 = packed["fc2_w"].astype(f32)
    return jnp.dot(hb, w2, precision=jax.lax.Precision.HIGHEST) + packed["fc2_b"]


if __name__ == "__main__":
    key = jax.random.PRNGKey(0)
    kx, kp = jax.random.split(key)

    # input_shape = (C, H, W) = (4, 16, 16), batch = 2, num_actions = 6
    N, C, H, W = 2, 4, 16, 16
    NUM_ACTIONS = 6

    x = jax.random.normal(kx, (N, C, H, W), jnp.float32)
    params = init_params(kp, (C, H, W), NUM_ACTIONS)
    packed = prepare_params(params, (C, H, W))

    fwd = jax.jit(cnn_dqn_forward)
    out = jax.block_until_ready(fwd(x, packed))

    assert out.shape == (N, NUM_ACTIONS), out.shape
    ref_q = cnn_dqn_reference_quant(x, packed)
    ref_f32 = cnn_dqn_reference_f32(x, params)
    assert jnp.allclose(out, ref_q, atol=5e-3, rtol=5e-3), "mismatch vs quant/bf16-matched reference"
    assert jnp.allclose(out, ref_f32, atol=5e-2, rtol=5e-2), "mismatch vs f32 reference"

    print("KERNEL_OK")
</pallas_src>

<mosaic_0001>
module attributes {stable_mosaic.version = 11 : i64} {
  func.func @_mlp_kernel(%arg0: i32, %arg1: memref<2x4096xbf16, #tpu.memory_space<vmem>>, %arg2: memref<4096x400xi8, #tpu.memory_space<vmem>>, %arg3: memref<1x400xf32, #tpu.memory_space<vmem>>, %arg4: memref<1x400xf32, #tpu.memory_space<vmem>>, %arg5: memref<400x6xbf16, #tpu.memory_space<vmem>>, %arg6: memref<1x6xf32, #tpu.memory_space<vmem>>, %arg7: memref<2x6xf32, #tpu.memory_space<vmem>>, %arg8: memref<2x400xf32, #tpu.memory_space<vmem>>) attributes {dimension_semantics = [#tpu.dimension_semantics<arbitrary>], iteration_bounds = array<i64: 2>, scalar_prefetch = 0 : i64, scratch_operands = 1 : i64, tpu.core_type = #tpu.core_type<tc>, window_params = [{transform_indices = @transform_0, window_bounds = array<i64: 2, 4096>}, {transform_indices = @transform_1, window_bounds = array<i64: 4096, 400>}, {pipeline_mode = #tpu.pipeline_mode<synchronous>, transform_indices = @transform_2, window_bounds = array<i64: 1, 400>}, {pipeline_mode = #tpu.pipeline_mode<synchronous>, transform_indices = @transform_3, window_bounds = array<i64: 1, 400>}, {pipeline_mode = #tpu.pipeline_mode<synchronous>, transform_indices = @transform_4, window_bounds = array<i64: 400, 6>}, {pipeline_mode = #tpu.pipeline_mode<synchronous>, transform_indices = @transform_5, window_bounds = array<i64: 1, 6>}, {pipeline_mode = #tpu.pipeline_mode<synchronous>, transform_indices = @transform_6, window_bounds = array<i64: 2, 6>}]} {
    %c0_i32 = arith.constant 0 : i32
    %0 = arith.cmpi eq, %arg0, %c0_i32 : i32
    %1 = arith.extui %0 : i1 to i32
    %c0_i32_0 = arith.constant 0 : i32
    %2 = arith.cmpi ne, %1, %c0_i32_0 : i32
    scf.if %2 {
      %cst_9 = arith.constant 0.000000e+00 : f32
      %13 = vector.broadcast %cst_9 : f32 to vector<2x400xf32>
      %c0_10 = arith.constant 0 : index
      %c0_11 = arith.constant 0 : index
      %14 = vector.load %arg8[%c0_10, %c0_11] : memref<2x400xf32, #tpu.memory_space<vmem>>, vector<2x400xf32>
      tpu.vector_store %arg8[%c0_10, %c0_11], %13 {strides = array<i32>} : memref<2x400xf32, #tpu.memory_space<vmem>>, vector<2x400xf32>,
    } else {
    }
    %c0 = arith.constant 0 : index
    %c0_1 = arith.constant 0 : index
    %3 = vector.load %arg2[%c0, %c0_1] : memref<4096x400xi8, #tpu.memory_space<vmem>>, vector<4096x400xi8>
    %4 = arith.sitofp %3 : vector<4096x400xi8> to vector<4096x400xbf16>
    %c0_2 = arith.constant 0 : index
    %c0_3 = arith.constant 0 : index
    %5 = vector.load %arg8[%c0_2, %c0_3] : memref<2x400xf32, #tpu.memory_space<vmem>>, vector<2x400xf32>
    %c0_4 = arith.constant 0 : index
    %c0_5 = arith.constant 0 : index
    %6 = vector.load %arg1[%c0_4, %c0_5] : memref<2x4096xbf16, #tpu.memory_space<vmem>>, vector<2x4096xbf16>
    %cst = arith.constant dense<0.000000e+00> : vector<2x400xf32>
    %7 = tpu.matmul %6, %4, %cst {dimension_numbers = #tpu.dot_dimension_numbers<[1], [0], [0], [1], [0, 0, 1, 1], [], []>} : vector<2x4096xbf16>, vector<4096x400xbf16>, vector<2x400xf32> -> vector<2x400xf32>
    %8 = arith.addf %5, %7 : vector<2x400xf32>
    %c0_6 = arith.constant 0 : index
    %c0_7 = arith.constant 0 : index
    %9 = vector.load %arg8[%c0_6, %c0_7] : memref<2x400xf32, #tpu.memory_space<vmem>>, vector<2x400xf32>
    tpu.vector_store %arg8[%c0_6, %c0_7], %8 {strides = array<i32>} : memref<2x400xf32, #tpu.memory_space<vmem>>, vector<2x400xf32>,
    %c1_i32 = arith.constant 1 : i32
    %10 = arith.cmpi eq, %arg0, %c1_i32 : i32
    %11 = arith.extui %10 : i1 to i32
    %c0_i32_8 = arith.constant 0 : i32
    %12 = arith.cmpi ne, %11, %c0_i32_8 : i32
    scf.if %12 {
      %c0_9 = arith.constant 0 : index
      %c0_10 = arith.constant 0 : index
      %13 = vector.load %arg8[%c0_9, %c0_10] : memref<2x400xf32, #tpu.memory_space<vmem>>, vector<2x400xf32>
      %c0_11 = arith.constant 0 : index
      %c0_12 = arith.constant 0 : index
      %14 = vector.load %arg3[%c0_11, %c0_12] : memref<1x400xf32, #tpu.memory_space<vmem>>, vector<1x400xf32>
      %15 = vector.broadcast %14 : vector<1x400xf32> to vector<2x400xf32>
      %16 = arith.mulf %13, %15 : vector<2x400xf32>
      %c0_13 = arith.constant 0 : index
      %c0_14 = arith.constant 0 : index
      %17 = vector.load %arg4[%c0_13, %c0_14] : memref<1x400xf32, #tpu.memory_space<vmem>>, vector<1x400xf32>
      %18 = vector.broadcast %17 : vector<1x400xf32> to vector<2x400xf32>
      %19 = arith.addf %16, %18 : vector<2x400xf32>
      %cst_15 = arith.constant 0.000000e+00 : f32
      %20 = vector.broadcast %cst_15 : f32 to vector<2x400xf32>
      %21 = arith.maximumf %19, %20 : vector<2x400xf32>
      %22 = arith.truncf %21 : vector<2x400xf32> to vector<2x400xbf16>
      %c0_16 = arith.constant 0 : index
      %c0_17 = arith.constant 0 : index
      %23 = vector.load %arg5[%c0_16, %c0_17] : memref<400x6xbf16, #tpu.memory_space<vmem>>, vector<400x6xbf16>
      %cst_18 = arith.constant dense<0.000000e+00> : vector<2x6xf32>
      %24 = tpu.matmul %22, %23, %cst_18 {dimension_numbers = #tpu.dot_dimension_numbers<[1], [0], [0], [1], [0, 0, 1, 1], [], []>} : vector<2x400xbf16>, vector<400x6xbf16>, vector<2x6xf32> -> vector<2x6xf32>
      %c0_19 = arith.constant 0 : index
      %c0_20 = arith.constant 0 : index
      %25 = vector.load %arg6[%c0_19, %c0_20] : memref<1x6xf32, #tpu.memory_space<vmem>>, vector<1x6xf32>
      %26 = vector.broadcast %25 : vector<1x6xf32> to vector<2x6xf32>
      %27 = arith.addf %24, %26 : vector<2x6xf32>
      %c0_21 = arith.constant 0 : index
      %c0_22 = arith.constant 0 : index
      %28 = vector.load %arg7[%c0_21, %c0_22] : memref<2x6xf32, #tpu.memory_space<vmem>>, vector<2x6xf32>
      tpu.vector_store %arg7[%c0_21, %c0_22], %27 {strides = array<i32>} : memref<2x6xf32, #tpu.memory_space<vmem>>, vector<2x6xf32>,
    } else {
    }
    return
  }
  func.func @transform_0(%arg0: i32) -> (i32, i32) {
    %c0_i32 = arith.constant 0 : i32
    %c0_i32_0 = arith.constant 0 : i32
    return %c0_i32, %arg0 : i32, i32
  }
  func.func @transform_1(%arg0: i32) -> (i32, i32) {
    %c0_i32 = arith.constant 0 : i32
    %c0_i32_0 = arith.constant 0 : i32
    return %arg0, %c0_i32 : i32, i32
  }
  func.func @transform_2(%arg0: i32) -> (i32, i32) {
    %c0_i32 = arith.constant 0 : i32
    %c0_i32_0 = arith.constant 0 : i32
    %c0_i32_1 = arith.constant 0 : i32
    return %c0_i32, %c0_i32_0 : i32, i32
  }
  func.func @transform_3(%arg0: i32) -> (i32, i32) {
    %c0_i32 = arith.constant 0 : i32
    %c0_i32_0 = arith.constant 0 : i32
    %c0_i32_1 = arith.constant 0 : i32
    return %c0_i32, %c0_i32_0 : i32, i32
  }
  func.func @transform_4(%arg0: i32) -> (i32, i32) {
    %c0_i32 = arith.constant 0 : i32
    %c0_i32_0 = arith.constant 0 : i32
    %c0_i32_1 = arith.constant 0 : i32
    return %c0_i32, %c0_i32_0 : i32, i32
  }
  func.func @transform_5(%arg0: i32) -> (i32, i32) {
    %c0_i32 = arith.constant 0 : i32
    %c0_i32_0 = arith.constant 0 : i32
    %c0_i32_1 = arith.constant 0 : i32
    return %c0_i32, %c0_i32_0 : i32, i32
  }
  func.func @transform_6(%arg0: i32) -> (i32, i32) {
    %c0_i32 = arith.constant 0 : i32
    %c0_i32_0 = arith.constant 0 : i32
    %c0_i32_1 = arith.constant 0 : i32
    return %c0_i32, %c0_i32_0 : i32, i32
  }
}

</mosaic_0001>

<llo_original>
// kernel: cnn_dqn_forward.1
$region0: #{cnn_dqn_forward.1}
  #allocation0 [shape = 'u32[]', space=smem, size = 0x4, offset = 0x4, fixed_abs, tag = 'smem constant byte address 0x4 - core index']
  #allocation1 [shape = 'u32[144,128]{1,0:T(1,128)}', space=vmem, size = 0x12000, scoped, tag = 'internal scratch']
  #allocation2 [shape = 'f32[2,400]{1,0:T(2,128)}', space=vmem, size = 0x1000, scoped, tag = 'scratch operand']
  %s0 = inlined_call_operand.vmem [shape: bf16[2,8192], index: 0, kind: input, shape index: {}]
  %s1 = inlined_call_operand.vmem [shape: s8[8192,400], index: 1, kind: input, shape index: {}]
  %s2 = inlined_call_operand.vmem [shape: f32[1,400], index: 2, kind: input, shape index: {}]
  %s3 = inlined_call_operand.vmem [shape: f32[1,400], index: 3, kind: input, shape index: {}]
  %s4 = inlined_call_operand.vmem [shape: bf16[400,6], index: 4, kind: input, shape index: {}]
  %s5 = inlined_call_operand.vmem [shape: f32[1,6], index: 5, kind: input, shape index: {}]
  %s6 = inlined_call_operand.hbm [shape: f32[2,6], index: 6, kind: output, shape index: {}]
  %s7 = sld [smem:[#allocation0]]
  $region65: #{cnn_dqn_forward.1} parent=0
    _
  %s9 = ssub.s32 1, %s7
  %s10 = scalar_select 0, %s9, %s7
  $region1: #{cnn_dqn_forward.1} parent=0
    #allocation3 [shape = 'u8[1024]{0}', space=vmem, size = 0x400, scoped, tag = 'output window, operand 0, single buffered']
    #allocation4 [shape = 's32[2]{0}', space=sflag, size = 0x8, scoped, tag = 'scoped memory for cnn_dqn_forward.1']
    %11 = vsyncpa [#allocation4], 0
    loop: start=0, step=1, limit=4
    $region2: #{cnn_dqn_forward.1} parent=1 // loop_pre_header
      _
    $region3: #{cnn_dqn_forward.1} parent=1 // loop_header
      %s13 = sphi 0, %s17
      %p14 = scmp.ge.s32.totalorder %s13, 4
      %s23 = sphi 0, %s25
      %s26 = sphi 0, %s23
      %s27 = sphi 0, %s26
      %s43 = sphi 0, %s27
      %s49 = sphi 0, %s51
      %s52 = sphi 0, %s49
      %s53 = sphi 0, %s52
      %s69 = sphi 0, %s53
      %s73 = sphi 0, %s73
      %s75 = sphi 0, %s73
      %s76 = sphi 0, %s75
      %s90 = sphi 0, %s76
      %s94 = sphi 0, %s94
      %s96 = sphi 0, %s94
      %s97 = sphi 0, %s96
      %s111 = sphi 0, %s97
      %s115 = sphi 0, %s115
      %s117 = sphi 0, %s115
      %s118 = sphi 0, %s117
      %s132 = sphi 0, %s118
      %s136 = sphi 0, %s136
      %s138 = sphi 0, %s136
      %s139 = sphi 0, %s138
      %s153 = sphi 0, %s139
      %s157 = sphi 0, %s157
      %s159 = sphi 0, %s157
      %s160 = sphi 0, %s159
      %s174 = sphi 0, %s160
    $region4: #{cnn_dqn_forward.1} parent=1 // loop_header_branch
      %16 = sbr.rel (%p14) target = $region8
    $region5: #{cnn_dqn_forward.1} parent=1 // loop_body
      %s18 = ssub.s32 %s13, 1
      %s19 = ssub.s32 %s13, 2
      %s20 = sadd.s32 %s13, 1
      %s21 = ssub.s32 %s13, %s20
      %p22 = scmp.eq.s32.totalorder %s21, 0
      %s24 = sadd.s32 %s23, 1
      %s25 = scalar_select %p22, %s23, %s24
      %p28 = pneg %p22
      %p29 = scmp.eq.s32.totalorder %s13, 1
      %p30 = por %p28, %p29
      %p31 = scmp.ne.s32.totalorder %s23, %s26
      %p32 = scmp.eq.s32.totalorder %s13, 0
      %p33 = por %p31, %p32
      %p34 = scmp.ne.s32.totalorder %s23, %s26
      %p35 = scmp.eq.s32.totalorder %s18, 1
      %p36 = por %p34, %p35
      %p37 = scmp.ne.s32.totalorder %s26, %s27
      %p38 = scmp.eq.s32.totalorder %s18, 0
      %p39 = por %p37, %p38
      %p40 = scmp.ne.s32.totalorder %s26, %s27
      %p41 = scmp.eq.s32.totalorder %s19, 1
      %p42 = por %p40, %p41
      %p44 = scmp.ne.s32.totalorder %s27, %s43
      %p45 = scmp.eq.s32.totalorder %s19, 0
      %p46 = por %p44, %p45
      %s47 = ssub.s32 %s13, %s20
      %p48 = scmp.eq.s32.totalorder %s47, 0
      %s50 = sadd.s32 %s49, 1
      %s51 = scalar_select %p48, %s49, %s50
      %p54 = pneg %p48
      %p55 = scmp.eq.s32.totalorder %s13, 1
      %p56 = por %p54, %p55
      %p57 = scmp.ne.s32.totalorder %s49, %s52
      %p58 = scmp.eq.s32.totalorder %s13, 0
      %p59 = por %p57, %p58
      %p60 = scmp.ne.s32.totalorder %s49, %s52
      %p61 = scmp.eq.s32.totalorder %s18, 1
      %p62 = por %p60, %p61
      %p63 = scmp.ne.s32.totalorder %s52, %s53
      %p64 = scmp.eq.s32.totalorder %s18, 0
      %p65 = por %p63, %p64
      %p66 = scmp.ne.s32.totalorder %s52, %s53
      %p67 = scmp.eq.s32.totalorder %s19, 1
      %p68 = por %p66, %p67
      %p70 = scmp.ne.s32.totalorder %s53, %s69
      %p71 = scmp.eq.s32.totalorder %s19, 0
      %p72 = por %p70, %p71
      %s74 = sadd.s32 %s73, 1
      %p77 = scmp.eq.s32.totalorder %s13, 1
      %p78 = scmp.ne.s32.totalorder %s73, %s75
      %p79 = scmp.eq.s32.totalorder %s13, 0
      %p80 = por %p78, %p79
      %p81 = scmp.ne.s32.totalorder %s73, %s75
      %p82 = scmp.eq.s32.totalorder %s18, 1
      %p83 = por %p81, %p82
      %p84 = scmp.ne.s32.totalorder %s75, %s76
      %p85 = scmp.eq.s32.totalorder %s18, 0
      %p86 = por %p84, %p85
      %p87 = scmp.ne.s32.totalorder %s75, %s76
      %p88 = scmp.eq.s32.totalorder %s19, 1
      %p89 = por %p87, %p88
      %p91 = scmp.ne.s32.totalorder %s76, %s90
      %p92 = scmp.eq.s32.totalorder %s19, 0
      %p93 = por %p91, %p92
      %s95 = sadd.s32 %s94, 1
      %p98 = scmp.eq.s32.totalorder %s13, 1
      %p99 = scmp.ne.s32.totalorder %s94, %s96
      %p100 = scmp.eq.s32.totalorder %s13, 0
      %p101 = por %p99, %p100
      %p102 = scmp.ne.s32.totalorder %s94, %s96
      %p103 = scmp.eq.s32.totalorder %s18, 1
      %p104 = por %p102, %p103
      %p105 = scmp.ne.s32.totalorder %s96, %s97
      %p106 = scmp.eq.s32.totalorder %s18, 0
      %p107 = por %p105, %p106
      %p108 = scmp.ne.s32.totalorder %s96, %s97
      %p109 = scmp.eq.s32.totalorder %s19, 1
      %p110 = por %p108, %p109
      %p112 = scmp.ne.s32.totalorder %s97, %s111
      %p113 = scmp.eq.s32.totalorder %s19, 0
      %p114 = por %p112, %p113
      %s116 = sadd.s32 %s115, 1
      %p119 = scmp.eq.s32.totalorder %s13, 1
      %p120 = scmp.ne.s32.totalorder %s115, %s117
      %p121 = scmp.eq.s32.totalorder %s13, 0
      %p122 = por %p120, %p121
      %p123 = scmp.ne.s32.totalorder %s115, %s117
      %p124 = scmp.eq.s32.totalorder %s18, 1
      %p125 = por %p123, %p124
      %p126 = scmp.ne.s32.totalorder %s117, %s118
      %p127 = scmp.eq.s32.totalorder %s18, 0
      %p128 = por %p126, %p127
      %p129 = scmp.ne.s32.totalorder %s117, %s118
      %p130 = scmp.eq.s32.totalorder %s19, 1
      %p131 = por %p129, %p130
      %p133 = scmp.ne.s32.totalorder %s118, %s132
      %p134 = scmp.eq.s32.totalorder %s19, 0
      %p135 = por %p133, %p134
      %s137 = sadd.s32 %s136, 1
      %p140 = scmp.eq.s32.totalorder %s13, 1
      %p141 = scmp.ne.s32.totalorder %s136, %s138
      %p142 = scmp.eq.s32.totalorder %s13, 0
      %p143 = por %p141, %p142
      %p144 = scmp.ne.s32.totalorder %s136, %s138
      %p145 = scmp.eq.s32.totalorder %s18, 1
      %p146 = por %p144, %p145
      %p147 = scmp.ne.s32.totalorder %s138, %s139
      %p148 = scmp.eq.s32.totalorder %s18, 0
      %p149 = por %p147, %p148
      %p150 = scmp.ne.s32.totalorder %s138, %s139
      %p151 = scmp.eq.s32.totalorder %s19, 1
      %p152 = por %p150, %p151
      %p154 = scmp.ne.s32.totalorder %s139, %s153
      %p155 = scmp.eq.s32.totalorder %s19, 0
      %p156 = por %p154, %p155
      %s158 = sadd.s32 %s157, 1
      %p161 = scmp.eq.s32.totalorder %s13, 1
      %p162 = scmp.ne.s32.totalorder %s157, %s159
      %p163 = scmp.eq.s32.totalorder %s13, 0
      %p164 = por %p162, %p163
      %p165 = scmp.ne.s32.totalorder %s157, %s159
      %p166 = scmp.eq.s32.totalorder %s18, 1
      %p167 = por %p165, %p166
      %p168 = scmp.ne.s32.totalorder %s159, %s160
      %p169 = scmp.eq.s32.totalorder %s18, 0
      %p170 = por %p168, %p169
      %p171 = scmp.ne.s32.totalorder %s159, %s160
      %p172 = scmp.eq.s32.totalorder %s19, 1
      %p173 = por %p171, %p172
      %p175 = scmp.ne.s32.totalorder %s160, %s174
      %p176 = scmp.eq.s32.totalorder %s19, 0
      %p177 = por %p175, %p176
      %p178 = scmp.le.s32.totalorder 1, %s13
      %p179 = scmp.lt.s32.totalorder %s13, 3
      %p180 = pnand %p178, %p179
      %p181 = pneg %p180
      // Predicated region
      $region9: #{cnn_dqn_forward.1} parent=5 // pred_check
        _
      $region10: #{cnn_dqn_forward.1} parent=5 // pred_check_branch
        %183 = sbr.rel (%p180) target = $region12
      $region11: #{cnn_dqn_forward.1} parent=5 // pred_region
        %s184 = ssub.s32 %s13, 1
        // Predicated region
        $region13: #{cnn_dqn_forward.1} parent=11 // pred_check
          %p185 = pneg %p86
        $region14: #{cnn_dqn_forward.1} parent=11 // pred_check_branch
          %187 = sbr.rel (%p185) target = $region16
        $region15: #{cnn_dqn_forward.1} parent=11 // pred_region
          _
        $region16: #{cnn_dqn_forward.1} parent=11 // pred_fallthru
          _
        // Predicated region
        $region17: #{cnn_dqn_forward.1} parent=11 // pred_check
          %p188 = pneg %p107
        $region18: #{cnn_dqn_forward.1} parent=11 // pred_check_branch
          %190 = sbr.rel (%p188) target = $region20
        $region19: #{cnn_dqn_forward.1} parent=11 // pred_region
          _
        $region20: #{cnn_dqn_forward.1} parent=11 // pred_fallthru
          _
        // Predicated region
        $region21: #{cnn_dqn_forward.1} parent=11 // pred_check
          %p191 = pneg %p128
        $region22: #{cnn_dqn_forward.1} parent=11 // pred_check_branch
          %193 = sbr.rel (%p191) target = $region24
        $region23: #{cnn_dqn_forward.1} parent=11 // pred_region
          _
        $region24: #{cnn_dqn_forward.1} parent=11 // pred_fallthru
          _
        // Predicated region
        $region25: #{cnn_dqn_forward.1} parent=11 // pred_check
          %p194 = pneg %p149
        $region26: #{cnn_dqn_forward.1} parent=11 // pred_check_branch
          %196 = sbr.rel (%p194) target = $region28
        $region27: #{cnn_dqn_forward.1} parent=11 // pred_region
          _
        $region28: #{cnn_dqn_forward.1} parent=11 // pred_fallthru
          _
      $region12: #{cnn_dqn_forward.1} parent=5 // pred_fallthru
        _
      %p197 = scmp.lt.s32.totalorder %s13, 2
      // Predicated region
      $region29: #{cnn_dqn_forward.1} parent=5 // pred_check
        %p198 = pneg %p197
      $region30: #{cnn_dqn_forward.1} parent=5 // pred_check_branch
        %200 = sbr.rel (%p198) target = $region32
      $region31: #{cnn_dqn_forward.1} parent=5 // pred_region
        // Predicated region
        $region33: #{cnn_dqn_forward.1} parent=31 // pred_check
          %p201 = pneg %p33
        $region34: #{cnn_dqn_forward.1} parent=31 // pred_check_branch
          %203 = sbr.rel (%p201) target = $region36
        $region35: #{cnn_dqn_forward.1} parent=31 // pred_region
          %s204 = smul.u32 32, %s13
          %p205 = scmp.lt.s32.totalorder %s204, 63
          %s206 = scalar_select %p205, %s204, 63
          %s207 = scalar_lea.vmem %s0, %s206
          %s208 = smul.u32 32, %s13
        $region36: #{cnn_dqn_forward.1} parent=31 // pred_fallthru
          _
        // Predicated region
        $region37: #{cnn_dqn_forward.1} parent=31 // pred_check
          %p209 = pneg %p59
        $region38: #{cnn_dqn_forward.1} parent=31 // pred_check_branch
          %211 = sbr.rel (%p209) target = $region40
        $region39: #{cnn_dqn_forward.1} parent=31 // pred_region
          %s212 = smul.u32 128, %s13
          %p213 = scmp.lt.s32.totalorder %s212, 255
          %s214 = scalar_select %p213, %s212, 255
          %s215 = smul.addr %s214, 4
          %s216 = smul.addr %s215, 8
          %s217 = scalar_lea.vmem %s1, %s216
          %s218 = smul.u32 128, %s13
        $region40: #{cnn_dqn_forward.1} parent=31 // pred_fallthru
          _
      $region32: #{cnn_dqn_forward.1} parent=5 // pred_fallthru
        _
      %p219 = scmp.le.s32.totalorder 1, %s13
      %p220 = scmp.lt.s32.totalorder %s13, 3
      %p221 = pnand %p219, %p220
      %p222 = pneg %p221
      // Predicated region
      $region41: #{cnn_dqn_forward.1} parent=5 // pred_check
        _
      $region42: #{cnn_dqn_forward.1} parent=5 // pred_check_branch
        %224 = sbr.rel (%p221) target = $region44
      $region43: #{cnn_dqn_forward.1} parent=5 // pred_region
        %s225 = ssub.s32 %s13, 1
        %s226 = smul.u32 32, %s18
        %p227 = scmp.lt.s32.totalorder %s226, 63
        %s228 = scalar_select %p227, %s226, 63
        %s229 = scalar_lea.vmem %s0, %s228
        %p230 = pneg %p39
        %p231 = pneg %p36
        %s232 = smul.u32 128, %s18
        %p233 = scmp.lt.s32.totalorder %s232, 255
        %s234 = scalar_select %p233, %s232, 255
        %s235 = smul.addr %s234, 4
        %s236 = smul.addr %s235, 8
        %s237 = scalar_lea.vmem %s1, %s236
        %p238 = pneg %p65
        %p239 = pneg %p62
        %p240 = pneg %p86
        %p241 = pneg %p83
        %p242 = pneg %p107
        %p243 = pneg %p104
        %p244 = pneg %p128
        %p245 = pneg %p125
        %p246 = pneg %p149
        %p247 = pneg %p146
        %p248 = pneg %p170
        %p249 = pneg %p167
        %s250 = smul.u32 32, %s18
        %p251 = scmp.lt.s32.totalorder %s250, 63
        %s252 = scalar_select %p251, %s250, 63
        %s253 = scalar_lea.vmem %s0, %s252
        %s254 = smul.u32 32, %s18
        %s255 = smul.u32 128, %s18
        %p256 = scmp.lt.s32.totalorder %s255, 255
        %s257 = scalar_select %p256, %s255, 255
        %s258 = smul.addr %s257, 4
        %s259 = smul.addr %s258, 8
        %s260 = scalar_lea.vmem %s1, %s259
        %s261 = smul.u32 128, %s18
        %p263 = scmp.eq.s32.totalorder %s18, 0
        // Predicated region
        $region45: #{cnn_dqn_forward.1} parent=43 // pred_check
          %p264 = pneg %p263
        $region46: #{cnn_dqn_forward.1} parent=43 // pred_check_branch
          %266 = sbr.rel (%p264) target = $region48
        $region47: #{cnn_dqn_forward.1} parent=43 // pred_region
          %vm267 = vcmask 1041408
          %vm268 = vcmask 1043458
          %vm269 = vmor %vm268, %vm267
          %vm270 = vcmask 1045508
          %vm271 = vmor %vm270, %vm269
          %vm272 = vcmask 130054
          %vm273 = vmor %vm272, %vm271
          %274 = vst.msk [vmem:[#allocation2] sm:$0xff] %vm273, 0.0
        $region48: #{cnn_dqn_forward.1} parent=43 // pred_fallthru
          _
        %v275 = vld [vmem:[%s260] sm:$0xff]
        %v276 = vld [vmem:[%s260 + $0x8] sm:$0xff]
        %v277 = vld [vmem:[%s260 + $0x10] sm:$0xff]
        %v278 = vld [vmem:[%s260 + $0x18] sm:$0xff]
        %v279 = vld [vmem:[%s260 + $0x20] sm:$0xff]
        %v280 = vld [vmem:[%s260 + $0x28] sm:$0xff]
        %v281 = vld [vmem:[%s260 + $0x30] sm:$0xff]
        %v282 = vld [vmem:[%s260 + $0x38] sm:$0xff]
        %v283 = vld [vmem:[%s260 + $0x40] sm:$0xff]
        %v284 = vld [vmem:[%s260 + $0x48] sm:$0xff]
        %v285 = vld [vmem:[%s260 + $0x50] sm:$0xff]
        %v286 = vld [vmem:[%s260 + $0x58] sm:$0xff]
        %v287 = vld [vmem:[%s260 + $0x60] sm:$0xff]
        %v288 = vld [vmem:[%s260 + $0x68] sm:$0xff]
        %v289 = vld [vmem:[%s260 + $0x70] sm:$0xff]
        %v290 = vld [vmem:[%s260 + $0x78] sm:$0xff]
        %v291 = vld [vmem:[%s260 + $0x80] sm:$0xff]
        %v292 = vld [vmem:[%s260 + $0x88] sm:$0xff]
        %v293 = vld [vmem:[%s260 + $0x90] sm:$0xff]
        %v294 = vld [vmem:[%s260 + $0x98] sm:$0xff]
        %v295 = vld [vmem:[%s260 + $0xa0] sm:$0xff]
        %v296 = vld [vmem:[%s260 + $0xa8] sm:$0xff]
        %v297 = vld [vmem:[%s260 + $0xb0] sm:$0xff]
        %v298 = vld [vmem:[%s260 + $0xb8] sm:$0xff]
        %v299 = vld [vmem:[%s260 + $0xc0] sm:$0xff]
        %v300 = vld [vmem:[%s260 + $0xc8] sm:$0xff]
        %v301 = vld [vmem:[%s260 + $0xd0] sm:$0xff]
        %v302 = vld [vmem:[%s260 + $0xd8] sm:$0xff]
        %v303 = vld [vmem:[%s260 + $0xe0] sm:$0xff]
        %v304 = vld [vmem:[%s260 + $0xe8] sm:$0xff]
        %v305 = vld [vmem:[%s260 + $0xf0] sm:$0xff]
        %v306 = vld [vmem:[%s260 + $0xf8] sm:$0xff]
        %v307 = vld [vmem:[%s260 + $0x100] sm:$0xff]
        %v308 = vld [vmem:[%s260 + $0x108] sm:$0xff]
        %v309 = vld [vmem:[%s260 + $0x110] sm:$0xff]
        %v310 = vld [vmem:[%s260 + $0x118] sm:$0xff]
        %v311 = vld [vmem:[%s260 + $0x120] sm:$0xff]
        %v312 = vld [vmem:[%s260 + $0x128] sm:$0xff]
        %v313 = vld [vmem:[%s260 + $0x130] sm:$0xff]
        %v314 = vld [vmem:[%s260 + $0x138] sm:$0xff]
        %v315 = vld [vmem:[%s260 + $0x140] sm:$0xff]
        %v316 = vld [vmem:[%s260 + $0x148] sm:$0xff]
        %v317 = vld [vmem:[%s260 + $0x150] sm:$0xff]
        %v318 = vld [vmem:[%s260 + $0x158] sm:$0xff]
        %v319 = vld [vmem:[%s260 + $0x160] sm:$0xff]
        %v320 = vld [vmem:[%s260 + $0x168] sm:$0xff]
        %v321 = vld [vmem:[%s260 + $0x170] sm:$0xff]
        %v322 = vld [vmem:[%s260 + $0x178] sm:$0xff]
        %v323 = vld [vmem:[%s260 + $0x180] sm:$0xff]
        %v324 = vld [vmem:[%s260 + $0x188] sm:$0xff]
        %v325 = vld [vmem:[%s260 + $0x190] sm:$0xff]
        %v326 = vld [vmem:[%s260 + $0x198] sm:$0xff]
        %v327 = vld [vmem:[%s260 + $0x1a0] sm:$0xff]
        %v328 = vld [vmem:[%s260 + $0x1a8] sm:$0xff]
        %v329 = vld [vmem:[%s260 + $0x1b0] sm:$0xff]
        %v330 = vld [vmem:[%s260 + $0x1b8] sm:$0xff]
        %v331 = vld [vmem:[%s260 + $0x1c0] sm:$0xff]
        %v332 = vld [vmem:[%s260 + $0x1c8] sm:$0xff]
        %v333 = vld [vmem:[%s260 + $0x1d0] sm:$0xff]
        %v334 = vld [vmem:[%s260 + $0x1d8] sm:$0xff]
        %v335 = vld [vmem:[%s260 + $0x1e0] sm:$0xff]
        %v336 = vld [vmem:[%s260 + $0x1e8] sm:$0xff]
        %v337 = vld [vmem:[%s260 + $0x1f0] sm:$0xff]
        %v338 = vld [vmem:[%s260 + $0x1f8] sm:$0xff]
        %v339 = vld [vmem:[%s260 + $0x200] sm:$0xff]
        %v340 = vld [vmem:[%s260 + $0x208] sm:$0xff]
        %v341 = vld [vmem:[%s260 + $0x210] sm:$0xff]
        %v342 = vld [vmem:[%s260 + $0x218] sm:$0xff]
        %v343 = vld [vmem:[%s260 + $0x220] sm:$0xff]
        %v344 = vld [vmem:[%s260 + $0x228] sm:$0xff]
        %v345 = vld [vmem:[%s260 + $0x230] sm:$0xff]
        %v346 = vld [vmem:[%s260 + $0x238] sm:$0xff]
        %v347 = vld [vmem:[%s260 + $0x240] sm:$0xff]
        %v348 = vld [vmem:[%s260 + $0x248] sm:$0xff]
        %v349 = vld [vmem:[%s260 + $0x250] sm:$0xff]
        %v350 = vld [vmem:[%s260 + $0x258] sm:$0xff]
        %v351 = vld [vmem:[%s260 + $0x260] sm:$0xff]
        %v352 = vld [vmem:[%s260 + $0x268] sm:$0xff]
        %v353 = vld [vmem:[%s260 + $0x270] sm:$0xff]
        %v354 = vld [vmem:[%s260 + $0x278] sm:$0xff]
        %v355 = vld [vmem:[%s260 + $0x280] sm:$0xff]
        %v356 = vld [vmem:[%s260 + $0x288] sm:$0xff]
        %v357 = vld [vmem:[%s260 + $0x290] sm:$0xff]
        %v358 = vld [vmem:[%s260 + $0x298] sm:$0xff]
        %v359 = vld [vmem:[%s260 + $0x2a0] sm:$0xff]
        %v360 = vld [vmem:[%s260 + $0x2a8] sm:$0xff]
        %v361 = vld [vmem:[%s260 + $0x2b0] sm:$0xff]
        %v362 = vld [vmem:[%s260 + $0x2b8] sm:$0xff]
        %v363 = vld [vmem:[%s260 + $0x2c0] sm:$0xff]
        %v364 = vld [vmem:[%s260 + $0x2c8] sm:$0xff]
        %v365 = vld [vmem:[%s260 + $0x2d0] sm:$0xff]
        %v366 = vld [vmem:[%s260 + $0x2d8] sm:$0xff]
        %v367 = vld [vmem:[%s260 + $0x2e0] sm:$0xff]
        %v368 = vld [vmem:[%s260 + $0x2e8] sm:$0xff]
        %v369 = vld [vmem:[%s260 + $0x2f0] sm:$0xff]
        %v370 = vld [vmem:[%s260 + $0x2f8] sm:$0xff]
        %v371 = vld [vmem:[%s260 + $0x300] sm:$0xff]
        %v372 = vld [vmem:[%s260 + $0x308] sm:$0xff]
        %v373 = vld [vmem:[%s260 + $0x310] sm:$0xff]
        %v374 = vld [vmem:[%s260 + $0x318] sm:$0xff]
        %v375 = vld [vmem:[%s260 + $0x320] sm:$0xff]
        %v376 = vld [vmem:[%s260 + $0x328] sm:$0xff]
        %v377 = vld [vmem:[%s260 + $0x330] sm:$0xff]
        %v378 = vld [vmem:[%s260 + $0x338] sm:$0xff]
        %v379 = vld [vmem:[%s260 + $0x340] sm:$0xff]
        %v380 = vld [vmem:[%s260 + $0x348] sm:$0xff]
        %v381 = vld [vmem:[%s260 + $0x350] sm:$0xff]
        %v382 = vld [vmem:[%s260 + $0x358] sm:$0xff]
        %v383 = vld [vmem:[%s260 + $0x360] sm:$0xff]
        %v384 = vld [vmem:[%s260 + $0x368] sm:$0xff]
        %v385 = vld [vmem:[%s260 + $0x370] sm:$0xff]
        %v386 = vld [vmem:[%s260 + $0x378] sm:$0xff]
        %v387 = vld [vmem:[%s260 + $0x380] sm:$0xff]
        %v388 = vld [vmem:[%s260 + $0x388] sm:$0xff]
        %v389 = vld [vmem:[%s260 + $0x390] sm:$0xff]
        %v390 = vld [vmem:[%s260 + $0x398] sm:$0xff]
        %v391 = vld [vmem:[%s260 + $0x3a0] sm:$0xff]
        %v392 = vld [vmem:[%s260 + $0x3a8] sm:$0xff]
        %v393 = vld [vmem:[%s260 + $0x3b0] sm:$0xff]
        %v394 = vld [vmem:[%s260 + $0x3b8] sm:$0xff]
        %v395 = vld [vmem:[%s260 + $0x3c0] sm:$0xff]
        %v396 = vld [vmem:[%s260 + $0x3c8] sm:$0xff]
        %v397 = vld [vmem:[%s260 + $0x3d0] sm:$0xff]
        %v398 = vld [vmem:[%s260 + $0x3d8] sm:$0xff]
        %v399 = vld [vmem:[%s260 + $0x3e0] sm:$0xff]
        %v400 = vld [vmem:[%s260 + $0x3e8] sm:$0xff]
        %v401 = vld [vmem:[%s260 + $0x3f0] sm:$0xff]
        %v402 = vld [vmem:[%s260 + $0x3f8] sm:$0xff]
        %v403 = vld [vmem:[%s260 + $0x400] sm:$0xff]
        %v404 = vld [vmem:[%s260 + $0x408] sm:$0xff]
        %v405 = vld [vmem:[%s260 + $0x410] sm:$0xff]
        %v406 = vld [vmem:[%s260 + $0x418] sm:$0xff]
        %v407 = vld [vmem:[%s260 + $0x420] sm:$0xff]
        %v408 = vld [vmem:[%s260 + $0x428] sm:$0xff]
        %v409 = vld [vmem:[%s260 + $0x430] sm:$0xff]
        %v410 = vld [vmem:[%s260 + $0x438] sm:$0xff]
        %v411 = vld [vmem:[%s260 + $0x440] sm:$0xff]
        %v412 = vld [vmem:[%s260 + $0x448] sm:$0xff]
        %v413 = vld [vmem:[%s260 + $0x450] sm:$0xff]
        %v414 = vld [vmem:[%s260 + $0x458] sm:$0xff]
        %v415 = vld [vmem:[%s260 + $0x460] sm:$0xff]
        %v416 = vld [vmem:[%s260 + $0x468] sm:$0xff]
        %v417 = vld [vmem:[%s260 + $0x470] sm:$0xff]
        %v418 = vld [vmem:[%s260 + $0x478] sm:$0xff]
        %v419 = vld [vmem:[%s260 + $0x480] sm:$0xff]
        %v420 = vld [vmem:[%s260 + $0x488] sm:$0xff]
        %v421 = vld [vmem:[%s260 + $0x490] sm:$0xff]
        %v422 = vld [vmem:[%s260 + $0x498] sm:$0xff]
        %v423 = vld [vmem:[%s260 + $0x4a0] sm:$0xff]
        %v424 = vld [vmem:[%s260 + $0x4a8] sm:$0xff]
        %v425 = vld [vmem:[%s260 + $0x4b0] sm:$0xff]
        %v426 = vld [vmem:[%s260 + $0x4b8] sm:$0xff]
        %v427 = vld [vmem:[%s260 + $0x4c0] sm:$0xff]
        %v428 = vld [vmem:[%s260 + $0x4c8] sm:$0xff]
        %v429 = vld [vmem:[%s260 + $0x4d0] sm:$0xff]
        %v430 = vld [vmem:[%s260 + $0x4d8] sm:$0xff]
        %v431 = vld [vmem:[%s260 + $0x4e0] sm:$0xff]
        %v432 = vld [vmem:[%s260 + $0x4e8] sm:$0xff]
        %v433 = vld [vmem:[%s260 + $0x4f0] sm:$0xff]
        %v434 = vld [vmem:[%s260 + $0x4f8] sm:$0xff]
        %v435 = vld [vmem:[%s260 + $0x500] sm:$0xff]
        %v436 = vld [vmem:[%s260 + $0x508] sm:$0xff]
        %v437 = vld [vmem:[%s260 + $0x510] sm:$0xff]
        %v438 = vld [vmem:[%s260 + $0x518] sm:$0xff]
        %v439 = vld [vmem:[%s260 + $0x520] sm:$0xff]
        %v440 = vld [vmem:[%s260 + $0x528] sm:$0xff]
        %v441 = vld [vmem:[%s260 + $0x530] sm:$0xff]
        %v442 = vld [vmem:[%s260 + $0x538] sm:$0xff]
        %v443 = vld [vmem:[%s260 + $0x540] sm:$0xff]
        %v444 = vld [vmem:[%s260 + $0x548] sm:$0xff]
        %v445 = vld [vmem:[%s260 + $0x550] sm:$0xff]
        %v446 = vld [vmem:[%s260 + $0x558] sm:$0xff]
        %v447 = vld [vmem:[%s260 + $0x560] sm:$0xff]
        %v448 = vld [vmem:[%s260 + $0x568] sm:$0xff]
        %v449 = vld [vmem:[%s260 + $0x570] sm:$0xff]
        %v450 = vld [vmem:[%s260 + $0x578] sm:$0xff]
        %v451 = vld [vmem:[%s260 + $0x580] sm:$0xff]
        %v452 = vld [vmem:[%s260 + $0x588] sm:$0xff]
        %v453 = vld [vmem:[%s260 + $0x590] sm:$0xff]
        %v454 = vld [vmem:[%s260 + $0x598] sm:$0xff]
        %v455 = vld [vmem:[%s260 + $0x5a0] sm:$0xff]
        %v456 = vld [vmem:[%s260 + $0x5a8] sm:$0xff]
        %v457 = vld [vmem:[%s260 + $0x5b0] sm:$0xff]
        %v458 = vld [vmem:[%s260 + $0x5b8] sm:$0xff]
        %v459 = vld [vmem:[%s260 + $0x5c0] sm:$0xff]
        %v460 = vld [vmem:[%s260 + $0x5c8] sm:$0xff]
        %v461 = vld [vmem:[%s260 + $0x5d0] sm:$0xff]
        %v462 = vld [vmem:[%s260 + $0x5d8] sm:$0xff]
        %v463 = vld [vmem:[%s260 + $0x5e0] sm:$0xff]
        %v464 = vld [vmem:[%s260 + $0x5e8] sm:$0xff]
        %v465 = vld [vmem:[%s260 + $0x5f0] sm:$0xff]
        %v466 = vld [vmem:[%s260 + $0x5f8] sm:$0xff]
        %v467 = vld [vmem:[%s260 + $0x600] sm:$0xff]
        %v468 = vld [vmem:[%s260 + $0x608] sm:$0xff]
        %v469 = vld [vmem:[%s260 + $0x610] sm:$0xff]
        %v470 = vld [vmem:[%s260 + $0x618] sm:$0xff]
        %v471 = vld [vmem:[%s260 + $0x620] sm:$0xff]
        %v472 = vld [vmem:[%s260 + $0x628] sm:$0xff]
        %v473 = vld [vmem:[%s260 + $0x630] sm:$0xff]
        %v474 = vld [vmem:[%s260 + $0x638] sm:$0xff]
        %v475 = vld [vmem:[%s260 + $0x640] sm:$0xff]
        %v476 = vld [vmem:[%s260 + $0x648] sm:$0xff]
        %v477 = vld [vmem:[%s260 + $0x650] sm:$0xff]
        %v478 = vld [vmem:[%s260 + $0x658] sm:$0xff]
        %v479 = vld [vmem:[%s260 + $0x660] sm:$0xff]
        %v480 = vld [vmem:[%s260 + $0x668] sm:$0xff]
        %v481 = vld [vmem:[%s260 + $0x670] sm:$0xff]
        %v482 = vld [vmem:[%s260 + $0x678] sm:$0xff]
        %v483 = vld [vmem:[%s260 + $0x680] sm:$0xff]
        %v484 = vld [vmem:[%s260 + $0x688] sm:$0xff]
        %v485 = vld [vmem:[%s260 + $0x690] sm:$0xff]
        %v486 = vld [vmem:[%s260 + $0x698] sm:$0xff]
        %v487 = vld [vmem:[%s260 + $0x6a0] sm:$0xff]
        %v488 = vld [vmem:[%s260 + $0x6a8] sm:$0xff]
        %v489 = vld [vmem:[%s260 + $0x6b0] sm:$0xff]
        %v490 = vld [vmem:[%s260 + $0x6b8] sm:$0xff]
        %v491 = vld [vmem:[%s260 + $0x6c0] sm:$0xff]
        %v492 = vld [vmem:[%s260 + $0x6c8] sm:$0xff]
        %v493 = vld [vmem:[%s260 + $0x6d0] sm:$0xff]
        %v494 = vld [vmem:[%s260 + $0x6d8] sm:$0xff]
        %v495 = vld [vmem:[%s260 + $0x6e0] sm:$0xff]
        %v496 = vld [vmem:[%s260 + $0x6e8] sm:$0xff]
        %v497 = vld [vmem:[%s260 + $0x6f0] sm:$0xff]
        %v498 = vld [vmem:[%s260 + $0x6f8] sm:$0xff]
        %v499 = vld [vmem:[%s260 + $0x700] sm:$0xff]
        %v500 = vld [vmem:[%s260 + $0x708] sm:$0xff]
        %v501 = vld [vmem:[%s260 + $0x710] sm:$0xff]
        %v502 = vld [vmem:[%s260 + $0x718] sm:$0xff]
        %v503 = vld [vmem:[%s260 + $0x720] sm:$0xff]
        %v504 = vld [vmem:[%s260 + $0x728] sm:$0xff]
        %v505 = vld [vmem:[%s260 + $0x730] sm:$0xff]
        %v506 = vld [vmem:[%s260 + $0x738] sm:$0xff]
        %v507 = vld [vmem:[%s260 + $0x740] sm:$0xff]
        %v508 = vld [vmem:[%s260 + $0x748] sm:$0xff]
        %v509 = vld [vmem:[%s260 + $0x750] sm:$0xff]
        %v510 = vld [vmem:[%s260 + $0x758] sm:$0xff]
        %v511 = vld [vmem:[%s260 + $0x760] sm:$0xff]
        %v512 = vld [vmem:[%s260 + $0x768] sm:$0xff]
        %v513 = vld [vmem:[%s260 + $0x770] sm:$0xff]
        %v514 = vld [vmem:[%s260 + $0x778] sm:$0xff]
        %v515 = vld [vmem:[%s260 + $0x780] sm:$0xff]
        %v516 = vld [vmem:[%s260 + $0x788] sm:$0xff]
        %v517 = vld [vmem:[%s260 + $0x790] sm:$0xff]
        %v518 = vld [vmem:[%s260 + $0x798] sm:$0xff]
        %v519 = vld [vmem:[%s260 + $0x7a0] sm:$0xff]
        %v520 = vld [vmem:[%s260 + $0x7a8] sm:$0xff]
        %v521 = vld [vmem:[%s260 + $0x7b0] sm:$0xff]
        %v522 = vld [vmem:[%s260 + $0x7b8] sm:$0xff]
        %v523 = vld [vmem:[%s260 + $0x7c0] sm:$0xff]
        %v524 = vld [vmem:[%s260 + $0x7c8] sm:$0xff]
        %v525 = vld [vmem:[%s260 + $0x7d0] sm:$0xff]
        %v526 = vld [vmem:[%s260 + $0x7d8] sm:$0xff]
        %v527 = vld [vmem:[%s260 + $0x7e0] sm:$0xff]
        %v528 = vld [vmem:[%s260 + $0x7e8] sm:$0xff]
        %v529 = vld [vmem:[%s260 + $0x7f0] sm:$0xff]
        %v530 = vld [vmem:[%s260 + $0x7f8] sm:$0xff]
        %v531 = vld [vmem:[%s260 + $0x800] sm:$0xff]
        %v532 = vld [vmem:[%s260 + $0x808] sm:$0xff]
        %v533 = vld [vmem:[%s260 + $0x810] sm:$0xff]
        %v534 = vld [vmem:[%s260 + $0x818] sm:$0xff]
        %v535 = vld [vmem:[%s260 + $0x820] sm:$0xff]
        %v536 = vld [vmem:[%s260 + $0x828] sm:$0xff]
        %v537 = vld [vmem:[%s260 + $0x830] sm:$0xff]
        %v538 = vld [vmem:[%s260 + $0x838] sm:$0xff]
        %v539 = vld [vmem:[%s260 + $0x840] sm:$0xff]
        %v540 = vld [vmem:[%s260 + $0x848] sm:$0xff]
        %v541 = vld [vmem:[%s260 + $0x850] sm:$0xff]
        %v542 = vld [vmem:[%s260 + $0x858] sm:$0xff]
        %v543 = vld [vmem:[%s260 + $0x860] sm:$0xff]
        %v544 = vld [vmem:[%s260 + $0x868] sm:$0xff]
        %v545 = vld [vmem:[%s260 + $0x870] sm:$0xff]
        %v546 = vld [vmem:[%s260 + $0x878] sm:$0xff]
        %v547 = vld [vmem:[%s260 + $0x880] sm:$0xff]
        %v548 = vld [vmem:[%s260 + $0x888] sm:$0xff]
        %v549 = vld [vmem:[%s260 + $0x890] sm:$0xff]
        %v550 = vld [vmem:[%s260 + $0x898] sm:$0xff]
        %v551 = vld [vmem:[%s260 + $0x8a0] sm:$0xff]
        %v552 = vld [vmem:[%s260 + $0x8a8] sm:$0xff]
        %v553 = vld [vmem:[%s260 + $0x8b0] sm:$0xff]
        %v554 = vld [vmem:[%s260 + $0x8b8] sm:$0xff]
        %v555 = vld [vmem:[%s260 + $0x8c0] sm:$0xff]
        %v556 = vld [vmem:[%s260 + $0x8c8] sm:$0xff]
        %v557 = vld [vmem:[%s260 + $0x8d0] sm:$0xff]
        %v558 = vld [vmem:[%s260 + $0x8d8] sm:$0xff]
        %v559 = vld [vmem:[%s260 + $0x8e0] sm:$0xff]
        %v560 = vld [vmem:[%s260 + $0x8e8] sm:$0xff]
        %v561 = vld [vmem:[%s260 + $0x8f0] sm:$0xff]
        %v562 = vld [vmem:[%s260 + $0x8f8] sm:$0xff]
        %v563 = vld [vmem:[%s260 + $0x900] sm:$0xff]
        %v564 = vld [vmem:[%s260 + $0x908] sm:$0xff]
        %v565 = vld [vmem:[%s260 + $0x910] sm:$0xff]
        %v566 = vld [vmem:[%s260 + $0x918] sm:$0xff]
        %v567 = vld [vmem:[%s260 + $0x920] sm:$0xff]
        %v568 = vld [vmem:[%s260 + $0x928] sm:$0xff]
        %v569 = vld [vmem:[%s260 + $0x930] sm:$0xff]
        %v570 = vld [vmem:[%s260 + $0x938] sm:$0xff]
        %v571 = vld [vmem:[%s260 + $0x940] sm:$0xff]
        %v572 = vld [vmem:[%s260 + $0x948] sm:$0xff]
        %v573 = vld [vmem:[%s260 + $0x950] sm:$0xff]
        %v574 = vld [vmem:[%s260 + $0x958] sm:$0xff]
        %v575 = vld [vmem:[%s260 + $0x960] sm:$0xff]
        %v576 = vld [vmem:[%s260 + $0x968] sm:$0xff]
        %v577 = vld [vmem:[%s260 + $0x970] sm:$0xff]
        %v578 = vld [vmem:[%s260 + $0x978] sm:$0xff]
        %v579 = vld [vmem:[%s260 + $0x980] sm:$0xff]
        %v580 = vld [vmem:[%s260 + $0x988] sm:$0xff]
        %v581 = vld [vmem:[%s260 + $0x990] sm:$0xff]
        %v582 = vld [vmem:[%s260 + $0x998] sm:$0xff]
        %v583 = vld [vmem:[%s260 + $0x9a0] sm:$0xff]
        %v584 = vld [vmem:[%s260 + $0x9a8] sm:$0xff]
        %v585 = vld [vmem:[%s260 + $0x9b0] sm:$0xff]
        %v586 = vld [vmem:[%s260 + $0x9b8] sm:$0xff]
        %v587 = vld [vmem:[%s260 + $0x9c0] sm:$0xff]
        %v588 = vld [vmem:[%s260 + $0x9c8] sm:$0xff]
        %v589 = vld [vmem:[%s260 + $0x9d0] sm:$0xff]
        %v590 = vld [vmem:[%s260 + $0x9d8] sm:$0xff]
        %v591 = vld [vmem:[%s260 + $0x9e0] sm:$0xff]
        %v592 = vld [vmem:[%s260 + $0x9e8] sm:$0xff]
        %v593 = vld [vmem:[%s260 + $0x9f0] sm:$0xff]
        %v594 = vld [vmem:[%s260 + $0x9f8] sm:$0xff]
        %v595 = vld [vmem:[%s260 + $0xa00] sm:$0xff]
        %v596 = vld [vmem:[%s260 + $0xa08] sm:$0xff]
        %v597 = vld [vmem:[%s260 + $0xa10] sm:$0xff]
        %v598 = vld [vmem:[%s260 + $0xa18] sm:$0xff]
        %v599 = vld [vmem:[%s260 + $0xa20] sm:$0xff]
        %v600 = vld [vmem:[%s260 + $0xa28] sm:$0xff]
        %v601 = vld [vmem:[%s260 + $0xa30] sm:$0xff]
        %v602 = vld [vmem:[%s260 + $0xa38] sm:$0xff]
        %v603 = vld [vmem:[%s260 + $0xa40] sm:$0xff]
        %v604 = vld [vmem:[%s260 + $0xa48] sm:$0xff]
        %v605 = vld [vmem:[%s260 + $0xa50] sm:$0xff]
        %v606 = vld [vmem:[%s260 + $0xa58] sm:$0xff]
        %v607 = vld [vmem:[%s260 + $0xa60] sm:$0xff]
        %v608 = vld [vmem:[%s260 + $0xa68] sm:$0xff]
        %v609 = vld [vmem:[%s260 + $0xa70] sm:$0xff]
        %v610 = vld [vmem:[%s260 + $0xa78] sm:$0xff]
        %v611 = vld [vmem:[%s260 + $0xa80] sm:$0xff]
        %v612 = vld [vmem:[%s260 + $0xa88] sm:$0xff]
        %v613 = vld [vmem:[%s260 + $0xa90] sm:$0xff]
        %v614 = vld [vmem:[%s260 + $0xa98] sm:$0xff]
        %v615 = vld [vmem:[%s260 + $0xaa0] sm:$0xff]
        %v616 = vld [vmem:[%s260 + $0xaa8] sm:$0xff]
        %v617 = vld [vmem:[%s260 + $0xab0] sm:$0xff]
        %v618 = vld [vmem:[%s260 + $0xab8] sm:$0xff]
        %v619 = vld [vmem:[%s260 + $0xac0] sm:$0xff]
        %v620 = vld [vmem:[%s260 + $0xac8] sm:$0xff]
        %v621 = vld [vmem:[%s260 + $0xad0] sm:$0xff]
        %v622 = vld [vmem:[%s260 + $0xad8] sm:$0xff]
        %v623 = vld [vmem:[%s260 + $0xae0] sm:$0xff]
        %v624 = vld [vmem:[%s260 + $0xae8] sm:$0xff]
        %v625 = vld [vmem:[%s260 + $0xaf0] sm:$0xff]
        %v626 = vld [vmem:[%s260 + $0xaf8] sm:$0xff]
        %v627 = vld [vmem:[%s260 + $0xb00] sm:$0xff]
        %v628 = vld [vmem:[%s260 + $0xb08] sm:$0xff]
        %v629 = vld [vmem:[%s260 + $0xb10] sm:$0xff]
        %v630 = vld [vmem:[%s260 + $0xb18] sm:$0xff]
        %v631 = vld [vmem:[%s260 + $0xb20] sm:$0xff]
        %v632 = vld [vmem:[%s260 + $0xb28] sm:$0xff]
        %v633 = vld [vmem:[%s260 + $0xb30] sm:$0xff]
        %v634 = vld [vmem:[%s260 + $0xb38] sm:$0xff]
        %v635 = vld [vmem:[%s260 + $0xb40] sm:$0xff]
        %v636 = vld [vmem:[%s260 + $0xb48] sm:$0xff]
        %v637 = vld [vmem:[%s260 + $0xb50] sm:$0xff]
        %v638 = vld [vmem:[%s260 + $0xb58] sm:$0xff]
        %v639 = vld [vmem:[%s260 + $0xb60] sm:$0xff]
        %v640 = vld [vmem:[%s260 + $0xb68] sm:$0xff]
        %v641 = vld [vmem:[%s260 + $0xb70] sm:$0xff]
        %v642 = vld [vmem:[%s260 + $0xb78] sm:$0xff]
        %v643 = vld [vmem:[%s260 + $0xb80] sm:$0xff]
        %v644 = vld [vmem:[%s260 + $0xb88] sm:$0xff]
        %v645 = vld [vmem:[%s260 + $0xb90] sm:$0xff]
        %v646 = vld [vmem:[%s260 + $0xb98] sm:$0xff]
        %v647 = vld [vmem:[%s260 + $0xba0] sm:$0xff]
        %v648 = vld [vmem:[%s260 + $0xba8] sm:$0xff]
        %v649 = vld [vmem:[%s260 + $0xbb0] sm:$0xff]
        %v650 = vld [vmem:[%s260 + $0xbb8] sm:$0xff]
        %v651 = vld [vmem:[%s260 + $0xbc0] sm:$0xff]
        %v652 = vld [vmem:[%s260 + $0xbc8] sm:$0xff]
        %v653 = vld [vmem:[%s260 + $0xbd0] sm:$0xff]
        %v654 = vld [vmem:[%s260 + $0xbd8] sm:$0xff]
        %v655 = vld [vmem:[%s260 + $0xbe0] sm:$0xff]
        %v656 = vld [vmem:[%s260 + $0xbe8] sm:$0xff]
        %v657 = vld [vmem:[%s260 + $0xbf0] sm:$0xff]
        %v658 = vld [vmem:[%s260 + $0xbf8] sm:$0xff]
        %v659 = vld [vmem:[%s260 + $0xc00] sm:$0xff]
        %v660 = vld [vmem:[%s260 + $0xc08] sm:$0xff]
        %v661 = vld [vmem:[%s260 + $0xc10] sm:$0xff]
        %v662 = vld [vmem:[%s260 + $0xc18] sm:$0xff]
        %v663 = vld [vmem:[%s260 + $0xc20] sm:$0xff]
        %v664 = vld [vmem:[%s260 + $0xc28] sm:$0xff]
        %v665 = vld [vmem:[%s260 + $0xc30] sm:$0xff]
        %v666 = vld [vmem:[%s260 + $0xc38] sm:$0xff]
        %v667 = vld [vmem:[%s260 + $0xc40] sm:$0xff]
        %v668 = vld [vmem:[%s260 + $0xc48] sm:$0xff]
        %v669 = vld [vmem:[%s260 + $0xc50] sm:$0xff]
        %v670 = vld [vmem:[%s260 + $0xc58] sm:$0xff]
        %v671 = vld [vmem:[%s260 + $0xc60] sm:$0xff]
        %v672 = vld [vmem:[%s260 + $0xc68] sm:$0xff]
        %v673 = vld [vmem:[%s260 + $0xc70] sm:$0xff]
        %v674 = vld [vmem:[%s260 + $0xc78] sm:$0xff]
        %v675 = vld [vmem:[%s260 + $0xc80] sm:$0xff]
        %v676 = vld [vmem:[%s260 + $0xc88] sm:$0xff]
        %v677 = vld [vmem:[%s260 + $0xc90] sm:$0xff]
        %v678 = vld [vmem:[%s260 + $0xc98] sm:$0xff]
        %v679 = vld [vmem:[%s260 + $0xca0] sm:$0xff]
        %v680 = vld [vmem:[%s260 + $0xca8] sm:$0xff]
        %v681 = vld [vmem:[%s260 + $0xcb0] sm:$0xff]
        %v682 = vld [vmem:[%s260 + $0xcb8] sm:$0xff]
        %v683 = vld [vmem:[%s260 + $0xcc0] sm:$0xff]
        %v684 = vld [vmem:[%s260 + $0xcc8] sm:$0xff]
        %v685 = vld [vmem:[%s260 + $0xcd0] sm:$0xff]
        %v686 = vld [vmem:[%s260 + $0xcd8] sm:$0xff]
        %v687 = vld [vmem:[%s260 + $0xce0] sm:$0xff]
        %v688 = vld [vmem:[%s260 + $0xce8] sm:$0xff]
        %v689 = vld [vmem:[%s260 + $0xcf0] sm:$0xff]
        %v690 = vld [vmem:[%s260 + $0xcf8] sm:$0xff]
        %v691 = vld [vmem:[%s260 + $0xd00] sm:$0xff]
        %v692 = vld [vmem:[%s260 + $0xd08] sm:$0xff]
        %v693 = vld [vmem:[%s260 + $0xd10] sm:$0xff]
        %v694 = vld [vmem:[%s260 + $0xd18] sm:$0xff]
        %v695 = vld [vmem:[%s260 + $0xd20] sm:$0xff]
        %v696 = vld [vmem:[%s260 + $0xd28] sm:$0xff]
        %v697 = vld [vmem:[%s260 + $0xd30] sm:$0xff]
        %v698 = vld [vmem:[%s260 + $0xd38] sm:$0xff]
        %v699 = vld [vmem:[%s260 + $0xd40] sm:$0xff]
        %v700 = vld [vmem:[%s260 + $0xd48] sm:$0xff]
        %v701 = vld [vmem:[%s260 + $0xd50] sm:$0xff]
        %v702 = vld [vmem:[%s260 + $0xd58] sm:$0xff]
        %v703 = vld [vmem:[%s260 + $0xd60] sm:$0xff]
        %v704 = vld [vmem:[%s260 + $0xd68] sm:$0xff]
        %v705 = vld [vmem:[%s260 + $0xd70] sm:$0xff]
        %v706 = vld [vmem:[%s260 + $0xd78] sm:$0xff]
        %v707 = vld [vmem:[%s260 + $0xd80] sm:$0xff]
        %v708 = vld [vmem:[%s260 + $0xd88] sm:$0xff]
        %v709 = vld [vmem:[%s260 + $0xd90] sm:$0xff]
        %v710 = vld [vmem:[%s260 + $0xd98] sm:$0xff]
        %v711 = vld [vmem:[%s260 + $0xda0] sm:$0xff]
        %v712 = vld [vmem:[%s260 + $0xda8] sm:$0xff]
        %v713 = vld [vmem:[%s260 + $0xdb0] sm:$0xff]
        %v714 = vld [vmem:[%s260 + $0xdb8] sm:$0xff]
        %v715 = vld [vmem:[%s260 + $0xdc0] sm:$0xff]
        %v716 = vld [vmem:[%s260 + $0xdc8] sm:$0xff]
        %v717 = vld [vmem:[%s260 + $0xdd0] sm:$0xff]
        %v718 = vld [vmem:[%s260 + $0xdd8] sm:$0xff]
        %v719 = vld [vmem:[%s260 + $0xde0] sm:$0xff]
        %v720 = vld [vmem:[%s260 + $0xde8] sm:$0xff]
        %v721 = vld [vmem:[%s260 + $0xdf0] sm:$0xff]
        %v722 = vld [vmem:[%s260 + $0xdf8] sm:$0xff]
        %v723 = vld [vmem:[%s260 + $0xe00] sm:$0xff]
        %v724 = vld [vmem:[%s260 + $0xe08] sm:$0xff]
        %v725 = vld [vmem:[%s260 + $0xe10] sm:$0xff]
        %v726 = vld [vmem:[%s260 + $0xe18] sm:$0xff]
        %v727 = vld [vmem:[%s260 + $0xe20] sm:$0xff]
        %v728 = vld [vmem:[%s260 + $0xe28] sm:$0xff]
        %v729 = vld [vmem:[%s260 + $0xe30] sm:$0xff]
        %v730 = vld [vmem:[%s260 + $0xe38] sm:$0xff]
        %v731 = vld [vmem:[%s260 + $0xe40] sm:$0xff]
        %v732 = vld [vmem:[%s260 + $0xe48] sm:$0xff]
        %v733 = vld [vmem:[%s260 + $0xe50] sm:$0xff]
        %v734 = vld [vmem:[%s260 + $0xe58] sm:$0xff]
        %v735 = vld [vmem:[%s260 + $0xe60] sm:$0xff]
        %v736 = vld [vmem:[%s260 + $0xe68] sm:$0xff]
        %v737 = vld [vmem:[%s260 + $0xe70] sm:$0xff]
        %v738 = vld [vmem:[%s260 + $0xe78] sm:$0xff]
        %v739 = vld [vmem:[%s260 + $0xe80] sm:$0xff]
        %v740 = vld [vmem:[%s260 + $0xe88] sm:$0xff]
        %v741 = vld [vmem:[%s260 + $0xe90] sm:$0xff]
        %v742 = vld [vmem:[%s260 + $0xe98] sm:$0xff]
        %v743 = vld [vmem:[%s260 + $0xea0] sm:$0xff]
        %v744 = vld [vmem:[%s260 + $0xea8] sm:$0xff]
        %v745 = vld [vmem:[%s260 + $0xeb0] sm:$0xff]
        %v746 = vld [vmem:[%s260 + $0xeb8] sm:$0xff]
        %v747 = vld [vmem:[%s260 + $0xec0] sm:$0xff]
        %v748 = vld [vmem:[%s260 + $0xec8] sm:$0xff]
        %v749 = vld [vmem:[%s260 + $0xed0] sm:$0xff]
        %v750 = vld [vmem:[%s260 + $0xed8] sm:$0xff]
        %v751 = vld [vmem:[%s260 + $0xee0] sm:$0xff]
        %v752 = vld [vmem:[%s260 + $0xee8] sm:$0xff]
        %v753 = vld [vmem:[%s260 + $0xef0] sm:$0xff]
        %v754 = vld [vmem:[%s260 + $0xef8] sm:$0xff]
        %v755 = vld [vmem:[%s260 + $0xf00] sm:$0xff]
        %v756 = vld [vmem:[%s260 + $0xf08] sm:$0xff]
        %v757 = vld [vmem:[%s260 + $0xf10] sm:$0xff]
        %v758 = vld [vmem:[%s260 + $0xf18] sm:$0xff]
        %v759 = vld [vmem:[%s260 + $0xf20] sm:$0xff]
        %v760 = vld [vmem:[%s260 + $0xf28] sm:$0xff]
        %v761 = vld [vmem:[%s260 + $0xf30] sm:$0xff]
        %v762 = vld [vmem:[%s260 + $0xf38] sm:$0xff]
        %v763 = vld [vmem:[%s260 + $0xf40] sm:$0xff]
        %v764 = vld [vmem:[%s260 + $0xf48] sm:$0xff]
        %v765 = vld [vmem:[%s260 + $0xf50] sm:$0xff]
        %v766 = vld [vmem:[%s260 + $0xf58] sm:$0xff]
        %v767 = vld [vmem:[%s260 + $0xf60] sm:$0xff]
        %v768 = vld [vmem:[%s260 + $0xf68] sm:$0xff]
        %v769 = vld [vmem:[%s260 + $0xf70] sm:$0xff]
        %v770 = vld [vmem:[%s260 + $0xf78] sm:$0xff]
        %v771 = vld [vmem:[%s260 + $0xf80] sm:$0xff]
        %v772 = vld [vmem:[%s260 + $0xf88] sm:$0xff]
        %v773 = vld [vmem:[%s260 + $0xf90] sm:$0xff]
        %v774 = vld [vmem:[%s260 + $0xf98] sm:$0xff]
        %v775 = vld [vmem:[%s260 + $0xfa0] sm:$0xff]
        %v776 = vld [vmem:[%s260 + $0xfa8] sm:$0xff]
        %v777 = vld [vmem:[%s260 + $0xfb0] sm:$0xff]
        %v778 = vld [vmem:[%s260 + $0xfb8] sm:$0xff]
        %v779 = vld [vmem:[%s260 + $0xfc0] sm:$0xff]
        %v780 = vld [vmem:[%s260 + $0xfc8] sm:$0xff]
        %v781 = vld [vmem:[%s260 + $0xfd0] sm:$0xff]
        %v782 = vld [vmem:[%s260 + $0xfd8] sm:$0xff]
        %v783 = vld [vmem:[%s260 + $0xfe0] sm:$0xff]
        %v784 = vld [vmem:[%s260 + $0xfe8] sm:$0xff]
        %v785 = vld [vmem:[%s260 + $0xff0] sm:$0xff]
        %v786 = vld [vmem:[%s260 + $0xff8] sm:$0xff]
        %v787 = vunpack.c.l.s8.bf16 %v275
        %v788 = vunpack.c.l.s8.bf16 %v276
        %v789 = vunpack.c.l.s8.bf16 %v277
        %v790 = vunpack.c.l.s8.bf16 %v278
        %v791 = vunpack.c.h.s8.bf16 %v275
        %v792 = vunpack.c.h.s8.bf16 %v276
        %v793 = vunpack.c.h.s8.bf16 %v277
        %v794 = vunpack.c.h.s8.bf16 %v278
        %v795 = vunpack.c.l.s8.bf16 %v279
        %v796 = vunpack.c.l.s8.bf16 %v280
        %v797 = vunpack.c.l.s8.bf16 %v281
        %v798 = vunpack.c.l.s8.bf16 %v282
        %v799 = vunpack.c.h.s8.bf16 %v279
        %v800 = vunpack.c.h.s8.bf16 %v280
        %v801 = vunpack.c.h.s8.bf16 %v281
        %v802 = vunpack.c.h.s8.bf16 %v282
        %v803 = vunpack.c.l.s8.bf16 %v283
        %v804 = vunpack.c.l.s8.bf16 %v284
        %v805 = vunpack.c.l.s8.bf16 %v285
        %v806 = vunpack.c.l.s8.bf16 %v286
        %v807 = vunpack.c.h.s8.bf16 %v283
        %v808 = vunpack.c.h.s8.bf16 %v284
        %v809 = vunpack.c.h.s8.bf16 %v285
        %v810 = vunpack.c.h.s8.bf16 %v286
        %v811 = vunpack.c.l.s8.bf16 %v287
        %v812 = vunpack.c.l.s8.bf16 %v288
        %v813 = vunpack.c.l.s8.bf16 %v289
        %v814 = vunpack.c.l.s8.bf16 %v290
        %v815 = vunpack.c.h.s8.bf16 %v287
        %v816 = vunpack.c.h.s8.bf16 %v288
        %v817 = vunpack.c.h.s8.bf16 %v289
        %v818 = vunpack.c.h.s8.bf16 %v290
        %v819 = vunpack.c.l.s8.bf16 %v291
        %v820 = vunpack.c.l.s8.bf16 %v292
        %v821 = vunpack.c.l.s8.bf16 %v293
        %v822 = vunpack.c.l.s8.bf16 %v294
        %v823 = vunpack.c.h.s8.bf16 %v291
        %v824 = vunpack.c.h.s8.bf16 %v292
        %v825 = vunpack.c.h.s8.bf16 %v293
        %v826 = vunpack.c.h.s8.bf16 %v294
        %v827 = vunpack.c.l.s8.bf16 %v295
        %v828 = vunpack.c.l.s8.bf16 %v296
        %v829 = vunpack.c.l.s8.bf16 %v297
        %v830 = vunpack.c.l.s8.bf16 %v298
        %v831 = vunpack.c.h.s8.bf16 %v295
        %v832 = vunpack.c.h.s8.bf16 %v296
        %v833 = vunpack.c.h.s8.bf16 %v297
        %v834 = vunpack.c.h.s8.bf16 %v298
        %v835 = vunpack.c.l.s8.bf16 %v299
        %v836 = vunpack.c.l.s8.bf16 %v300
        %v837 = vunpack.c.l.s8.bf16 %v301
        %v838 = vunpack.c.l.s8.bf16 %v302
        %v839 = vunpack.c.h.s8.bf16 %v299
        %v840 = vunpack.c.h.s8.bf16 %v300
        %v841 = vunpack.c.h.s8.bf16 %v301
        %v842 = vunpack.c.h.s8.bf16 %v302
        %v843 = vunpack.c.l.s8.bf16 %v303
        %v844 = vunpack.c.l.s8.bf16 %v304
        %v845 = vunpack.c.l.s8.bf16 %v305
        %v846 = vunpack.c.l.s8.bf16 %v306
        %v847 = vunpack.c.h.s8.bf16 %v303
        %v848 = vunpack.c.h.s8.bf16 %v304
        %v849 = vunpack.c.h.s8.bf16 %v305
        %v850 = vunpack.c.h.s8.bf16 %v306
        %v851 = vunpack.c.l.s8.bf16 %v307
        %v852 = vunpack.c.l.s8.bf16 %v308
        %v853 = vunpack.c.l.s8.bf16 %v309
        %v854 = vunpack.c.l.s8.bf16 %v310
        %v855 = vunpack.c.h.s8.bf16 %v307
        %v856 = vunpack.c.h.s8.bf16 %v308
        %v857 = vunpack.c.h.s8.bf16 %v309
        %v858 = vunpack.c.h.s8.bf16 %v310
        %v859 = vunpack.c.l.s8.bf16 %v311
        %v860 = vunpack.c.l.s8.bf16 %v312
        %v861 = vunpack.c.l.s8.bf16 %v313
        %v862 = vunpack.c.l.s8.bf16 %v314
        %v863 = vunpack.c.h.s8.bf16 %v311
        %v864 = vunpack.c.h.s8.bf16 %v312
        %v865 = vunpack.c.h.s8.bf16 %v313
        %v866 = vunpack.c.h.s8.bf16 %v314
        %v867 = vunpack.c.l.s8.bf16 %v315
        %v868 = vunpack.c.l.s8.bf16 %v316
        %v869 = vunpack.c.l.s8.bf16 %v317
        %v870 = vunpack.c.l.s8.bf16 %v318
        %v871 = vunpack.c.h.s8.bf16 %v315
        %v872 = vunpack.c.h.s8.bf16 %v316
        %v873 = vunpack.c.h.s8.bf16 %v317
        %v874 = vunpack.c.h.s8.bf16 %v318
        %v875 = vunpack.c.l.s8.bf16 %v319
        %v876 = vunpack.c.l.s8.bf16 %v320
        %v877 = vunpack.c.l.s8.bf16 %v321
        %v878 = vunpack.c.l.s8.bf16 %v322
        %v879 = vunpack.c.h.s8.bf16 %v319
        %v880 = vunpack.c.h.s8.bf16 %v320
        %v881 = vunpack.c.h.s8.bf16 %v321
        %v882 = vunpack.c.h.s8.bf16 %v322
        %v883 = vunpack.c.l.s8.bf16 %v323
        %v884 = vunpack.c.l.s8.bf16 %v324
        %v885 = vunpack.c.l.s8.bf16 %v325
        %v886 = vunpack.c.l.s8.bf16 %v326
        %v887 = vunpack.c.h.s8.bf16 %v323
        %v888 = vunpack.c.h.s8.bf16 %v324
        %v889 = vunpack.c.h.s8.bf16 %v325
        %v890 = vunpack.c.h.s8.bf16 %v326
        %v891 = vunpack.c.l.s8.bf16 %v327
        %v892 = vunpack.c.l.s8.bf16 %v328
        %v893 = vunpack.c.l.s8.bf16 %v329
        %v894 = vunpack.c.l.s8.bf16 %v330
        %v895 = vunpack.c.h.s8.bf16 %v327
        %v896 = vunpack.c.h.s8.bf16 %v328
        %v897 = vunpack.c.h.s8.bf16 %v329
        %v898 = vunpack.c.h.s8.bf16 %v330
        %v899 = vunpack.c.l.s8.bf16 %v331
        %v900 = vunpack.c.l.s8.bf16 %v332
        %v901 = vunpack.c.l.s8.bf16 %v333
        %v902 = vunpack.c.l.s8.bf16 %v334
        %v903 = vunpack.c.h.s8.bf16 %v331
        %v904 = vunpack.c.h.s8.bf16 %v332
        %v905 = vunpack.c.h.s8.bf16 %v333
        %v906 = vunpack.c.h.s8.bf16 %v334
        %v907 = vunpack.c.l.s8.bf16 %v335
        %v908 = vunpack.c.l.s8.bf16 %v336
        %v909 = vunpack.c.l.s8.bf16 %v337
        %v910 = vunpack.c.l.s8.bf16 %v338
        %v911 = vunpack.c.h.s8.bf16 %v335
        %v912 = vunpack.c.h.s8.bf16 %v336
        %v913 = vunpack.c.h.s8.bf16 %v337
        %v914 = vunpack.c.h.s8.bf16 %v338
        %v915 = vunpack.c.l.s8.bf16 %v339
        %v916 = vunpack.c.l.s8.bf16 %v340
        %v917 = vunpack.c.l.s8.bf16 %v341
        %v918 = vunpack.c.l.s8.bf16 %v342
        %v919 = vunpack.c.h.s8.bf16 %v339
        %v920 = vunpack.c.h.s8.bf16 %v340
        %v921 = vunpack.c.h.s8.bf16 %v341
        %v922 = vunpack.c.h.s8.bf16 %v342
        %v923 = vunpack.c.l.s8.bf16 %v343
        %v924 = vunpack.c.l.s8.bf16 %v344
        %v925 = vunpack.c.l.s8.bf16 %v345
        %v926 = vunpack.c.l.s8.bf16 %v346
        %v927 = vunpack.c.h.s8.bf16 %v343
        %v928 = vunpack.c.h.s8.bf16 %v344
        %v929 = vunpack.c.h.s8.bf16 %v345
        %v930 = vunpack.c.h.s8.bf16 %v346
        %v931 = vunpack.c.l.s8.bf16 %v347
        %v932 = vunpack.c.l.s8.bf16 %v348
        %v933 = vunpack.c.l.s8.bf16 %v349
        %v934 = vunpack.c.l.s8.bf16 %v350
        %v935 = vunpack.c.h.s8.bf16 %v347
        %v936 = vunpack.c.h.s8.bf16 %v348
        %v937 = vunpack.c.h.s8.bf16 %v349
        %v938 = vunpack.c.h.s8.bf16 %v350
        %v939 = vunpack.c.l.s8.bf16 %v351
        %v940 = vunpack.c.l.s8.bf16 %v352
        %v941 = vunpack.c.l.s8.bf16 %v353
        %v942 = vunpack.c.l.s8.bf16 %v354
        %v943 = vunpack.c.h.s8.bf16 %v351
        %v944 = vunpack.c.h.s8.bf16 %v352
        %v945 = vunpack.c.h.s8.bf16 %v353
        %v946 = vunpack.c.h.s8.bf16 %v354
        %v947 = vunpack.c.l.s8.bf16 %v355
        %v948 = vunpack.c.l.s8.bf16 %v356
        %v949 = vunpack.c.l.s8.bf16 %v357
        %v950 = vunpack.c.l.s8.bf16 %v358
        %v951 = vunpack.c.h.s8.bf16 %v355
        %v952 = vunpack.c.h.s8.bf16 %v356
        %v953 = vunpack.c.h.s8.bf16 %v357
        %v954 = vunpack.c.h.s8.bf16 %v358
        %v955 = vunpack.c.l.s8.bf16 %v359
        %v956 = vunpack.c.l.s8.bf16 %v360
        %v957 = vunpack.c.l.s8.bf16 %v361
        %v958 = vunpack.c.l.s8.bf16 %v362
        %v959 = vunpack.c.h.s8.bf16 %v359
        %v960 = vunpack.c.h.s8.bf16 %v360
        %v961 = vunpack.c.h.s8.bf16 %v361
        %v962 = vunpack.c.h.s8.bf16 %v362
        %v963 = vunpack.c.l.s8.bf16 %v363
        %v964 = vunpack.c.l.s8.bf16 %v364
        %v965 = vunpack.c.l.s8.bf16 %v365
        %v966 = vunpack.c.l.s8.bf16 %v366
        %v967 = vunpack.c.h.s8.bf16 %v363
        %v968 = vunpack.c.h.s8.bf16 %v364
        %v969 = vunpack.c.h.s8.bf16 %v365
        %v970 = vunpack.c.h.s8.bf16 %v366
        %v971 = vunpack.c.l.s8.bf16 %v367
        %v972 = vunpack.c.l.s8.bf16 %v368
        %v973 = vunpack.c.l.s8.bf16 %v369
        %v974 = vunpack.c.l.s8.bf16 %v370
        %v975 = vunpack.c.h.s8.bf16 %v367
        %v976 = vunpack.c.h.s8.bf16 %v368
        %v977 = vunpack.c.h.s8.bf16 %v369
        %v978 = vunpack.c.h.s8.bf16 %v370
        %v979 = vunpack.c.l.s8.bf16 %v371
        %v980 = vunpack.c.l.s8.bf16 %v372
        %v981 = vunpack.c.l.s8.bf16 %v373
        %v982 = vunpack.c.l.s8.bf16 %v374
        %v983 = vunpack.c.h.s8.bf16 %v371
        %v984 = vunpack.c.h.s8.bf16 %v372
        %v985 = vunpack.c.h.s8.bf16 %v373
        %v986 = vunpack.c.h.s8.bf16 %v374
        %v987 = vunpack.c.l.s8.bf16 %v375
        %v988 = vunpack.c.l.s8.bf16 %v376
        %v989 = vunpack.c.l.s8.bf16 %v377
        %v990 = vunpack.c.l.s8.bf16 %v378
        %v991 = vunpack.c.h.s8.bf16 %v375
        %v992 = vunpack.c.h.s8.bf16 %v376
        %v993 = vunpack.c.h.s8.bf16 %v377
        %v994 = vunpack.c.h.s8.bf16 %v378
        %v995 = vunpack.c.l.s8.bf16 %v379
        %v996 = vunpack.c.l.s8.bf16 %v380
        %v997 = vunpack.c.l.s8.bf16 %v381
        %v998 = vunpack.c.l.s8.bf16 %v382
        %v999 = vunpack.c.h.s8.bf16 %v379
        %v1000 = vunpack.c.h.s8.bf16 %v380
        %v1001 = vunpack.c.h.s8.bf16 %v381
        %v1002 = vunpack.c.h.s8.bf16 %v382
        %v1003 = vunpack.c.l.s8.bf16 %v383
        %v1004 = vunpack.c.l.s8.bf16 %v384
        %v1005 = vunpack.c.l.s8.bf16 %v385
        %v1006 = vunpack.c.l.s8.bf16 %v386
        %v1007 = vunpack.c.h.s8.bf16 %v383
        %v1008 = vunpack.c.h.s8.bf16 %v384
        %v1009 = vunpack.c.h.s8.bf16 %v385
        %v1010 = vunpack.c.h.s8.bf16 %v386
        %v1011 = vunpack.c.l.s8.bf16 %v387
        %v1012 = vunpack.c.l.s8.bf16 %v388
        %v1013 = vunpack.c.l.s8.bf16 %v389
        %v1014 = vunpack.c.l.s8.bf16 %v390
        %v1015 = vunpack.c.h.s8.bf16 %v387
        %v1016 = vunpack.c.h.s8.bf16 %v388
        %v1017 = vunpack.c.h.s8.bf16 %v389
        %v1018 = vunpack.c.h.s8.bf16 %v390
        %v1019 = vunpack.c.l.s8.bf16 %v391
        %v1020 = vunpack.c.l.s8.bf16 %v392
        %v1021 = vunpack.c.l.s8.bf16 %v393
        %v1022 = vunpack.c.l.s8.bf16 %v394
        %v1023 = vunpack.c.h.s8.bf16 %v391
        %v1024 = vunpack.c.h.s8.bf16 %v392
        %v1025 = vunpack.c.h.s8.bf16 %v393
        %v1026 = vunpack.c.h.s8.bf16 %v394
        %v1027 = vunpack.c.l.s8.bf16 %v395
        %v1028 = vunpack.c.l.s8.bf16 %v396
        %v1029 = vunpack.c.l.s8.bf16 %v397
        %v1030 = vunpack.c.l.s8.bf16 %v398
        %v1031 = vunpack.c.h.s8.bf16 %v395
        %v1032 = vunpack.c.h.s8.bf16 %v396
        %v1033 = vunpack.c.h.s8.bf16 %v397
        %v1034 = vunpack.c.h.s8.bf16 %v398
        %v1035 = vunpack.c.l.s8.bf16 %v399
        %v1036 = vunpack.c.l.s8.bf16 %v400
        %v1037 = vunpack.c.l.s8.bf16 %v401
        %v1038 = vunpack.c.l.s8.bf16 %v402
        %v1039 = vunpack.c.h.s8.bf16 %v399
        %v1040 = vunpack.c.h.s8.bf16 %v400
        %v1041 = vunpack.c.h.s8.bf16 %v401
        %v1042 = vunpack.c.h.s8.bf16 %v402
        %v1043 = vunpack.c.l.s8.bf16 %v403
        %v1044 = vunpack.c.l.s8.bf16 %v404
        %v1045 = vunpack.c.l.s8.bf16 %v405
        %v1046 = vunpack.c.l.s8.bf16 %v406
        %v1047 = vunpack.c.h.s8.bf16 %v403
        %v1048 = vunpack.c.h.s8.bf16 %v404
        %v1049 = vunpack.c.h.s8.bf16 %v405
        %v1050 = vunpack.c.h.s8.bf16 %v406
        %v1051 = vunpack.c.l.s8.bf16 %v407
        %v1052 = vunpack.c.l.s8.bf16 %v408
        %v1053 = vunpack.c.l.s8.bf16 %v409
        %v1054 = vunpack.c.l.s8.bf16 %v410
        %v1055 = vunpack.c.h.s8.bf16 %v407
        %v1056 = vunpack.c.h.s8.bf16 %v408
        %v1057 = vunpack.c.h.s8.bf16 %v409
        %v1058 = vunpack.c.h.s8.bf16 %v410
        %v1059 = vunpack.c.l.s8.bf16 %v411
        %v1060 = vunpack.c.l.s8.bf16 %v412
        %v1061 = vunpack.c.l.s8.bf16 %v413
        %v1062 = vunpack.c.l.s8.bf16 %v414
        %v1063 = vunpack.c.h.s8.bf16 %v411
        %v1064 = vunpack.c.h.s8.bf16 %v412
        %v1065 = vunpack.c.h.s8.bf16 %v413
        %v1066 = vunpack.c.h.s8.bf16 %v414
        %v1067 = vunpack.c.l.s8.bf16 %v415
        %v1068 = vunpack.c.l.s8.bf16 %v416
        %v1069 = vunpack.c.l.s8.bf16 %v417
        %v1070 = vunpack.c.l.s8.bf16 %v418
        %v1071 = vunpack.c.h.s8.bf16 %v415
        %v1072 = vunpack.c.h.s8.bf16 %v416
        %v1073 = vunpack.c.h.s8.bf16 %v417
        %v1074 = vunpack.c.h.s8.bf16 %v418
        %v1075 = vunpack.c.l.s8.bf16 %v419
        %v1076 = vunpack.c.l.s8.bf16 %v420
        %v1077 = vunpack.c.l.s8.bf16 %v421
        %v1078 = vunpack.c.l.s8.bf16 %v422
        %v1079 = vunpack.c.h.s8.bf16 %v419
        %v1080 = vunpack.c.h.s8.bf16 %v420
        %v1081 = vunpack.c.h.s8.bf16 %v421
        %v1082 = vunpack.c.h.s8.bf16 %v422
        %v1083 = vunpack.c.l.s8.bf16 %v423
        %v1084 = vunpack.c.l.s8.bf16 %v424
        %v1085 = vunpack.c.l.s8.bf16 %v425
        %v1086 = vunpack.c.l.s8.bf16 %v426
        %v1087 = vunpack.c.h.s8.bf16 %v423
        %v1088 = vunpack.c.h.s8.bf16 %v424
        %v1089 = vunpack.c.h.s8.bf16 %v425
        %v1090 = vunpack.c.h.s8.bf16 %v426
        %v1091 = vunpack.c.l.s8.bf16 %v427
        %v1092 = vunpack.c.l.s8.bf16 %v428
        %v1093 = vunpack.c.l.s8.bf16 %v429
        %v1094 = vunpack.c.l.s8.bf16 %v430
        %v1095 = vunpack.c.h.s8.bf16 %v427
        %v1096 = vunpack.c.h.s8.bf16 %v428
        %v1097 = vunpack.c.h.s8.bf16 %v429
        %v1098 = vunpack.c.h.s8.bf16 %v430
        %v1099 = vunpack.c.l.s8.bf16 %v431
        %v1100 = vunpack.c.l.s8.bf16 %v432
        %v1101 = vunpack.c.l.s8.bf16 %v433
        %v1102 = vunpack.c.l.s8.bf16 %v434
        %v1103 = vunpack.c.h.s8.bf16 %v431
        %v1104 = vunpack.c.h.s8.bf16 %v432
        %v1105 = vunpack.c.h.s8.bf16 %v433
        %v1106 = vunpack.c.h.s8.bf16 %v434
        %v1107 = vunpack.c.l.s8.bf16 %v435
        %v1108 = vunpack.c.l.s8.bf16 %v436
        %v1109 = vunpack.c.l.s8.bf16 %v437
        %v1110 = vunpack.c.l.s8.bf16 %v438
        %v1111 = vunpack.c.h.s8.bf16 %v435
        %v1112 = vunpack.c.h.s8.bf16 %v436
        %v1113 = vunpack.c.h.s8.bf16 %v437
        %v1114 = vunpack.c.h.s8.bf16 %v438
        %v1115 = vunpack.c.l.s8.bf16 %v439
        %v1116 = vunpack.c.l.s8.bf16 %v440
        %v1117 = vunpack.c.l.s8.bf16 %v441
        %v1118 = vunpack.c.l.s8.bf16 %v442
        %v1119 = vunpack.c.h.s8.bf16 %v439
        %v1120 = vunpack.c.h.s8.bf16 %v440
        %v1121 = vunpack.c.h.s8.bf16 %v441
        %v1122 = vunpack.c.h.s8.bf16 %v442
        %v1123 = vunpack.c.l.s8.bf16 %v443
        %v1124 = vunpack.c.l.s8.bf16 %v444
        %v1125 = vunpack.c.l.s8.bf16 %v445
        %v1126 = vunpack.c.l.s8.bf16 %v446
        %v1127 = vunpack.c.h.s8.bf16 %v443
        %v1128 = vunpack.c.h.s8.bf16 %v444
        %v1129 = vunpack.c.h.s8.bf16 %v445
        %v1130 = vunpack.c.h.s8.bf16 %v446
        %v1131 = vunpack.c.l.s8.bf16 %v447
        %v1132 = vunpack.c.l.s8.bf16 %v448
        %v1133 = vunpack.c.l.s8.bf16 %v449
        %v1134 = vunpack.c.l.s8.bf16 %v450
        %v1135 = vunpack.c.h.s8.bf16 %v447
        %v1136 = vunpack.c.h.s8.bf16 %v448
        %v1137 = vunpack.c.h.s8.bf16 %v449
        %v1138 = vunpack.c.h.s8.bf16 %v450
        %v1139 = vunpack.c.l.s8.bf16 %v451
        %v1140 = vunpack.c.l.s8.bf16 %v452
        %v1141 = vunpack.c.l.s8.bf16 %v453
        %v1142 = vunpack.c.l.s8.bf16 %v454
        %v1143 = vunpack.c.h.s8.bf16 %v451
        %v1144 = vunpack.c.h.s8.bf16 %v452
        %v1145 = vunpack.c.h.s8.bf16 %v453
        %v1146 = vunpack.c.h.s8.bf16 %v454
        %v1147 = vunpack.c.l.s8.bf16 %v455
        %v1148 = vunpack.c.l.s8.bf16 %v456
        %v1149 = vunpack.c.l.s8.bf16 %v457
        %v1150 = vunpack.c.l.s8.bf16 %v458
        %v1151 = vunpack.c.h.s8.bf16 %v455
        %v1152 = vunpack.c.h.s8.bf16 %v456
        %v1153 = vunpack.c.h.s8.bf16 %v457
        %v1154 = vunpack.c.h.s8.bf16 %v458
        %v1155 = vunpack.c.l.s8.bf16 %v459
        %v1156 = vunpack.c.l.s8.bf16 %v460
        %v1157 = vunpack.c.l.s8.bf16 %v461
        %v1158 = vunpack.c.l.s8.bf16 %v462
        %v1159 = vunpack.c.h.s8.bf16 %v459
        %v1160 = vunpack.c.h.s8.bf16 %v460
        %v1161 = vunpack.c.h.s8.bf16 %v461
        %v1162 = vunpack.c.h.s8.bf16 %v462
        %v1163 = vunpack.c.l.s8.bf16 %v463
        %v1164 = vunpack.c.l.s8.bf16 %v464
        %v1165 = vunpack.c.l.s8.bf16 %v465
        %v1166 = vunpack.c.l.s8.bf16 %v466
        %v1167 = vunpack.c.h.s8.bf16 %v463
        %v1168 = vunpack.c.h.s8.bf16 %v464
        %v1169 = vunpack.c.h.s8.bf16 %v465
        %v1170 = vunpack.c.h.s8.bf16 %v466
        %v1171 = vunpack.c.l.s8.bf16 %v467
        %v1172 = vunpack.c.l.s8.bf16 %v468
        %v1173 = vunpack.c.l.s8.bf16 %v469
        %v1174 = vunpack.c.l.s8.bf16 %v470
        %v1175 = vunpack.c.h.s8.bf16 %v467
        %v1176 = vunpack.c.h.s8.bf16 %v468
        %v1177 = vunpack.c.h.s8.bf16 %v469
        %v1178 = vunpack.c.h.s8.bf16 %v470
        %v1179 = vunpack.c.l.s8.bf16 %v471
        %v1180 = vunpack.c.l.s8.bf16 %v472
        %v1181 = vunpack.c.l.s8.bf16 %v473
        %v1182 = vunpack.c.l.s8.bf16 %v474
        %v1183 = vunpack.c.h.s8.bf16 %v471
        %v1184 = vunpack.c.h.s8.bf16 %v472
        %v1185 = vunpack.c.h.s8.bf16 %v473
        %v1186 = vunpack.c.h.s8.bf16 %v474
        %v1187 = vunpack.c.l.s8.bf16 %v475
        %v1188 = vunpack.c.l.s8.bf16 %v476
        %v1189 = vunpack.c.l.s8.bf16 %v477
        %v1190 = vunpack.c.l.s8.bf16 %v478
        %v1191 = vunpack.c.h.s8.bf16 %v475
        %v1192 = vunpack.c.h.s8.bf16 %v476
        %v1193 = vunpack.c.h.s8.bf16 %v477
        %v1194 = vunpack.c.h.s8.bf16 %v478
        %v1195 = vunpack.c.l.s8.bf16 %v479
        %v1196 = vunpack.c.l.s8.bf16 %v480
        %v1197 = vunpack.c.l.s8.bf16 %v481
        %v1198 = vunpack.c.l.s8.bf16 %v482
        %v1199 = vunpack.c.h.s8.bf16 %v479
        %v1200 = vunpack.c.h.s8.bf16 %v480
        %v1201 = vunpack.c.h.s8.bf16 %v481
        %v1202 = vunpack.c.h.s8.bf16 %v482
        %v1203 = vunpack.c.l.s8.bf16 %v483
        %v1204 = vunpack.c.l.s8.bf16 %v484
        %v1205 = vunpack.c.l.s8.bf16 %v485
        %v1206 = vunpack.c.l.s8.bf16 %v486
        %v1207 = vunpack.c.h.s8.bf16 %v483
        %v1208 = vunpack.c.h.s8.bf16 %v484
        %v1209 = vunpack.c.h.s8.bf16 %v485
        %v1210 = vunpack.c.h.s8.bf16 %v486
        %v1211 = vunpack.c.l.s8.bf16 %v487
        %v1212 = vunpack.c.l.s8.bf16 %v488
        %v1213 = vunpack.c.l.s8.bf16 %v489
        %v1214 = vunpack.c.l.s8.bf16 %v490
        %v1215 = vunpack.c.h.s8.bf16 %v487
        %v1216 = vunpack.c.h.s8.bf16 %v488
        %v1217 = vunpack.c.h.s8.bf16 %v489
        %v1218 = vunpack.c.h.s8.bf16 %v490
        %v1219 = vunpack.c.l.s8.bf16 %v491
        %v1220 = vunpack.c.l.s8.bf16 %v492
        %v1221 = vunpack.c.l.s8.bf16 %v493
        %v1222 = vunpack.c.l.s8.bf16 %v494
        %v1223 = vunpack.c.h.s8.bf16 %v491
        %v1224 = vunpack.c.h.s8.bf16 %v492
        %v1225 = vunpack.c.h.s8.bf16 %v493
        %v1226 = vunpack.c.h.s8.bf16 %v494
        %v1227 = vunpack.c.l.s8.bf16 %v495
        %v1228 = vunpack.c.l.s8.bf16 %v496
        %v1229 = vunpack.c.l.s8.bf16 %v497
        %v1230 = vunpack.c.l.s8.bf16 %v498
        %v1231 = vunpack.c.h.s8.bf16 %v495
        %v1232 = vunpack.c.h.s8.bf16 %v496
        %v1233 = vunpack.c.h.s8.bf16 %v497
        %v1234 = vunpack.c.h.s8.bf16 %v498
        %v1235 = vunpack.c.l.s8.bf16 %v499
        %v1236 = vunpack.c.l.s8.bf16 %v500
        %v1237 = vunpack.c.l.s8.bf16 %v501
        %v1238 = vunpack.c.l.s8.bf16 %v502
        %v1239 = vunpack.c.h.s8.bf16 %v499
        %v1240 = vunpack.c.h.s8.bf16 %v500
        %v1241 = vunpack.c.h.s8.bf16 %v501
        %v1242 = vunpack.c.h.s8.bf16 %v502
        %v1243 = vunpack.c.l.s8.bf16 %v503
        %v1244 = vunpack.c.l.s8.bf16 %v504
        %v1245 = vunpack.c.l.s8.bf16 %v505
        %v1246 = vunpack.c.l.s8.bf16 %v506
        %v1247 = vunpack.c.h.s8.bf16 %v503
        %v1248 = vunpack.c.h.s8.bf16 %v504
        %v1249 = vunpack.c.h.s8.bf16 %v505
        %v1250 = vunpack.c.h.s8.bf16 %v506
        %v1251 = vunpack.c.l.s8.bf16 %v507
        %v1252 = vunpack.c.l.s8.bf16 %v508
        %v1253 = vunpack.c.l.s8.bf16 %v509
        %v1254 = vunpack.c.l.s8.bf16 %v510
        %v1255 = vunpack.c.h.s8.bf16 %v507
        %v1256 = vunpack.c.h.s8.bf16 %v508
        %v1257 = vunpack.c.h.s8.bf16 %v509
        %v1258 = vunpack.c.h.s8.bf16 %v510
        %v1259 = vunpack.c.l.s8.bf16 %v511
        %v1260 = vunpack.c.l.s8.bf16 %v512
        %v1261 = vunpack.c.l.s8.bf16 %v513
        %v1262 = vunpack.c.l.s8.bf16 %v514
        %v1263 = vunpack.c.h.s8.bf16 %v511
        %v1264 = vunpack.c.h.s8.bf16 %v512
        %v1265 = vunpack.c.h.s8.bf16 %v513
        %v1266 = vunpack.c.h.s8.bf16 %v514
        %v1267 = vunpack.c.l.s8.bf16 %v515
        %v1268 = vunpack.c.l.s8.bf16 %v516
        %v1269 = vunpack.c.l.s8.bf16 %v517
        %v1270 = vunpack.c.l.s8.bf16 %v518
        %v1271 = vunpack.c.h.s8.bf16 %v515
        %v1272 = vunpack.c.h.s8.bf16 %v516
        %v1273 = vunpack.c.h.s8.bf16 %v517
        %v1274 = vunpack.c.h.s8.bf16 %v518
        %v1275 = vunpack.c.l.s8.bf16 %v519
        %v1276 = vunpack.c.l.s8.bf16 %v520
        %v1277 = vunpack.c.l.s8.bf16 %v521
        %v1278 = vunpack.c.l.s8.bf16 %v522
        %v1279 = vunpack.c.h.s8.bf16 %v519
        %v1280 = vunpack.c.h.s8.bf16 %v520
        %v1281 = vunpack.c.h.s8.bf16 %v521
        %v1282 = vunpack.c.h.s8.bf16 %v522
        %v1283 = vunpack.c.l.s8.bf16 %v523
        %v1284 = vunpack.c.l.s8.bf16 %v524
        %v1285 = vunpack.c.l.s8.bf16 %v525
        %v1286 = vunpack.c.l.s8.bf16 %v526
        %v1287 = vunpack.c.h.s8.bf16 %v523
        %v1288 = vunpack.c.h.s8.bf16 %v524
        %v1289 = vunpack.c.h.s8.bf16 %v525
        %v1290 = vunpack.c.h.s8.bf16 %v526
        %v1291 = vunpack.c.l.s8.bf16 %v527
        %v1292 = vunpack.c.l.s8.bf16 %v528
        %v1293 = vunpack.c.l.s8.bf16 %v529
        %v1294 = vunpack.c.l.s8.bf16 %v530
        %v1295 = vunpack.c.h.s8.bf16 %v527
        %v1296 = vunpack.c.h.s8.bf16 %v528
        %v1297 = vunpack.c.h.s8.bf16 %v529
        %v1298 = vunpack.c.h.s8.bf16 %v530
        %v1299 = vunpack.c.l.s8.bf16 %v531
        %v1300 = vunpack.c.l.s8.bf16 %v532
        %v1301 = vunpack.c.l.s8.bf16 %v533
        %v1302 = vunpack.c.l.s8.bf16 %v534
        %v1303 = vunpack.c.h.s8.bf16 %v531
        %v1304 = vunpack.c.h.s8.bf16 %v532
        %v1305 = vunpack.c.h.s8.bf16 %v533
        %v1306 = vunpack.c.h.s8.bf16 %v534
        %v1307 = vunpack.c.l.s8.bf16 %v535
        %v1308 = vunpack.c.l.s8.bf16 %v536
        %v1309 = vunpack.c.l.s8.bf16 %v537
        %v1310 = vunpack.c.l.s8.bf16 %v538
        %v1311 = vunpack.c.h.s8.bf16 %v535
        %v1312 = vunpack.c.h.s8.bf16 %v536
        %v1313 = vunpack.c.h.s8.bf16 %v537
        %v1314 = vunpack.c.h.s8.bf16 %v538
        %v1315 = vunpack.c.l.s8.bf16 %v539
        %v1316 = vunpack.c.l.s8.bf16 %v540
        %v1317 = vunpack.c.l.s8.bf16 %v541
        %v1318 = vunpack.c.l.s8.bf16 %v542
        %v1319 = vunpack.c.h.s8.bf16 %v539
        %v1320 = vunpack.c.h.s8.bf16 %v540
        %v1321 = vunpack.c.h.s8.bf16 %v541
        %v1322 = vunpack.c.h.s8.bf16 %v542
        %v1323 = vunpack.c.l.s8.bf16 %v543
        %v1324 = vunpack.c.l.s8.bf16 %v544
        %v1325 = vunpack.c.l.s8.bf16 %v545
        %v1326 = vunpack.c.l.s8.bf16 %v546
        %v1327 = vunpack.c.h.s8.bf16 %v543
        %v1328 = vunpack.c.h.s8.bf16 %v544
        %v1329 = vunpack.c.h.s8.bf16 %v545
        %v1330 = vunpack.c.h.s8.bf16 %v546
        %v1331 = vunpack.c.l.s8.bf16 %v547
        %v1332 = vunpack.c.l.s8.bf16 %v548
        %v1333 = vunpack.c.l.s8.bf16 %v549
        %v1334 = vunpack.c.l.s8.bf16 %v550
        %v1335 = vunpack.c.h.s8.bf16 %v547
        %v1336 = vunpack.c.h.s8.bf16 %v548
        %v1337 = vunpack.c.h.s8.bf16 %v549
        %v1338 = vunpack.c.h.s8.bf16 %v550
        %v1339 = vunpack.c.l.s8.bf16 %v551
        %v1340 = vunpack.c.l.s8.bf16 %v552
        %v1341 = vunpack.c.l.s8.bf16 %v553
        %v1342 = vunpack.c.l.s8.bf16 %v554
        %v1343 = vunpack.c.h.s8.bf16 %v551
        %v1344 = vunpack.c.h.s8.bf16 %v552
        %v1345 = vunpack.c.h.s8.bf16 %v553
        %v1346 = vunpack.c.h.s8.bf16 %v554
        %v1347 = vunpack.c.l.s8.bf16 %v555
        %v1348 = vunpack.c.l.s8.bf16 %v556
        %v1349 = vunpack.c.l.s8.bf16 %v557
        %v1350 = vunpack.c.l.s8.bf16 %v558
        %v1351 = vunpack.c.h.s8.bf16 %v555
        %v1352 = vunpack.c.h.s8.bf16 %v556
        %v1353 = vunpack.c.h.s8.bf16 %v557
        %v1354 = vunpack.c.h.s8.bf16 %v558
        %v1355 = vunpack.c.l.s8.bf16 %v559
        %v1356 = vunpack.c.l.s8.bf16 %v560
        %v1357 = vunpack.c.l.s8.bf16 %v561
        %v1358 = vunpack.c.l.s8.bf16 %v562
        %v1359 = vunpack.c.h.s8.bf16 %v559
        %v1360 = vunpack.c.h.s8.bf16 %v560
        %v1361 = vunpack.c.h.s8.bf16 %v561
        %v1362 = vunpack.c.h.s8.bf16 %v562
        %v1363 = vunpack.c.l.s8.bf16 %v563
        %v1364 = vunpack.c.l.s8.bf16 %v564
        %v1365 = vunpack.c.l.s8.bf16 %v565
        %v1366 = vunpack.c.l.s8.bf16 %v566
        %v1367 = vunpack.c.h.s8.bf16 %v563
        %v1368 = vunpack.c.h.s8.bf16 %v564
        %v1369 = vunpack.c.h.s8.bf16 %v565
        %v1370 = vunpack.c.h.s8.bf16 %v566
        %v1371 = vunpack.c.l.s8.bf16 %v567
        %v1372 = vunpack.c.l.s8.bf16 %v568
        %v1373 = vunpack.c.l.s8.bf16 %v569
        %v1374 = vunpack.c.l.s8.bf16 %v570
        %v1375 = vunpack.c.h.s8.bf16 %v567
        %v1376 = vunpack.c.h.s8.bf16 %v568
        %v1377 = vunpack.c.h.s8.bf16 %v569
        %v1378 = vunpack.c.h.s8.bf16 %v570
        %v1379 = vunpack.c.l.s8.bf16 %v571
        %v1380 = vunpack.c.l.s8.bf16 %v572
        %v1381 = vunpack.c.l.s8.bf16 %v573
        %v1382 = vunpack.c.l.s8.bf16 %v574
        %v1383 = vunpack.c.h.s8.bf16 %v571
        %v1384 = vunpack.c.h.s8.bf16 %v572
        %v1385 = vunpack.c.h.s8.bf16 %v573
        %v1386 = vunpack.c.h.s8.bf16 %v574
        %v1387 = vunpack.c.l.s8.bf16 %v575
        %v1388 = vunpack.c.l.s8.bf16 %v576
        %v1389 = vunpack.c.l.s8.bf16 %v577
        %v1390 = vunpack.c.l.s8.bf16 %v578
        %v1391 = vunpack.c.h.s8.bf16 %v575
        %v1392 = vunpack.c.h.s8.bf16 %v576
        %v1393 = vunpack.c.h.s8.bf16 %v577
        %v1394 = vunpack.c.h.s8.bf16 %v578
        %v1395 = vunpack.c.l.s8.bf16 %v579
        %v1396 = vunpack.c.l.s8.bf16 %v580
        %v1397 = vunpack.c.l.s8.bf16 %v581
        %v1398 = vunpack.c.l.s8.bf16 %v582
        %v1399 = vunpack.c.h.s8.bf16 %v579
        %v1400 = vunpack.c.h.s8.bf16 %v580
        %v1401 = vunpack.c.h.s8.bf16 %v581
        %v1402 = vunpack.c.h.s8.bf16 %v582
        %v1403 = vunpack.c.l.s8.bf16 %v583
        %v1404 = vunpack.c.l.s8.bf16 %v584
        %v1405 = vunpack.c.l.s8.bf16 %v585
        %v1406 = vunpack.c.l.s8.bf16 %v586
        %v1407 = vunpack.c.h.s8.bf16 %v583
        %v1408 = vunpack.c.h.s8.bf16 %v584
        %v1409 = vunpack.c.h.s8.bf16 %v585
        %v1410 = vunpack.c.h.s8.bf16 %v586
        %v1411 = vunpack.c.l.s8.bf16 %v587
        %v1412 = vunpack.c.l.s8.bf16 %v588
        %v1413 = vunpack.c.l.s8.bf16 %v589
        %v1414 = vunpack.c.l.s8.bf16 %v590
        %v1415 = vunpack.c.h.s8.bf16 %v587
        %v1416 = vunpack.c.h.s8.bf16 %v588
        %v1417 = vunpack.c.h.s8.bf16 %v589
        %v1418 = vunpack.c.h.s8.bf16 %v590
        %v1419 = vunpack.c.l.s8.bf16 %v591
        %v1420 = vunpack.c.l.s8.bf16 %v592
        %v1421 = vunpack.c.l.s8.bf16 %v593
        %v1422 = vunpack.c.l.s8.bf16 %v594
        %v1423 = vunpack.c.h.s8.bf16 %v591
        %v1424 = vunpack.c.h.s8.bf16 %v592
        %v1425 = vunpack.c.h.s8.bf16 %v593
        %v1426 = vunpack.c.h.s8.bf16 %v594
        %v1427 = vunpack.c.l.s8.bf16 %v595
        %v1428 = vunpack.c.l.s8.bf16 %v596
        %v1429 = vunpack.c.l.s8.bf16 %v597
        %v1430 = vunpack.c.l.s8.bf16 %v598
        %v1431 = vunpack.c.h.s8.bf16 %v595
        %v1432 = vunpack.c.h.s8.bf16 %v596
        %v1433 = vunpack.c.h.s8.bf16 %v597
        %v1434 = vunpack.c.h.s8.bf16 %v598
        %v1435 = vunpack.c.l.s8.bf16 %v599
        %v1436 = vunpack.c.l.s8.bf16 %v600
        %v1437 = vunpack.c.l.s8.bf16 %v601
        %v1438 = vunpack.c.l.s8.bf16 %v602
        %v1439 = vunpack.c.h.s8.bf16 %v599
        %v1440 = vunpack.c.h.s8.bf16 %v600
        %v1441 = vunpack.c.h.s8.bf16 %v601
        %v1442 = vunpack.c.h.s8.bf16 %v602
        %v1443 = vunpack.c.l.s8.bf16 %v603
        %v1444 = vunpack.c.l.s8.bf16 %v604
        %v1445 = vunpack.c.l.s8.bf16 %v605
        %v1446 = vunpack.c.l.s8.bf16 %v606
        %v1447 = vunpack.c.h.s8.bf16 %v603
        %v1448 = vunpack.c.h.s8.bf16 %v604
        %v1449 = vunpack.c.h.s8.bf16 %v605
        %v1450 = vunpack.c.h.s8.bf16 %v606
        %v1451 = vunpack.c.l.s8.bf16 %v607
        %v1452 = vunpack.c.l.s8.bf16 %v608
        %v1453 = vunpack.c.l.s8.bf16 %v609
        %v1454 = vunpack.c.l.s8.bf16 %v610
        %v1455 = vunpack.c.h.s8.bf16 %v607
        %v1456 = vunpack.c.h.s8.bf16 %v608
        %v1457 = vunpack.c.h.s8.bf16 %v609
        %v1458 = vunpack.c.h.s8.bf16 %v610
        %v1459 = vunpack.c.l.s8.bf16 %v611
        %v1460 = vunpack.c.l.s8.bf16 %v612
        %v1461 = vunpack.c.l.s8.bf16 %v613
        %v1462 = vunpack.c.l.s8.bf16 %v614
        %v1463 = vunpack.c.h.s8.bf16 %v611
        %v1464 = vunpack.c.h.s8.bf16 %v612
        %v1465 = vunpack.c.h.s8.bf16 %v613
        %v1466 = vunpack.c.h.s8.bf16 %v614
        %v1467 = vunpack.c.l.s8.bf16 %v615
        %v1468 = vunpack.c.l.s8.bf16 %v616
        %v1469 = vunpack.c.l.s8.bf16 %v617
        %v1470 = vunpack.c.l.s8.bf16 %v618
        %v1471 = vunpack.c.h.s8.bf16 %v615
        %v1472 = vunpack.c.h.s8.bf16 %v616
        %v1473 = vunpack.c.h.s8.bf16 %v617
        %v1474 = vunpack.c.h.s8.bf16 %v618
        %v1475 = vunpack.c.l.s8.bf16 %v619
        %v1476 = vunpack.c.l.s8.bf16 %v620
        %v1477 = vunpack.c.l.s8.bf16 %v621
        %v1478 = vunpack.c.l.s8.bf16 %v622
        %v1479 = vunpack.c.h.s8.bf16 %v619
        %v1480 = vunpack.c.h.s8.bf16 %v620
        %v1481 = vunpack.c.h.s8.bf16 %v621
        %v1482 = vunpack.c.h.s8.bf16 %v622
        %v1483 = vunpack.c.l.s8.bf16 %v623
        %v1484 = vunpack.c.l.s8.bf16 %v624
        %v1485 = vunpack.c.l.s8.bf16 %v625
        %v1486 = vunpack.c.l.s8.bf16 %v626
        %v1487 = vunpack.c.h.s8.bf16 %v623
        %v1488 = vunpack.c.h.s8.bf16 %v624
        %v1489 = vunpack.c.h.s8.bf16 %v625
        %v1490 = vunpack.c.h.s8.bf16 %v626
        %v1491 = vunpack.c.l.s8.bf16 %v627
        %v1492 = vunpack.c.l.s8.bf16 %v628
        %v1493 = vunpack.c.l.s8.bf16 %v629
        %v1494 = vunpack.c.l.s8.bf16 %v630
        %v1495 = vunpack.c.h.s8.bf16 %v627
        %v1496 = vunpack.c.h.s8.bf16 %v628
        %v1497 = vunpack.c.h.s8.bf16 %v629
        %v1498 = vunpack.c.h.s8.bf16 %v630
        %v1499 = vunpack.c.l.s8.bf16 %v631
        %v1500 = vunpack.c.l.s8.bf16 %v632
        %v1501 = vunpack.c.l.s8.bf16 %v633
        %v1502 = vunpack.c.l.s8.bf16 %v634
        %v1503 = vunpack.c.h.s8.bf16 %v631
        %v1504 = vunpack.c.h.s8.bf16 %v632
        %v1505 = vunpack.c.h.s8.bf16 %v633
        %v1506 = vunpack.c.h.s8.bf16 %v634
        %v1507 = vunpack.c.l.s8.bf16 %v635
        %v1508 = vunpack.c.l.s8.bf16 %v636
        %v1509 = vunpack.c.l.s8.bf16 %v637
        %v1510 = vunpack.c.l.s8.bf16 %v638
        %v1511 = vunpack.c.h.s8.bf16 %v635
        %v1512 = vunpack.c.h.s8.bf16 %v636
        %v1513 = vunpack.c.h.s8.bf16 %v637
        %v1514 = vunpack.c.h.s8.bf16 %v638
        %v1515 = vunpack.c.l.s8.bf16 %v639
        %v1516 = vunpack.c.l.s8.bf16 %v640
        %v1517 = vunpack.c.l.s8.bf16 %v641
        %v1518 = vunpack.c.l.s8.bf16 %v642
        %v1519 = vunpack.c.h.s8.bf16 %v639
        %v1520 = vunpack.c.h.s8.bf16 %v640
        %v1521 = vunpack.c.h.s8.bf16 %v641
        %v1522 = vunpack.c.h.s8.bf16 %v642
        %v1523 = vunpack.c.l.s8.bf16 %v643
        %v1524 = vunpack.c.l.s8.bf16 %v644
        %v1525 = vunpack.c.l.s8.bf16 %v645
        %v1526 = vunpack.c.l.s8.bf16 %v646
        %v1527 = vunpack.c.h.s8.bf16 %v643
        %v1528 = vunpack.c.h.s8.bf16 %v644
        %v1529 = vunpack.c.h.s8.bf16 %v645
        %v1530 = vunpack.c.h.s8.bf16 %v646
        %v1531 = vunpack.c.l.s8.bf16 %v647
        %v1532 = vunpack.c.l.s8.bf16 %v648
        %v1533 = vunpack.c.l.s8.bf16 %v649
        %v1534 = vunpack.c.l.s8.bf16 %v650
        %v1535 = vunpack.c.h.s8.bf16 %v647
        %v1536 = vunpack.c.h.s8.bf16 %v648
        %v1537 = vunpack.c.h.s8.bf16 %v649
        %v1538 = vunpack.c.h.s8.bf16 %v650
        %v1539 = vunpack.c.l.s8.bf16 %v651
        %v1540 = vunpack.c.l.s8.bf16 %v652
        %v1541 = vunpack.c.l.s8.bf16 %v653
        %v1542 = vunpack.c.l.s8.bf16 %v654
        %v1543 = vunpack.c.h.s8.bf16 %v651
        %v1544 = vunpack.c.h.s8.bf16 %v652
        %v1545 = vunpack.c.h.s8.bf16 %v653
        %v1546 = vunpack.c.h.s8.bf16 %v654
        %v1547 = vunpack.c.l.s8.bf16 %v655
        %v1548 = vunpack.c.l.s8.bf16 %v656
        %v1549 = vunpack.c.l.s8.bf16 %v657
        %v1550 = vunpack.c.l.s8.bf16 %v658
        %v1551 = vunpack.c.h.s8.bf16 %v655
        %v1552 = vunpack.c.h.s8.bf16 %v656
        %v1553 = vunpack.c.h.s8.bf16 %v657
        %v1554 = vunpack.c.h.s8.bf16 %v658
        %v1555 = vunpack.c.l.s8.bf16 %v659
        %v1556 = vunpack.c.l.s8.bf16 %v660
        %v1557 = vunpack.c.l.s8.bf16 %v661
        %v1558 = vunpack.c.l.s8.bf16 %v662
        %v1559 = vunpack.c.h.s8.bf16 %v659
        %v1560 = vunpack.c.h.s8.bf16 %v660
        %v1561 = vunpack.c.h.s8.bf16 %v661
        %v1562 = vunpack.c.h.s8.bf16 %v662
        %v1563 = vunpack.c.l.s8.bf16 %v663
        %v1564 = vunpack.c.l.s8.bf16 %v664
        %v1565 = vunpack.c.l.s8.bf16 %v665
        %v1566 = vunpack.c.l.s8.bf16 %v666
        %v1567 = vunpack.c.h.s8.bf16 %v663
        %v1568 = vunpack.c.h.s8.bf16 %v664
        %v1569 = vunpack.c.h.s8.bf16 %v665
        %v1570 = vunpack.c.h.s8.bf16 %v666
        %v1571 = vunpack.c.l.s8.bf16 %v667
        %v1572 = vunpack.c.l.s8.bf16 %v668
        %v1573 = vunpack.c.l.s8.bf16 %v669
        %v1574 = vunpack.c.l.s8.bf16 %v670
        %v1575 = vunpack.c.h.s8.bf16 %v667
        %v1576 = vunpack.c.h.s8.bf16 %v668
        %v1577 = vunpack.c.h.s8.bf16 %v669
        %v1578 = vunpack.c.h.s8.bf16 %v670
        %v1579 = vunpack.c.l.s8.bf16 %v671
        %v1580 = vunpack.c.l.s8.bf16 %v672
        %v1581 = vunpack.c.l.s8.bf16 %v673
        %v1582 = vunpack.c.l.s8.bf16 %v674
        %v1583 = vunpack.c.h.s8.bf16 %v671
        %v1584 = vunpack.c.h.s8.bf16 %v672
        %v1585 = vunpack.c.h.s8.bf16 %v673
        %v1586 = vunpack.c.h.s8.bf16 %v674
        %v1587 = vunpack.c.l.s8.bf16 %v675
        %v1588 = vunpack.c.l.s8.bf16 %v676
        %v1589 = vunpack.c.l.s8.bf16 %v677
        %v1590 = vunpack.c.l.s8.bf16 %v678
        %v1591 = vunpack.c.h.s8.bf16 %v675
        %v1592 = vunpack.c.h.s8.bf16 %v676
        %v1593 = vunpack.c.h.s8.bf16 %v677
        %v1594 = vunpack.c.h.s8.bf16 %v678
        %v1595 = vunpack.c.l.s8.bf16 %v679
        %v1596 = vunpack.c.l.s8.bf16 %v680
        %v1597 = vunpack.c.l.s8.bf16 %v681
        %v1598 = vunpack.c.l.s8.bf16 %v682
        %v1599 = vunpack.c.h.s8.bf16 %v679
        %v1600 = vunpack.c.h.s8.bf16 %v680
        %v1601 = vunpack.c.h.s8.bf16 %v681
        %v1602 = vunpack.c.h.s8.bf16 %v682
        %v1603 = vunpack.c.l.s8.bf16 %v683
        %v1604 = vunpack.c.l.s8.bf16 %v684
        %v1605 = vunpack.c.l.s8.bf16 %v685
        %v1606 = vunpack.c.l.s8.bf16 %v686
        %v1607 = vunpack.c.h.s8.bf16 %v683
        %v1608 = vunpack.c.h.s8.bf16 %v684
        %v1609 = vunpack.c.h.s8.bf16 %v685
        %v1610 = vunpack.c.h.s8.bf16 %v686
        %v1611 = vunpack.c.l.s8.bf16 %v687
        %v1612 = vunpack.c.l.s8.bf16 %v688
        %v1613 = vunpack.c.l.s8.bf16 %v689
        %v1614 = vunpack.c.l.s8.bf16 %v690
        %v1615 = vunpack.c.h.s8.bf16 %v687
        %v1616 = vunpack.c.h.s8.bf16 %v688
        %v1617 = vunpack.c.h.s8.bf16 %v689
        %v1618 = vunpack.c.h.s8.bf16 %v690
        %v1619 = vunpack.c.l.s8.bf16 %v691
        %v1620 = vunpack.c.l.s8.bf16 %v692
        %v1621 = vunpack.c.l.s8.bf16 %v693
        %v1622 = vunpack.c.l.s8.bf16 %v694
        %v1623 = vunpack.c.h.s8.bf16 %v691
        %v1624 = vunpack.c.h.s8.bf16 %v692
        %v1625 = vunpack.c.h.s8.bf16 %v693
        %v1626 = vunpack.c.h.s8.bf16 %v694
        %v1627 = vunpack.c.l.s8.bf16 %v695
        %v1628 = vunpack.c.l.s8.bf16 %v696
        %v1629 = vunpack.c.l.s8.bf16 %v697
        %v1630 = vunpack.c.l.s8.bf16 %v698
        %v1631 = vunpack.c.h.s8.bf16 %v695
        %v1632 = vunpack.c.h.s8.bf16 %v696
        %v1633 = vunpack.c.h.s8.bf16 %v697
        %v1634 = vunpack.c.h.s8.bf16 %v698
        %v1635 = vunpack.c.l.s8.bf16 %v699
        %v1636 = vunpack.c.l.s8.bf16 %v700
        %v1637 = vunpack.c.l.s8.bf16 %v701
        %v1638 = vunpack.c.l.s8.bf16 %v702
        %v1639 = vunpack.c.h.s8.bf16 %v699
        %v1640 = vunpack.c.h.s8.bf16 %v700
        %v1641 = vunpack.c.h.s8.bf16 %v701
        %v1642 = vunpack.c.h.s8.bf16 %v702
        %v1643 = vunpack.c.l.s8.bf16 %v703
        %v1644 = vunpack.c.l.s8.bf16 %v704
        %v1645 = vunpack.c.l.s8.bf16 %v705
        %v1646 = vunpack.c.l.s8.bf16 %v706
        %v1647 = vunpack.c.h.s8.bf16 %v703
        %v1648 = vunpack.c.h.s8.bf16 %v704
        %v1649 = vunpack.c.h.s8.bf16 %v705
        %v1650 = vunpack.c.h.s8.bf16 %v706
        %v1651 = vunpack.c.l.s8.bf16 %v707
        %v1652 = vunpack.c.l.s8.bf16 %v708
        %v1653 = vunpack.c.l.s8.bf16 %v709
        %v1654 = vunpack.c.l.s8.bf16 %v710
        %v1655 = vunpack.c.h.s8.bf16 %v707
        %v1656 = vunpack.c.h.s8.bf16 %v708
        %v1657 = vunpack.c.h.s8.bf16 %v709
        %v1658 = vunpack.c.h.s8.bf16 %v710
        %v1659 = vunpack.c.l.s8.bf16 %v711
        %v1660 = vunpack.c.l.s8.bf16 %v712
        %v1661 = vunpack.c.l.s8.bf16 %v713
        %v1662 = vunpack.c.l.s8.bf16 %v714
        %v1663 = vunpack.c.h.s8.bf16 %v711
        %v1664 = vunpack.c.h.s8.bf16 %v712
        %v1665 = vunpack.c.h.s8.bf16 %v713
        %v1666 = vunpack.c.h.s8.bf16 %v714
        %v1667 = vunpack.c.l.s8.bf16 %v715
        %v1668 = vunpack.c.l.s8.bf16 %v716
        %v1669 = vunpack.c.l.s8.bf16 %v717
        %v1670 = vunpack.c.l.s8.bf16 %v718
        %v1671 = vunpack.c.h.s8.bf16 %v715
        %v1672 = vunpack.c.h.s8.bf16 %v716
        %v1673 = vunpack.c.h.s8.bf16 %v717
        %v1674 = vunpack.c.h.s8.bf16 %v718
        %v1675 = vunpack.c.l.s8.bf16 %v719
        %v1676 = vunpack.c.l.s8.bf16 %v720
        %v1677 = vunpack.c.l.s8.bf16 %v721
        %v1678 = vunpack.c.l.s8.bf16 %v722
        %v1679 = vunpack.c.h.s8.bf16 %v719
        %v1680 = vunpack.c.h.s8.bf16 %v720
        %v1681 = vunpack.c.h.s8.bf16 %v721
        %v1682 = vunpack.c.h.s8.bf16 %v722
        %v1683 = vunpack.c.l.s8.bf16 %v723
        %v1684 = vunpack.c.l.s8.bf16 %v724
        %v1685 = vunpack.c.l.s8.bf16 %v725
        %v1686 = vunpack.c.l.s8.bf16 %v726
        %v1687 = vunpack.c.h.s8.bf16 %v723
        %v1688 = vunpack.c.h.s8.bf16 %v724
        %v1689 = vunpack.c.h.s8.bf16 %v725
        %v1690 = vunpack.c.h.s8.bf16 %v726
        %v1691 = vunpack.c.l.s8.bf16 %v727
        %v1692 = vunpack.c.l.s8.bf16 %v728
        %v1693 = vunpack.c.l.s8.bf16 %v729
        %v1694 = vunpack.c.l.s8.bf16 %v730
        %v1695 = vunpack.c.h.s8.bf16 %v727
        %v1696 = vunpack.c.h.s8.bf16 %v728
        %v1697 = vunpack.c.h.s8.bf16 %v729
        %v1698 = vunpack.c.h.s8.bf16 %v730
        %v1699 = vunpack.c.l.s8.bf16 %v731
        %v1700 = vunpack.c.l.s8.bf16 %v732
        %v1701 = vunpack.c.l.s8.bf16 %v733
        %v1702 = vunpack.c.l.s8.bf16 %v734
        %v1703 = vunpack.c.h.s8.bf16 %v731
        %v1704 = vunpack.c.h.s8.bf16 %v732
        %v1705 = vunpack.c.h.s8.bf16 %v733
        %v1706 = vunpack.c.h.s8.bf16 %v734
        %v1707 = vunpack.c.l.s8.bf16 %v735
        %v1708 = vunpack.c.l.s8.bf16 %v736
        %v1709 = vunpack.c.l.s8.bf16 %v737
        %v1710 = vunpack.c.l.s8.bf16 %v738
        %v1711 = vunpack.c.h.s8.bf16 %v735
        %v1712 = vunpack.c.h.s8.bf16 %v736
        %v1713 = vunpack.c.h.s8.bf16 %v737
        %v1714 = vunpack.c.h.s8.bf16 %v738
        %v1715 = vunpack.c.l.s8.bf16 %v739
        %v1716 = vunpack.c.l.s8.bf16 %v740
        %v1717 = vunpack.c.l.s8.bf16 %v741
        %v1718 = vunpack.c.l.s8.bf16 %v742
        %v1719 = vunpack.c.h.s8.bf16 %v739
        %v1720 = vunpack.c.h.s8.bf16 %v740
        %v1721 = vunpack.c.h.s8.bf16 %v741
        %v1722 = vunpack.c.h.s8.bf16 %v742
        %v1723 = vunpack.c.l.s8.bf16 %v743
        %v1724 = vunpack.c.l.s8.bf16 %v744
        %v1725 = vunpack.c.l.s8.bf16 %v745
        %v1726 = vunpack.c.l.s8.bf16 %v746
        %v1727 = vunpack.c.h.s8.bf16 %v743
        %v1728 = vunpack.c.h.s8.bf16 %v744
        %v1729 = vunpack.c.h.s8.bf16 %v745
        %v1730 = vunpack.c.h.s8.bf16 %v746
        %v1731 = vunpack.c.l.s8.bf16 %v747
        %v1732 = vunpack.c.l.s8.bf16 %v748
        %v1733 = vunpack.c.l.s8.bf16 %v749
        %v1734 = vunpack.c.l.s8.bf16 %v750
        %v1735 = vunpack.c.h.s8.bf16 %v747
        %v1736 = vunpack.c.h.s8.bf16 %v748
        %v1737 = vunpack.c.h.s8.bf16 %v749
        %v1738 = vunpack.c.h.s8.bf16 %v750
        %v1739 = vunpack.c.l.s8.bf16 %v751
        %v1740 = vunpack.c.l.s8.bf16 %v752
        %v1741 = vunpack.c.l.s8.bf16 %v753
        %v1742 = vunpack.c.l.s8.bf16 %v754
        %v1743 = vunpack.c.h.s8.bf16 %v751
        %v1744 = vunpack.c.h.s8.bf16 %v752
        %v1745 = vunpack.c.h.s8.bf16 %v753
        %v1746 = vunpack.c.h.s8.bf16 %v754
        %v1747 = vunpack.c.l.s8.bf16 %v755
        %v1748 = vunpack.c.l.s8.bf16 %v756
        %v1749 = vunpack.c.l.s8.bf16 %v757
        %v1750 = vunpack.c.l.s8.bf16 %v758
        %v1751 = vunpack.c.h.s8.bf16 %v755
        %v1752 = vunpack.c.h.s8.bf16 %v756
        %v1753 = vunpack.c.h.s8.bf16 %v757
        %v1754 = vunpack.c.h.s8.bf16 %v758
        %v1755 = vunpack.c.l.s8.bf16 %v759
        %v1756 = vunpack.c.l.s8.bf16 %v760
        %v1757 = vunpack.c.l.s8.bf16 %v761
        %v1758 = vunpack.c.l.s8.bf16 %v762
        %v1759 = vunpack.c.h.s8.bf16 %v759
        %v1760 = vunpack.c.h.s8.bf16 %v760
        %v1761 = vunpack.c.h.s8.bf16 %v761
        %v1762 = vunpack.c.h.s8.bf16 %v762
        %v1763 = vunpack.c.l.s8.bf16 %v763
        %v1764 = vunpack.c.l.s8.bf16 %v764
        %v1765 = vunpack.c.l.s8.bf16 %v765
        %v1766 = vunpack.c.l.s8.bf16 %v766
        %v1767 = vunpack.c.h.s8.bf16 %v763
        %v1768 = vunpack.c.h.s8.bf16 %v764
        %v1769 = vunpack.c.h.s8.bf16 %v765
        %v1770 = vunpack.c.h.s8.bf16 %v766
        %v1771 = vunpack.c.l.s8.bf16 %v767
        %v1772 = vunpack.c.l.s8.bf16 %v768
        %v1773 = vunpack.c.l.s8.bf16 %v769
        %v1774 = vunpack.c.l.s8.bf16 %v770
        %v1775 = vunpack.c.h.s8.bf16 %v767
        %v1776 = vunpack.c.h.s8.bf16 %v768
        %v1777 = vunpack.c.h.s8.bf16 %v769
        %v1778 = vunpack.c.h.s8.bf16 %v770
        %v1779 = vunpack.c.l.s8.bf16 %v771
        %v1780 = vunpack.c.l.s8.bf16 %v772
        %v1781 = vunpack.c.l.s8.bf16 %v773
        %v1782 = vunpack.c.l.s8.bf16 %v774
        %v1783 = vunpack.c.h.s8.bf16 %v771
        %v1784 = vunpack.c.h.s8.bf16 %v772
        %v1785 = vunpack.c.h.s8.bf16 %v773
        %v1786 = vunpack.c.h.s8.bf16 %v774
        %v1787 = vunpack.c.l.s8.bf16 %v775
        %v1788 = vunpack.c.l.s8.bf16 %v776
        %v1789 = vunpack.c.l.s8.bf16 %v777
        %v1790 = vunpack.c.l.s8.bf16 %v778
        %v1791 = vunpack.c.h.s8.bf16 %v775
        %v1792 = vunpack.c.h.s8.bf16 %v776
        %v1793 = vunpack.c.h.s8.bf16 %v777
        %v1794 = vunpack.c.h.s8.bf16 %v778
        %v1795 = vunpack.c.l.s8.bf16 %v779
        %v1796 = vunpack.c.l.s8.bf16 %v780
        %v1797 = vunpack.c.l.s8.bf16 %v781
        %v1798 = vunpack.c.l.s8.bf16 %v782
        %v1799 = vunpack.c.h.s8.bf16 %v779
        %v1800 = vunpack.c.h.s8.bf16 %v780
        %v1801 = vunpack.c.h.s8.bf16 %v781
        %v1802 = vunpack.c.h.s8.bf16 %v782
        %v1803 = vunpack.c.l.s8.bf16 %v783
        %v1804 = vunpack.c.l.s8.bf16 %v784
        %v1805 = vunpack.c.l.s8.bf16 %v785
        %v1806 = vunpack.c.l.s8.bf16 %v786
        %v1807 = vunpack.c.h.s8.bf16 %v783
        %v1808 = vunpack.c.h.s8.bf16 %v784
        %v1809 = vunpack.c.h.s8.bf16 %v785
        %v1810 = vunpack.c.h.s8.bf16 %v786
        %v1811 = vld [vmem:[#allocation2] sm:$0xff]
        %v1812 = vld [vmem:[%s253] sm:$0xff]
        %v1813 = vld [vmem:[%s253 + $0x8] sm:$0xff]
        %v1814 = vld [vmem:[%s253 + $0x10] sm:$0xff]
        %v1815 = vld [vmem:[%s253 + $0x18] sm:$0xff]
        %v1820 = vcombine.high %v1812, %v1812
        %v1822 = vunpack.c.l.s4 1966171168
        %v1823 = vunpack.c.0.s8 %v1822
        %v1824 = vlaneseq
        %v1825 = vshrl.u32 %v1824, 7
        %v1826 = vsub.s32 %v1823, %v1825
        %v1827 = vrot.slane %v1812, %v1826
        %v1829 = vunpack.c.l.s4 1966171168
        %v1830 = vunpack.c.0.s8 %v1829
        %v1831 = vlaneseq
        %v1832 = vshrl.u32 %v1831, 7
        %v1833 = vsub.s32 %v1830, %v1832
        %v1834 = vrot.slane %v1820, %v1833
        %v1835 = vcombine.high %v1827, %v1827
        %v1836 = vcombine.high %v1834, %v1834
        %v1838 = vunpack.c.l.s4 1966171168
        %v1839 = vunpack.c.0.s8 %v1838
        %v1840 = vlaneseq
        %v1841 = vshrl.u32 %v1840, 7
        %v1842 = vsub.s32 %v1839, %v1841
        %v1843 = vrot.slane %v1827, %v1842
        %v1845 = vunpack.c.l.s4 1966171168
        %v1846 = vunpack.c.0.s8 %v1845
        %v1847 = vlaneseq
        %v1848 = vshrl.u32 %v1847, 7
        %v1849 = vsub.s32 %v1846, %v1848
        %v1850 = vrot.slane %v1834, %v1849
        %v1852 = vunpack.c.l.s4 1966171168
        %v1853 = vunpack.c.0.s8 %v1852
        %v1854 = vlaneseq
        %v1855 = vshrl.u32 %v1854, 7
        %v1856 = vsub.s32 %v1853, %v1855
        %v1857 = vrot.slane %v1835, %v1856
        %v1859 = vunpack.c.l.s4 1966171168
        %v1860 = vunpack.c.0.s8 %v1859
        %v1861 = vlaneseq
        %v1862 = vshrl.u32 %v1861, 7
        %v1863 = vsub.s32 %v1860, %v1862
        %v1864 = vrot.slane %v1836, %v1863
        %v1865 = vcombine.high %v1843, %v1843
        %v1866 = vcombine.high %v1850, %v1850
        %v1867 = vcombine.high %v1857, %v1857
        %v1868 = vcombine.high %v1864, %v1864
        %v1869 = vcombine.high %v1813, %v1813
        %v1871 = vunpack.c.l.s4 1966171168
        %v1872 = vunpack.c.0.s8 %v1871
        %v1873 = vlaneseq
        %v1874 = vshrl.u32 %v1873, 7
        %v1875 = vsub.s32 %v1872, %v1874
        %v1876 = vrot.slane %v1813, %v1875
        %v1878 = vunpack.c.l.s4 1966171168
        %v1879 = vunpack.c.0.s8 %v1878
        %v1880 = vlaneseq
        %v1881 = vshrl.u32 %v1880, 7
        %v1882 = vsub.s32 %v1879, %v1881
        %v1883 = vrot.slane %v1869, %v1882
        %v1884 = vcombine.high %v1876, %v1876
        %v1885 = vcombine.high %v1883, %v1883
        %v1887 = vunpack.c.l.s4 1966171168
        %v1888 = vunpack.c.0.s8 %v1887
        %v1889 = vlaneseq
        %v1890 = vshrl.u32 %v1889, 7
        %v1891 = vsub.s32 %v1888, %v1890
        %v1892 = vrot.slane %v1876, %v1891
        %v1894 = vunpack.c.l.s4 1966171168
        %v1895 = vunpack.c.0.s8 %v1894
        %v1896 = vlaneseq
        %v1897 = vshrl.u32 %v1896, 7
        %v1898 = vsub.s32 %v1895, %v1897
        %v1899 = vrot.slane %v1883, %v1898
        %v1901 = vunpack.c.l.s4 1966171168
        %v1902 = vunpack.c.0.s8 %v1901
        %v1903 = vlaneseq
        %v1904 = vshrl.u32 %v1903, 7
        %v1905 = vsub.s32 %v1902, %v1904
        %v1906 = vrot.slane %v1884, %v1905
        %v1908 = vunpack.c.l.s4 1966171168
        %v1909 = vunpack.c.0.s8 %v1908
        %v1910 = vlaneseq
        %v1911 = vshrl.u32 %v1910, 7
        %v1912 = vsub.s32 %v1909, %v1911
        %v1913 = vrot.slane %v1885, %v1912
        %v1914 = vcombine.high %v1892, %v1892
        %v1915 = vcombine.high %v1899, %v1899
        %v1916 = vcombine.high %v1906, %v1906
        %v1917 = vcombine.high %v1913, %v1913
        %v1918 = vcombine.high %v1814, %v1814
        %v1920 = vunpack.c.l.s4 1966171168
        %v1921 = vunpack.c.0.s8 %v1920
        %v1922 = vlaneseq
        %v1923 = vshrl.u32 %v1922, 7
        %v1924 = vsub.s32 %v1921, %v1923
        %v1925 = vrot.slane %v1814, %v1924
        %v1927 = vunpack.c.l.s4 1966171168
        %v1928 = vunpack.c.0.s8 %v1927
        %v1929 = vlaneseq
        %v1930 = vshrl.u32 %v1929, 7
        %v1931 = vsub.s32 %v1928, %v1930
        %v1932 = vrot.slane %v1918, %v1931
        %v1933 = vcombine.high %v1925, %v1925
        %v1934 = vcombine.high %v1932, %v1932
        %v1936 = vunpack.c.l.s4 1966171168
        %v1937 = vunpack.c.0.s8 %v1936
        %v1938 = vlaneseq
        %v1939 = vshrl.u32 %v1938, 7
        %v1940 = vsub.s32 %v1937, %v1939
        %v1941 = vrot.slane %v1925, %v1940
        %v1943 = vunpack.c.l.s4 1966171168
        %v1944 = vunpack.c.0.s8 %v1943
        %v1945 = vlaneseq
        %v1946 = vshrl.u32 %v1945, 7
        %v1947 = vsub.s32 %v1944, %v1946
        %v1948 = vrot.slane %v1932, %v1947
        %v1950 = vunpack.c.l.s4 1966171168
        %v1951 = vunpack.c.0.s8 %v1950
        %v1952 = vlaneseq
        %v1953 = vshrl.u32 %v1952, 7
        %v1954 = vsub.s32 %v1951, %v1953
        %v1955 = vrot.slane %v1933, %v1954
        %v1957 = vunpack.c.l.s4 1966171168
        %v1958 = vunpack.c.0.s8 %v1957
        %v1959 = vlaneseq
        %v1960 = vshrl.u32 %v1959, 7
        %v1961 = vsub.s32 %v1958, %v1960
        %v1962 = vrot.slane %v1934, %v1961
        %v1963 = vcombine.high %v1941, %v1941
        %v1964 = vcombine.high %v1948, %v1948
        %v1965 = vcombine.high %v1955, %v1955
        %v1966 = vcombine.high %v1962, %v1962
        %v1967 = vcombine.high %v1815, %v1815
        %v1969 = vunpack.c.l.s4 1966171168
        %v1970 = vunpack.c.0.s8 %v1969
        %v1971 = vlaneseq
        %v1972 = vshrl.u32 %v1971, 7
        %v1973 = vsub.s32 %v1970, %v1972
        %v1974 = vrot.slane %v1815, %v1973
        %v1976 = vunpack.c.l.s4 1966171168
        %v1977 = vunpack.c.0.s8 %v1976
        %v1978 = vlaneseq
        %v1979 = vshrl.u32 %v1978, 7
        %v1980 = vsub.s32 %v1977, %v1979
        %v1981 = vrot.slane %v1967, %v1980
        %v1982 = vcombine.high %v1974, %v1974
        %v1983 = vcombine.high %v1981, %v1981
        %v1985 = vunpack.c.l.s4 1966171168
        %v1986 = vunpack.c.0.s8 %v1985
        %v1987 = vlaneseq
        %v1988 = vshrl.u32 %v1987, 7
        %v1989 = vsub.s32 %v1986, %v1988
        %v1990 = vrot.slane %v1974, %v1989
        %v1992 = vunpack.c.l.s4 1966171168
        %v1993 = vunpack.c.0.s8 %v1992
        %v1994 = vlaneseq
        %v1995 = vshrl.u32 %v1994, 7
        %v1996 = vsub.s32 %v1993, %v1995
        %v1997 = vrot.slane %v1981, %v1996
        %v1999 = vunpack.c.l.s4 1966171168
        %v2000 = vunpack.c.0.s8 %v1999
        %v2001 = vlaneseq
        %v2002 = vshrl.u32 %v2001, 7
        %v2003 = vsub.s32 %v2000, %v2002
        %v2004 = vrot.slane %v1982, %v2003
        %v2006 = vunpack.c.l.s4 1966171168
        %v2007 = vunpack.c.0.s8 %v2006
        %v2008 = vlaneseq
        %v2009 = vshrl.u32 %v2008, 7
        %v2010 = vsub.s32 %v2007, %v2009
        %v2011 = vrot.slane %v1983, %v2010
        %v2012 = vcombine.high %v1990, %v1990
        %v2013 = vcombine.high %v1997, %v1997
        %v2014 = vcombine.high %v2004, %v2004
        %v2015 = vcombine.high %v2011, %v2011
        %2048 = vmatprep.subr.bf16.mxu0 %v816
        %2049 = vmatpush1.bf16.msra.mxu0 %v815
        %2050 = vmatprep.subr.bf16.mxu0 %v812
        %2051 = vmatpush1.bf16.msra.mxu0 %v811
        %2052 = vmatprep.subr.bf16.mxu0 %v808
        %2053 = vmatpush1.bf16.msra.mxu0 %v807
        %2054 = vmatprep.subr.bf16.mxu0 %v804
        %2055 = vmatpush1.bf16.msra.mxu0 %v803
        %2056 = vmatprep.subr.bf16.mxu0 %v800
        %2057 = vmatpush1.bf16.msra.mxu0 %v799
        %2058 = vmatprep.subr.bf16.mxu0 %v796
        %2059 = vmatpush1.bf16.msra.mxu0 %v795
        %2060 = vmatprep.subr.bf16.mxu0 %v792
        %2061 = vmatpush1.bf16.msra.mxu0 %v791
        %2062 = vmatprep.subr.bf16.mxu0 %v788
        %2063 = vmatpush1.bf16.msra.mxu0 %v787
        %2064 = vmatprep.subr.bf16.mxu0 %v848
        %2065 = vmatpush2.bf16.msra.mxu0 %v847
        %2066 = vmatprep.subr.bf16.mxu0 %v844
        %2067 = vmatpush2.bf16.msra.mxu0 %v843
        %2068 = vmatprep.subr.bf16.mxu0 %v840
        %2069 = vmatpush2.bf16.msra.mxu0 %v839
        %2070 = vmatprep.subr.bf16.mxu0 %v836
        %2071 = vmatpush2.bf16.msra.mxu0 %v835
        %2072 = vmatprep.subr.bf16.mxu0 %v832
        %2073 = vmatpush2.bf16.msra.mxu0 %v831
        %2074 = vmatprep.subr.bf16.mxu0 %v828
        %2075 = vmatpush2.bf16.msra.mxu0 %v827
        %2076 = vmatprep.subr.bf16.mxu0 %v824
        %2077 = vmatpush2.bf16.msra.mxu0 %v823
        %2078 = vmatprep.subr.bf16.mxu0 %v820
        %2079 = vmatpush2.bf16.msra.mxu0 %v819
        %2080 = vmatprep.mubr.bf16.mxu0 %v1857
        %2081 = vmatmul.mubr.bf16.gmra.mxu0 %v1843
        %v2082 = vpop.f32.mrf.mxu0
        %v2083 = vadd.f32 0.0, %v2082
        %v2084 = vpop.f32.mrf.mxu0
        %v2085 = vadd.f32 0.0, %v2084
        %v2086 = vpop.f32.mrf.mxu0
        %v2087 = vpop.f32.mrf.mxu0
        %2088 = vdwg.mxu0
        %2089 = vmatprep.subr.bf16.mxu0 %v880
        %2090 = vmatpush1.bf16.msra.mxu0 %v879
        %2091 = vmatprep.subr.bf16.mxu0 %v876
        %2092 = vmatpush1.bf16.msra.mxu0 %v875
        %2093 = vmatprep.subr.bf16.mxu0 %v872
        %2094 = vmatpush1.bf16.msra.mxu0 %v871
        %2095 = vmatprep.subr.bf16.mxu0 %v868
        %2096 = vmatpush1.bf16.msra.mxu0 %v867
        %2097 = vmatprep.subr.bf16.mxu0 %v864
        %2098 = vmatpush1.bf16.msra.mxu0 %v863
        %2099 = vmatprep.subr.bf16.mxu0 %v860
        %2100 = vmatpush1.bf16.msra.mxu0 %v859
        %2101 = vmatprep.subr.bf16.mxu0 %v856
        %2102 = vmatpush1.bf16.msra.mxu0 %v855
        %2103 = vmatprep.subr.bf16.mxu0 %v852
        %2104 = vmatpush1.bf16.msra.mxu0 %v851
        %2105 = vmatprep.subr.bf16.mxu0 %v912
        %2106 = vmatpush2.bf16.msra.mxu0 %v911
        %2107 = vmatprep.subr.bf16.mxu0 %v908
        %2108 = vmatpush2.bf16.msra.mxu0 %v907
        %2109 = vmatprep.subr.bf16.mxu0 %v904
        %2110 = vmatpush2.bf16.msra.mxu0 %v903
        %2111 = vmatprep.subr.bf16.mxu0 %v900
        %2112 = vmatpush2.bf16.msra.mxu0 %v899
        %2113 = vmatprep.subr.bf16.mxu0 %v896
        %2114 = vmatpush2.bf16.msra.mxu0 %v895
        %2115 = vmatprep.subr.bf16.mxu0 %v892
        %2116 = vmatpush2.bf16.msra.mxu0 %v891
        %2117 = vmatprep.subr.bf16.mxu0 %v888
        %2118 = vmatpush2.bf16.msra.mxu0 %v887
        %2119 = vmatprep.subr.bf16.mxu0 %v884
        %2120 = vmatpush2.bf16.msra.mxu0 %v883
        %2121 = vmatprep.mubr.bf16.mxu0 %v1867
        %2122 = vmatmul.mubr.bf16.gmra.mxu0 %v1865
        %v2123 = vpop.f32.mrf.mxu0
        %v2124 = vadd.f32 %v2083, %v2123
        %v2125 = vpop.f32.mrf.mxu0
        %v2126 = vadd.f32 %v2085, %v2125
        %v2127 = vpop.f32.mrf.mxu0
        %v2128 = vpop.f32.mrf.mxu0
        %2129 = vdwg.mxu0
        %2130 = vmatprep.subr.bf16.mxu0 %v944
        %2131 = vmatpush1.bf16.msra.mxu0 %v943
        %2132 = vmatprep.subr.bf16.mxu0 %v940
        %2133 = vmatpush1.bf16.msra.mxu0 %v939
        %2134 = vmatprep.subr.bf16.mxu0 %v936
        %2135 = vmatpush1.bf16.msra.mxu0 %v935
        %2136 = vmatprep.subr.bf16.mxu0 %v932
        %2137 = vmatpush1.bf16.msra.mxu0 %v931
        %2138 = vmatprep.subr.bf16.mxu0 %v928
        %2139 = vmatpush1.bf16.msra.mxu0 %v927
        %2140 = vmatprep.subr.bf16.mxu0 %v924
        %2141 = vmatpush1.bf16.msra.mxu0 %v923
        %2142 = vmatprep.subr.bf16.mxu0 %v920
        %2143 = vmatpush1.bf16.msra.mxu0 %v919
        %2144 = vmatprep.subr.bf16.mxu0 %v916
        %2145 = vmatpush1.bf16.msra.mxu0 %v915
        %2146 = vmatprep.subr.bf16.mxu0 %v976
        %2147 = vmatpush2.bf16.msra.mxu0 %v975
        %2148 = vmatprep.subr.bf16.mxu0 %v972
        %2149 = vmatpush2.bf16.msra.mxu0 %v971
        %2150 = vmatprep.subr.bf16.mxu0 %v968
        %2151 = vmatpush2.bf16.msra.mxu0 %v967
        %2152 = vmatprep.subr.bf16.mxu0 %v964
        %2153 = vmatpush2.bf16.msra.mxu0 %v963
        %2154 = vmatprep.subr.bf16.mxu0 %v960
        %2155 = vmatpush2.bf16.msra.mxu0 %v959
        %2156 = vmatprep.subr.bf16.mxu0 %v956
        %2157 = vmatpush2.bf16.msra.mxu0 %v955
        %2158 = vmatprep.subr.bf16.mxu0 %v952
        %2159 = vmatpush2.bf16.msra.mxu0 %v951
        %2160 = vmatprep.subr.bf16.mxu0 %v948
        %2161 = vmatpush2.bf16.msra.mxu0 %v947
        %2162 = vmatprep.mubr.bf16.mxu0 %v1864
        %2163 = vmatmul.mubr.bf16.gmra.mxu0 %v1850
        %v2164 = vpop.f32.mrf.mxu0
        %v2165 = vadd.f32 %v2124, %v2164
        %v2166 = vpop.f32.mrf.mxu0
        %v2167 = vadd.f32 %v2126, %v2166
        %v2168 = vpop.f32.mrf.mxu0
        %v2169 = vpop.f32.mrf.mxu0
        %2170 = vdwg.mxu0
        %2171 = vmatprep.subr.bf16.mxu0 %v1008
        %2172 = vmatpush1.bf16.msra.mxu0 %v1007
        %2173 = vmatprep.subr.bf16.mxu0 %v1004
        %2174 = vmatpush1.bf16.msra.mxu0 %v1003
        %2175 = vmatprep.subr.bf16.mxu0 %v1000
        %2176 = vmatpush1.bf16.msra.mxu0 %v999
        %2177 = vmatprep.subr.bf16.mxu0 %v996
        %2178 = vmatpush1.bf16.msra.mxu0 %v995
        %2179 = vmatprep.subr.bf16.mxu0 %v992
        %2180 = vmatpush1.bf16.msra.mxu0 %v991
        %2181 = vmatprep.subr.bf16.mxu0 %v988
        %2182 = vmatpush1.bf16.msra.mxu0 %v987
        %2183 = vmatprep.subr.bf16.mxu0 %v984
        %2184 = vmatpush1.bf16.msra.mxu0 %v983
        %2185 = vmatprep.subr.bf16.mxu0 %v980
        %2186 = vmatpush1.bf16.msra.mxu0 %v979
        %2187 = vmatprep.subr.bf16.mxu0 %v1040
        %2188 = vmatpush2.bf16.msra.mxu0 %v1039
        %2189 = vmatprep.subr.bf16.mxu0 %v1036
        %2190 = vmatpush2.bf16.msra.mxu0 %v1035
        %2191 = vmatprep.subr.bf16.mxu0 %v1032
        %2192 = vmatpush2.bf16.msra.mxu0 %v1031
        %2193 = vmatprep.subr.bf16.mxu0 %v1028
        %2194 = vmatpush2.bf16.msra.mxu0 %v1027
        %2195 = vmatprep.subr.bf16.mxu0 %v1024
        %2196 = vmatpush2.bf16.msra.mxu0 %v1023
        %2197 = vmatprep.subr.bf16.mxu0 %v1020
        %2198 = vmatpush2.bf16.msra.mxu0 %v1019
        %2199 = vmatprep.subr.bf16.mxu0 %v1016
        %2200 = vmatpush2.bf16.msra.mxu0 %v1015
        %2201 = vmatprep.subr.bf16.mxu0 %v1012
        %2202 = vmatpush2.bf16.msra.mxu0 %v1011
        %2203 = vmatprep.mubr.bf16.mxu0 %v1868
        %2204 = vmatmul.mubr.bf16.gmra.mxu0 %v1866
        %v2205 = vpop.f32.mrf.mxu0
        %v2206 = vadd.f32 %v2165, %v2205
        %v2207 = vpop.f32.mrf.mxu0
        %v2208 = vadd.f32 %v2167, %v2207
        %v2209 = vpop.f32.mrf.mxu0
        %v2210 = vpop.f32.mrf.mxu0
        %2211 = vdwg.mxu0
        %2212 = vmatprep.subr.bf16.mxu0 %v1072
        %2213 = vmatpush1.bf16.msra.mxu0 %v1071
        %2214 = vmatprep.subr.bf16.mxu0 %v1068
        %2215 = vmatpush1.bf16.msra.mxu0 %v1067
        %2216 = vmatprep.subr.bf16.mxu0 %v1064
        %2217 = vmatpush1.bf16.msra.mxu0 %v1063
        %2218 = vmatprep.subr.bf16.mxu0 %v1060
        %2219 = vmatpush1.bf16.msra.mxu0 %v1059
        %2220 = vmatprep.subr.bf16.mxu0 %v1056
        %2221 = vmatpush1.bf16.msra.mxu0 %v1055
        %2222 = vmatprep.subr.bf16.mxu0 %v1052
        %2223 = vmatpush1.bf16.msra.mxu0 %v1051
        %2224 = vmatprep.subr.bf16.mxu0 %v1048
        %2225 = vmatpush1.bf16.msra.mxu0 %v1047
        %2226 = vmatprep.subr.bf16.mxu0 %v1044
        %2227 = vmatpush1.bf16.msra.mxu0 %v1043
        %2228 = vmatprep.subr.bf16.mxu0 %v1104
        %2229 = vmatpush2.bf16.msra.mxu0 %v1103
        %2230 = vmatprep.subr.bf16.mxu0 %v1100
        %2231 = vmatpush2.bf16.msra.mxu0 %v1099
        %2232 = vmatprep.subr.bf16.mxu0 %v1096
        %2233 = vmatpush2.bf16.msra.mxu0 %v1095
        %2234 = vmatprep.subr.bf16.mxu0 %v1092
        %2235 = vmatpush2.bf16.msra.mxu0 %v1091
        %2236 = vmatprep.subr.bf16.mxu0 %v1088
        %2237 = vmatpush2.bf16.msra.mxu0 %v1087
        %2238 = vmatprep.subr.bf16.mxu0 %v1084
        %2239 = vmatpush2.bf16.msra.mxu0 %v1083
        %2240 = vmatprep.subr.bf16.mxu0 %v1080
        %2241 = vmatpush2.bf16.msra.mxu0 %v1079
        %2242 = vmatprep.subr.bf16.mxu0 %v1076
        %2243 = vmatpush2.bf16.msra.mxu0 %v1075
        %2244 = vmatprep.mubr.bf16.mxu0 %v1906
        %2245 = vmatmul.mubr.bf16.gmra.mxu0 %v1892
        %v2246 = vpop.f32.mrf.mxu0
        %v2247 = vadd.f32 %v2206, %v2246
        %v2248 = vpop.f32.mrf.mxu0
        %v2249 = vadd.f32 %v2208, %v2248
        %v2250 = vpop.f32.mrf.mxu0
        %v2251 = vpop.f32.mrf.mxu0
        %2252 = vdwg.mxu0
        %2253 = vmatprep.subr.bf16.mxu0 %v1136
        %2254 = vmatpush1.bf16.msra.mxu0 %v1135
        %2255 = vmatprep.subr.bf16.mxu0 %v1132
        %2256 = vmatpush1.bf16.msra.mxu0 %v1131
        %2257 = vmatprep.subr.bf16.mxu0 %v1128
        %2258 = vmatpush1.bf16.msra.mxu0 %v1127
        %2259 = vmatprep.subr.bf16.mxu0 %v1124
        %2260 = vmatpush1.bf16.msra.mxu0 %v1123
        %2261 = vmatprep.subr.bf16.mxu0 %v1120
        %2262 = vmatpush1.bf16.msra.mxu0 %v1119
        %2263 = vmatprep.subr.bf16.mxu0 %v1116
        %2264 = vmatpush1.bf16.msra.mxu0 %v1115
        %2265 = vmatprep.subr.bf16.mxu0 %v1112
        %2266 = vmatpush1.bf16.msra.mxu0 %v1111
        %2267 = vmatprep.subr.bf16.mxu0 %v1108
        %2268 = vmatpush1.bf16.msra.mxu0 %v1107
        %2269 = vmatprep.subr.bf16.mxu0 %v1168
        %2270 = vmatpush2.bf16.msra.mxu0 %v1167
        %2271 = vmatprep.subr.bf16.mxu0 %v1164
        %2272 = vmatpush2.bf16.msra.mxu0 %v1163
        %2273 = vmatprep.subr.bf16.mxu0 %v1160
        %2274 = vmatpush2.bf16.msra.mxu0 %v1159
        %2275 = vmatprep.subr.bf16.mxu0 %v1156
        %2276 = vmatpush2.bf16.msra.mxu0 %v1155
        %2277 = vmatprep.subr.bf16.mxu0 %v1152
        %2278 = vmatpush2.bf16.msra.mxu0 %v1151
        %2279 = vmatprep.subr.bf16.mxu0 %v1148
        %2280 = vmatpush2.bf16.msra.mxu0 %v1147
        %2281 = vmatprep.subr.bf16.mxu0 %v1144
        %2282 = vmatpush2.bf16.msra.mxu0 %v1143
        %2283 = vmatprep.subr.bf16.mxu0 %v1140
        %2284 = vmatpush2.bf16.msra.mxu0 %v1139
        %2285 = vmatprep.mubr.bf16.mxu0 %v1916
        %2286 = vmatmul.mubr.bf16.gmra.mxu0 %v1914
        %v2287 = vpop.f32.mrf.mxu0
        %v2288 = vadd.f32 %v2247, %v2287
        %v2289 = vpop.f32.mrf.mxu0
        %v2290 = vadd.f32 %v2249, %v2289
        %v2291 = vpop.f32.mrf.mxu0
        %v2292 = vpop.f32.mrf.mxu0
        %2293 = vdwg.mxu0
        %2294 = vmatprep.subr.bf16.mxu0 %v1200
        %2295 = vmatpush1.bf16.msra.mxu0 %v1199
        %2296 = vmatprep.subr.bf16.mxu0 %v1196
        %2297 = vmatpush1.bf16.msra.mxu0 %v1195
        %2298 = vmatprep.subr.bf16.mxu0 %v1192
        %2299 = vmatpush1.bf16.msra.mxu0 %v1191
        %2300 = vmatprep.subr.bf16.mxu0 %v1188
        %2301 = vmatpush1.bf16.msra.mxu0 %v1187
        %2302 = vmatprep.subr.bf16.mxu0 %v1184
        %2303 = vmatpush1.bf16.msra.mxu0 %v1183
        %2304 = vmatprep.subr.bf16.mxu0 %v1180
        %2305 = vmatpush1.bf16.msra.mxu0 %v1179
        %2306 = vmatprep.subr.bf16.mxu0 %v1176
        %2307 = vmatpush1.bf16.msra.mxu0 %v1175
        %2308 = vmatprep.subr.bf16.mxu0 %v1172
        %2309 = vmatpush1.bf16.msra.mxu0 %v1171
        %2310 = vmatprep.subr.bf16.mxu0 %v1232
        %2311 = vmatpush2.bf16.msra.mxu0 %v1231
        %2312 = vmatprep.subr.bf16.mxu0 %v1228
        %2313 = vmatpush2.bf16.msra.mxu0 %v1227
        %2314 = vmatprep.subr.bf16.mxu0 %v1224
        %2315 = vmatpush2.bf16.msra.mxu0 %v1223
        %2316 = vmatprep.subr.bf16.mxu0 %v1220
        %2317 = vmatpush2.bf16.msra.mxu0 %v1219
        %2318 = vmatprep.subr.bf16.mxu0 %v1216
        %2319 = vmatpush2.bf16.msra.mxu0 %v1215
        %2320 = vmatprep.subr.bf16.mxu0 %v1212
        %2321 = vmatpush2.bf16.msra.mxu0 %v1211
        %2322 = vmatprep.subr.bf16.mxu0 %v1208
        %2323 = vmatpush2.bf16.msra.mxu0 %v1207
        %2324 = vmatprep.subr.bf16.mxu0 %v1204
        %2325 = vmatpush2.bf16.msra.mxu0 %v1203
        %2326 = vmatprep.mubr.bf16.mxu0 %v1913
        %2327 = vmatmul.mubr.bf16.gmra.mxu0 %v1899
        %v2328 = vpop.f32.mrf.mxu0
        %v2329 = vadd.f32 %v2288, %v2328
        %v2330 = vpop.f32.mrf.mxu0
        %v2331 = vadd.f32 %v2290, %v2330
        %v2332 = vpop.f32.mrf.mxu0
        %v2333 = vpop.f32.mrf.mxu0
        %2334 = vdwg.mxu0
        %2335 = vmatprep.subr.bf16.mxu0 %v1264
        %2336 = vmatpush1.bf16.msra.mxu0 %v1263
        %2337 = vmatprep.subr.bf16.mxu0 %v1260
        %2338 = vmatpush1.bf16.msra.mxu0 %v1259
        %2339 = vmatprep.subr.bf16.mxu0 %v1256
        %2340 = vmatpush1.bf16.msra.mxu0 %v1255
        %2341 = vmatprep.subr.bf16.mxu0 %v1252
        %2342 = vmatpush1.bf16.msra.mxu0 %v1251
        %2343 = vmatprep.subr.bf16.mxu0 %v1248
        %2344 = vmatpush1.bf16.msra.mxu0 %v1247
        %2345 = vmatprep.subr.bf16.mxu0 %v1244
        %2346 = vmatpush1.bf16.msra.mxu0 %v1243
        %2347 = vmatprep.subr.bf16.mxu0 %v1240
        %2348 = vmatpush1.bf16.msra.mxu0 %v1239
        %2349 = vmatprep.subr.bf16.mxu0 %v1236
        %2350 = vmatpush1.bf16.msra.mxu0 %v1235
        %2351 = vmatprep.subr.bf16.mxu0 %v1296
        %2352 = vmatpush2.bf16.msra.mxu0 %v1295
        %2353 = vmatprep.subr.bf16.mxu0 %v1292
        %2354 = vmatpush2.bf16.msra.mxu0 %v1291
        %2355 = vmatprep.subr.bf16.mxu0 %v1288
        %2356 = vmatpush2.bf16.msra.mxu0 %v1287
        %2357 = vmatprep.subr.bf16.mxu0 %v1284
        %2358 = vmatpush2.bf16.msra.mxu0 %v1283
        %2359 = vmatprep.subr.bf16.mxu0 %v1280
        %2360 = vmatpush2.bf16.msra.mxu0 %v1279
        %2361 = vmatprep.subr.bf16.mxu0 %v1276
        %2362 = vmatpush2.bf16.msra.mxu0 %v1275
        %2363 = vmatprep.subr.bf16.mxu0 %v1272
        %2364 = vmatpush2.bf16.msra.mxu0 %v1271
        %2365 = vmatprep.subr.bf16.mxu0 %v1268
        %2366 = vmatpush2.bf16.msra.mxu0 %v1267
        %2367 = vmatprep.mubr.bf16.mxu0 %v1917
        %2368 = vmatmul.mubr.bf16.gmra.mxu0 %v1915
        %v2369 = vpop.f32.mrf.mxu0
        %v2370 = vadd.f32 %v2329, %v2369
        %v2371 = vpop.f32.mrf.mxu0
        %v2372 = vadd.f32 %v2331, %v2371
        %v2373 = vpop.f32.mrf.mxu0
        %v2374 = vpop.f32.mrf.mxu0
        %2375 = vdwg.mxu0
        %2376 = vmatprep.subr.bf16.mxu0 %v1328
        %2377 = vmatpush1.bf16.msra.mxu0 %v1327
        %2378 = vmatprep.subr.bf16.mxu0 %v1324
        %2379 = vmatpush1.bf16.msra.mxu0 %v1323
        %2380 = vmatprep.subr.bf16.mxu0 %v1320
        %2381 = vmatpush1.bf16.msra.mxu0 %v1319
        %2382 = vmatprep.subr.bf16.mxu0 %v1316
        %2383 = vmatpush1.bf16.msra.mxu0 %v1315
        %2384 = vmatprep.subr.bf16.mxu0 %v1312
        %2385 = vmatpush1.bf16.msra.mxu0 %v1311
        %2386 = vmatprep.subr.bf16.mxu0 %v1308
        %2387 = vmatpush1.bf16.msra.mxu0 %v1307
        %2388 = vmatprep.subr.bf16.mxu0 %v1304
        %2389 = vmatpush1.bf16.msra.mxu0 %v1303
        %2390 = vmatprep.subr.bf16.mxu0 %v1300
        %2391 = vmatpush1.bf16.msra.mxu0 %v1299
        %2392 = vmatprep.subr.bf16.mxu0 %v1360
        %2393 = vmatpush2.bf16.msra.mxu0 %v1359
        %2394 = vmatprep.subr.bf16.mxu0 %v1356
        %2395 = vmatpush2.bf16.msra.mxu0 %v1355
        %2396 = vmatprep.subr.bf16.mxu0 %v1352
        %2397 = vmatpush2.bf16.msra.mxu0 %v1351
        %2398 = vmatprep.subr.bf16.mxu0 %v1348
        %2399 = vmatpush2.bf16.msra.mxu0 %v1347
        %2400 = vmatprep.subr.bf16.mxu0 %v1344
        %2401 = vmatpush2.bf16.msra.mxu0 %v1343
        %2402 = vmatprep.subr.bf16.mxu0 %v1340
        %2403 = vmatpush2.bf16.msra.mxu0 %v1339
        %2404 = vmatprep.subr.bf16.mxu0 %v1336
        %2405 = vmatpush2.bf16.msra.mxu0 %v1335
        %2406 = vmatprep.subr.bf16.mxu0 %v1332
        %2407 = vmatpush2.bf16.msra.mxu0 %v1331
        %2408 = vmatprep.mubr.bf16.mxu0 %v1955
        %2409 = vmatmul.mubr.bf16.gmra.mxu0 %v1941
        %v2410 = vpop.f32.mrf.mxu0
        %v2411 = vadd.f32 %v2370, %v2410
        %v2412 = vpop.f32.mrf.mxu0
        %v2413 = vadd.f32 %v2372, %v2412
        %v2414 = vpop.f32.mrf.mxu0
        %v2415 = vpop.f32.mrf.mxu0
        %2416 = vdwg.mxu0
        %2417 = vmatprep.subr.bf16.mxu0 %v1392
        %2418 = vmatpush1.bf16.msra.mxu0 %v1391
        %2419 = vmatprep.subr.bf16.mxu0 %v1388
        %2420 = vmatpush1.bf16.msra.mxu0 %v1387
        %2421 = vmatprep.subr.bf16.mxu0 %v1384
        %2422 = vmatpush1.bf16.msra.mxu0 %v1383
        %2423 = vmatprep.subr.bf16.mxu0 %v1380
        %2424 = vmatpush1.bf16.msra.mxu0 %v1379
        %2425 = vmatprep.subr.bf16.mxu0 %v1376
        %2426 = vmatpush1.bf16.msra.mxu0 %v1375
        %2427 = vmatprep.subr.bf16.mxu0 %v1372
        %2428 = vmatpush1.bf16.msra.mxu0 %v1371
        %2429 = vmatprep.subr.bf16.mxu0 %v1368
        %2430 = vmatpush1.bf16.msra.mxu0 %v1367
        %2431 = vmatprep.subr.bf16.mxu0 %v1364
        %2432 = vmatpush1.bf16.msra.mxu0 %v1363
        %2433 = vmatprep.subr.bf16.mxu0 %v1424
        %2434 = vmatpush2.bf16.msra.mxu0 %v1423
        %2435 = vmatprep.subr.bf16.mxu0 %v1420
        %2436 = vmatpush2.bf16.msra.mxu0 %v1419
        %2437 = vmatprep.subr.bf16.mxu0 %v1416
        %2438 = vmatpush2.bf16.msra.mxu0 %v1415
        %2439 = vmatprep.subr.bf16.mxu0 %v1412
        %2440 = vmatpush2.bf16.msra.mxu0 %v1411
        %2441 = vmatprep.subr.bf16.mxu0 %v1408
        %2442 = vmatpush2.bf16.msra.mxu0 %v1407
        %2443 = vmatprep.subr.bf16.mxu0 %v1404
        %2444 = vmatpush2.bf16.msra.mxu0 %v1403
        %2445 = vmatprep.subr.bf16.mxu0 %v1400
        %2446 = vmatpush2.bf16.msra.mxu0 %v1399
        %2447 = vmatprep.subr.bf16.mxu0 %v1396
        %2448 = vmatpush2.bf16.msra.mxu0 %v1395
        %2449 = vmatprep.mubr.bf16.mxu0 %v1965
        %2450 = vmatmul.mubr.bf16.gmra.mxu0 %v1963
        %v2451 = vpop.f32.mrf.mxu0
        %v2452 = vadd.f32 %v2411, %v2451
        %v2453 = vpop.f32.mrf.mxu0
        %v2454 = vadd.f32 %v2413, %v2453
        %v2455 = vpop.f32.mrf.mxu0
        %v2456 = vpop.f32.mrf.mxu0
        %2457 = vdwg.mxu0
        %2458 = vmatprep.subr.bf16.mxu0 %v1456
        %2459 = vmatpush1.bf16.msra.mxu0 %v1455
        %2460 = vmatprep.subr.bf16.mxu0 %v1452
        %2461 = vmatpush1.bf16.msra.mxu0 %v1451
        %2462 = vmatprep.subr.bf16.mxu0 %v1448
        %2463 = vmatpush1.bf16.msra.mxu0 %v1447
        %2464 = vmatprep.subr.bf16.mxu0 %v1444
        %2465 = vmatpush1.bf16.msra.mxu0 %v1443
        %2466 = vmatprep.subr.bf16.mxu0 %v1440
        %2467 = vmatpush1.bf16.msra.mxu0 %v1439
        %2468 = vmatprep.subr.bf16.mxu0 %v1436
        %2469 = vmatpush1.bf16.msra.mxu0 %v1435
        %2470 = vmatprep.subr.bf16.mxu0 %v1432
        %2471 = vmatpush1.bf16.msra.mxu0 %v1431
        %2472 = vmatprep.subr.bf16.mxu0 %v1428
        %2473 = vmatpush1.bf16.msra.mxu0 %v1427
        %2474 = vmatprep.subr.bf16.mxu0 %v1488
        %2475 = vmatpush2.bf16.msra.mxu0 %v1487
        %2476 = vmatprep.subr.bf16.mxu0 %v1484
        %2477 = vmatpush2.bf16.msra.mxu0 %v1483
        %2478 = vmatprep.subr.bf16.mxu0 %v1480
        %2479 = vmatpush2.bf16.msra.mxu0 %v1479
        %2480 = vmatprep.subr.bf16.mxu0 %v1476
        %2481 = vmatpush2.bf16.msra.mxu0 %v1475
        %2482 = vmatprep.subr.bf16.mxu0 %v1472
        %2483 = vmatpush2.bf16.msra.mxu0 %v1471
        %2484 = vmatprep.subr.bf16.mxu0 %v1468
        %2485 = vmatpush2.bf16.msra.mxu0 %v1467
        %2486 = vmatprep.subr.bf16.mxu0 %v1464
        %2487 = vmatpush2.bf16.msra.mxu0 %v1463
        %2488 = vmatprep.subr.bf16.mxu0 %v1460
        %2489 = vmatpush2.bf16.msra.mxu0 %v1459
        %2490 = vmatprep.mubr.bf16.mxu0 %v1962
        %2491 = vmatmul.mubr.bf16.gmra.mxu0 %v1948
        %v2492 = vpop.f32.mrf.mxu0
        %v2493 = vadd.f32 %v2452, %v2492
        %v2494 = vpop.f32.mrf.mxu0
        %v2495 = vadd.f32 %v2454, %v2494
        %v2496 = vpop.f32.mrf.mxu0
        %v2497 = vpop.f32.mrf.mxu0
        %2498 = vdwg.mxu0
        %2499 = vmatprep.subr.bf16.mxu0 %v1520
        %2500 = vmatpush1.bf16.msra.mxu0 %v1519
        %2501 = vmatprep.subr.bf16.mxu0 %v1516
        %2502 = vmatpush1.bf16.msra.mxu0 %v1515
        %2503 = vmatprep.subr.bf16.mxu0 %v1512
        %2504 = vmatpush1.bf16.msra.mxu0 %v1511
        %2505 = vmatprep.subr.bf16.mxu0 %v1508
        %2506 = vmatpush1.bf16.msra.mxu0 %v1507
        %2507 = vmatprep.subr.bf16.mxu0 %v1504
        %2508 = vmatpush1.bf16.msra.mxu0 %v1503
        %2509 = vmatprep.subr.bf16.mxu0 %v1500
        %2510 = vmatpush1.bf16.msra.mxu0 %v1499
        %2511 = vmatprep.subr.bf16.mxu0 %v1496
        %2512 = vmatpush1.bf16.msra.mxu0 %v1495
        %2513 = vmatprep.subr.bf16.mxu0 %v1492
        %2514 = vmatpush1.bf16.msra.mxu0 %v1491
        %2515 = vmatprep.subr.bf16.mxu0 %v1552
        %2516 = vmatpush2.bf16.msra.mxu0 %v1551
        %2517 = vmatprep.subr.bf16.mxu0 %v1548
        %2518 = vmatpush2.bf16.msra.mxu0 %v1547
        %2519 = vmatprep.subr.bf16.mxu0 %v1544
        %2520 = vmatpush2.bf16.msra.mxu0 %v1543
        %2521 = vmatprep.subr.bf16.mxu0 %v1540
        %2522 = vmatpush2.bf16.msra.mxu0 %v1539
        %2523 = vmatprep.subr.bf16.mxu0 %v1536
        %2524 = vmatpush2.bf16.msra.mxu0 %v1535
        %2525 = vmatprep.subr.bf16.mxu0 %v1532
        %2526 = vmatpush2.bf16.msra.mxu0 %v1531
        %2527 = vmatprep.subr.bf16.mxu0 %v1528
        %2528 = vmatpush2.bf16.msra.mxu0 %v1527
        %2529 = vmatprep.subr.bf16.mxu0 %v1524
        %2530 = vmatpush2.bf16.msra.mxu0 %v1523
        %2531 = vmatprep.mubr.bf16.mxu0 %v1966
        %2532 = vmatmul.mubr.bf16.gmra.mxu0 %v1964
        %v2533 = vpop.f32.mrf.mxu0
        %v2534 = vadd.f32 %v2493, %v2533
        %v2535 = vpop.f32.mrf.mxu0
        %v2536 = vadd.f32 %v2495, %v2535
        %v2537 = vpop.f32.mrf.mxu0
        %v2538 = vpop.f32.mrf.mxu0
        %2539 = vdwg.mxu0
        %2540 = vmatprep.subr.bf16.mxu0 %v1584
        %2541 = vmatpush1.bf16.msra.mxu0 %v1583
        %2542 = vmatprep.subr.bf16.mxu0 %v1580
        %2543 = vmatpush1.bf16.msra.mxu0 %v1579
        %2544 = vmatprep.subr.bf16.mxu0 %v1576
        %2545 = vmatpush1.bf16.msra.mxu0 %v1575
        %2546 = vmatprep.subr.bf16.mxu0 %v1572
        %2547 = vmatpush1.bf16.msra.mxu0 %v1571
        %2548 = vmatprep.subr.bf16.mxu0 %v1568
        %2549 = vmatpush1.bf16.msra.mxu0 %v1567
        %2550 = vmatprep.subr.bf16.mxu0 %v1564
        %2551 = vmatpush1.bf16.msra.mxu0 %v1563
        %2552 = vmatprep.subr.bf16.mxu0 %v1560
        %2553 = vmatpush1.bf16.msra.mxu0 %v1559
        %2554 = vmatprep.subr.bf16.mxu0 %v1556
        %2555 = vmatpush1.bf16.msra.mxu0 %v1555
        %2556 = vmatprep.subr.bf16.mxu0 %v1616
        %2557 = vmatpush2.bf16.msra.mxu0 %v1615
        %2558 = vmatprep.subr.bf16.mxu0 %v1612
        %2559 = vmatpush2.bf16.msra.mxu0 %v1611
        %2560 = vmatprep.subr.bf16.mxu0 %v1608
        %2561 = vmatpush2.bf16.msra.mxu0 %v1607
        %2562 = vmatprep.subr.bf16.mxu0 %v1604
        %2563 = vmatpush2.bf16.msra.mxu0 %v1603
        %2564 = vmatprep.subr.bf16.mxu0 %v1600
        %2565 = vmatpush2.bf16.msra.mxu0 %v1599
        %2566 = vmatprep.subr.bf16.mxu0 %v1596
        %2567 = vmatpush2.bf16.msra.mxu0 %v1595
        %2568 = vmatprep.subr.bf16.mxu0 %v1592
        %2569 = vmatpush2.bf16.msra.mxu0 %v1591
        %2570 = vmatprep.subr.bf16.mxu0 %v1588
        %2571 = vmatpush2.bf16.msra.mxu0 %v1587
        %2572 = vmatprep.mubr.bf16.mxu0 %v2004
        %2573 = vmatmul.mubr.bf16.gmra.mxu0 %v1990
        %v2574 = vpop.f32.mrf.mxu0
        %v2575 = vadd.f32 %v2534, %v2574
        %v2576 = vpop.f32.mrf.mxu0
        %v2577 = vadd.f32 %v2536, %v2576
        %v2578 = vpop.f32.mrf.mxu0
        %v2579 = vpop.f32.mrf.mxu0
        %2580 = vdwg.mxu0
        %2581 = vmatprep.subr.bf16.mxu0 %v1648
        %2582 = vmatpush1.bf16.msra.mxu0 %v1647
        %2583 = vmatprep.subr.bf16.mxu0 %v1644
        %2584 = vmatpush1.bf16.msra.mxu0 %v1643
        %2585 = vmatprep.subr.bf16.mxu0 %v1640
        %2586 = vmatpush1.bf16.msra.mxu0 %v1639
        %2587 = vmatprep.subr.bf16.mxu0 %v1636
        %2588 = vmatpush1.bf16.msra.mxu0 %v1635
        %2589 = vmatprep.subr.bf16.mxu0 %v1632
        %2590 = vmatpush1.bf16.msra.mxu0 %v1631
        %2591 = vmatprep.subr.bf16.mxu0 %v1628
        %2592 = vmatpush1.bf16.msra.mxu0 %v1627
        %2593 = vmatprep.subr.bf16.mxu0 %v1624
        %2594 = vmatpush1.bf16.msra.mxu0 %v1623
        %2595 = vmatprep.subr.bf16.mxu0 %v1620
        %2596 = vmatpush1.bf16.msra.mxu0 %v1619
        %2597 = vmatprep.subr.bf16.mxu0 %v1680
        %2598 = vmatpush2.bf16.msra.mxu0 %v1679
        %2599 = vmatprep.subr.bf16.mxu0 %v1676
        %2600 = vmatpush2.bf16.msra.mxu0 %v1675
        %2601 = vmatprep.subr.bf16.mxu0 %v1672
        %2602 = vmatpush2.bf16.msra.mxu0 %v1671
        %2603 = vmatprep.subr.bf16.mxu0 %v1668
        %2604 = vmatpush2.bf16.msra.mxu0 %v1667
        %2605 = vmatprep.subr.bf16.mxu0 %v1664
        %2606 = vmatpush2.bf16.msra.mxu0 %v1663
        %2607 = vmatprep.subr.bf16.mxu0 %v1660
        %2608 = vmatpush2.bf16.msra.mxu0 %v1659
        %2609 = vmatprep.subr.bf16.mxu0 %v1656
        %2610 = vmatpush2.bf16.msra.mxu0 %v1655
        %2611 = vmatprep.subr.bf16.mxu0 %v1652
        %2612 = vmatpush2.bf16.msra.mxu0 %v1651
        %2613 = vmatprep.mubr.bf16.mxu0 %v2014
        %2614 = vmatmul.mubr.bf16.gmra.mxu0 %v2012
        %v2615 = vpop.f32.mrf.mxu0
        %v2616 = vadd.f32 %v2575, %v2615
        %v2617 = vpop.f32.mrf.mxu0
        %v2618 = vadd.f32 %v2577, %v2617
        %v2619 = vpop.f32.mrf.mxu0
        %v2620 = vpop.f32.mrf.mxu0
        %2621 = vdwg.mxu0
        %2622 = vmatprep.subr.bf16.mxu0 %v1712
        %2623 = vmatpush1.bf16.msra.mxu0 %v1711
        %2624 = vmatprep.subr.bf16.mxu0 %v1708
        %2625 = vmatpush1.bf16.msra.mxu0 %v1707
        %2626 = vmatprep.subr.bf16.mxu0 %v1704
        %2627 = vmatpush1.bf16.msra.mxu0 %v1703
        %2628 = vmatprep.subr.bf16.mxu0 %v1700
        %2629 = vmatpush1.bf16.msra.mxu0 %v1699
        %2630 = vmatprep.subr.bf16.mxu0 %v1696
        %2631 = vmatpush1.bf16.msra.mxu0 %v1695
        %2632 = vmatprep.subr.bf16.mxu0 %v1692
        %2633 = vmatpush1.bf16.msra.mxu0 %v1691
        %2634 = vmatprep.subr.bf16.mxu0 %v1688
        %2635 = vmatpush1.bf16.msra.mxu0 %v1687
        %2636 = vmatprep.subr.bf16.mxu0 %v1684
        %2637 = vmatpush1.bf16.msra.mxu0 %v1683
        %2638 = vmatprep.subr.bf16.mxu0 %v1744
        %2639 = vmatpush2.bf16.msra.mxu0 %v1743
        %2640 = vmatprep.subr.bf16.mxu0 %v1740
        %2641 = vmatpush2.bf16.msra.mxu0 %v1739
        %2642 = vmatprep.subr.bf16.mxu0 %v1736
        %2643 = vmatpush2.bf16.msra.mxu0 %v1735
        %2644 = vmatprep.subr.bf16.mxu0 %v1732
        %2645 = vmatpush2.bf16.msra.mxu0 %v1731
        %2646 = vmatprep.subr.bf16.mxu0 %v1728
        %2647 = vmatpush2.bf16.msra.mxu0 %v1727
        %2648 = vmatprep.subr.bf16.mxu0 %v1724
        %2649 = vmatpush2.bf16.msra.mxu0 %v1723
        %2650 = vmatprep.subr.bf16.mxu0 %v1720
        %2651 = vmatpush2.bf16.msra.mxu0 %v1719
        %2652 = vmatprep.subr.bf16.mxu0 %v1716
        %2653 = vmatpush2.bf16.msra.mxu0 %v1715
        %2654 = vmatprep.mubr.bf16.mxu0 %v2011
        %2655 = vmatmul.mubr.bf16.gmra.mxu0 %v1997
        %v2656 = vpop.f32.mrf.mxu0
        %v2657 = vadd.f32 %v2616, %v2656
        %v2658 = vpop.f32.mrf.mxu0
        %v2659 = vadd.f32 %v2618, %v2658
        %v2660 = vpop.f32.mrf.mxu0
        %v2661 = vpop.f32.mrf.mxu0
        %2662 = vdwg.mxu0
        %2663 = vmatprep.subr.bf16.mxu0 %v1776
        %2664 = vmatpush1.bf16.msra.mxu0 %v1775
        %2665 = vmatprep.subr.bf16.mxu0 %v1772
        %2666 = vmatpush1.bf16.msra.mxu0 %v1771
        %2667 = vmatprep.subr.bf16.mxu0 %v1768
        %2668 = vmatpush1.bf16.msra.mxu0 %v1767
        %2669 = vmatprep.subr.bf16.mxu0 %v1764
        %2670 = vmatpush1.bf16.msra.mxu0 %v1763
        %2671 = vmatprep.subr.bf16.mxu0 %v1760
        %2672 = vmatpush1.bf16.msra.mxu0 %v1759
        %2673 = vmatprep.subr.bf16.mxu0 %v1756
        %2674 = vmatpush1.bf16.msra.mxu0 %v1755
        %2675 = vmatprep.subr.bf16.mxu0 %v1752
        %2676 = vmatpush1.bf16.msra.mxu0 %v1751
        %2677 = vmatprep.subr.bf16.mxu0 %v1748
        %2678 = vmatpush1.bf16.msra.mxu0 %v1747
        %2679 = vmatprep.subr.bf16.mxu0 %v1808
        %2680 = vmatpush2.bf16.msra.mxu0 %v1807
        %2681 = vmatprep.subr.bf16.mxu0 %v1804
        %2682 = vmatpush2.bf16.msra.mxu0 %v1803
        %2683 = vmatprep.subr.bf16.mxu0 %v1800
        %2684 = vmatpush2.bf16.msra.mxu0 %v1799
        %2685 = vmatprep.subr.bf16.mxu0 %v1796
        %2686 = vmatpush2.bf16.msra.mxu0 %v1795
        %2687 = vmatprep.subr.bf16.mxu0 %v1792
        %2688 = vmatpush2.bf16.msra.mxu0 %v1791
        %2689 = vmatprep.subr.bf16.mxu0 %v1788
        %2690 = vmatpush2.bf16.msra.mxu0 %v1787
        %2691 = vmatprep.subr.bf16.mxu0 %v1784
        %2692 = vmatpush2.bf16.msra.mxu0 %v1783
        %2693 = vmatprep.subr.bf16.mxu0 %v1780
        %2694 = vmatpush2.bf16.msra.mxu0 %v1779
        %2695 = vmatprep.mubr.bf16.mxu0 %v2015
        %2696 = vmatmul.mubr.bf16.gmra.mxu0 %v2013
        %v2697 = vpop.f32.mrf.mxu0
        %v2698 = vadd.f32 %v2657, %v2697
        %v2699 = vpop.f32.mrf.mxu0
        %v2700 = vadd.f32 %v2659, %v2699
        %v2701 = vpop.f32.mrf.mxu0
        %v2702 = vpop.f32.mrf.mxu0
        %2703 = vdwg.mxu0
        %2704 = vmatprep.subr.bf16.mxu0 %v818
        %2705 = vmatpush1.bf16.msra.mxu0 %v817
        %2706 = vmatprep.subr.bf16.mxu0 %v814
        %2707 = vmatpush1.bf16.msra.mxu0 %v813
        %2708 = vmatprep.subr.bf16.mxu0 %v810
        %2709 = vmatpush1.bf16.msra.mxu0 %v809
        %2710 = vmatprep.subr.bf16.mxu0 %v806
        %2711 = vmatpush1.bf16.msra.mxu0 %v805
        %2712 = vmatprep.subr.bf16.mxu0 %v802
        %2713 = vmatpush1.bf16.msra.mxu0 %v801
        %2714 = vmatprep.subr.bf16.mxu0 %v798
        %2715 = vmatpush1.bf16.msra.mxu0 %v797
        %2716 = vmatprep.subr.bf16.mxu0 %v794
        %2717 = vmatpush1.bf16.msra.mxu0 %v793
        %2718 = vmatprep.subr.bf16.mxu0 %v790
        %2719 = vmatpush1.bf16.msra.mxu0 %v789
        %2720 = vmatprep.subr.bf16.mxu0 %v850
        %2721 = vmatpush2.bf16.msra.mxu0 %v849
        %2722 = vmatprep.subr.bf16.mxu0 %v846
        %2723 = vmatpush2.bf16.msra.mxu0 %v845
        %2724 = vmatprep.subr.bf16.mxu0 %v842
        %2725 = vmatpush2.bf16.msra.mxu0 %v841
        %2726 = vmatprep.subr.bf16.mxu0 %v838
        %2727 = vmatpush2.bf16.msra.mxu0 %v837
        %2728 = vmatprep.subr.bf16.mxu0 %v834
        %2729 = vmatpush2.bf16.msra.mxu0 %v833
        %2730 = vmatprep.subr.bf16.mxu0 %v830
        %2731 = vmatpush2.bf16.msra.mxu0 %v829
        %2732 = vmatprep.subr.bf16.mxu0 %v826
        %2733 = vmatpush2.bf16.msra.mxu0 %v825
        %2734 = vmatprep.subr.bf16.mxu0 %v822
        %2735 = vmatpush2.bf16.msra.mxu0 %v821
        %2736 = vmatprep.mubr.bf16.mxu0 %v1857
        %2737 = vmatmul.mubr.bf16.gmra.mxu0 %v1843
        %v2738 = vpop.f32.mrf.mxu0
        %v2739 = vadd.f32 0.0, %v2738
        %v2740 = vpop.f32.mrf.mxu0
        %v2741 = vadd.f32 0.0, %v2740
        %v2742 = vpop.f32.mrf.mxu0
        %v2743 = vpop.f32.mrf.mxu0
        %2744 = vdwg.mxu0
        %2745 = vmatprep.subr.bf16.mxu0 %v882
        %2746 = vmatpush1.bf16.msra.mxu0 %v881
        %2747 = vmatprep.subr.bf16.mxu0 %v878
        %2748 = vmatpush1.bf16.msra.mxu0 %v877
        %2749 = vmatprep.subr.bf16.mxu0 %v874
        %2750 = vmatpush1.bf16.msra.mxu0 %v873
        %2751 = vmatprep.subr.bf16.mxu0 %v870
        %2752 = vmatpush1.bf16.msra.mxu0 %v869
        %2753 = vmatprep.subr.bf16.mxu0 %v866
        %2754 = vmatpush1.bf16.msra.mxu0 %v865
        %2755 = vmatprep.subr.bf16.mxu0 %v862
        %2756 = vmatpush1.bf16.msra.mxu0 %v861
        %2757 = vmatprep.subr.bf16.mxu0 %v858
        %2758 = vmatpush1.bf16.msra.mxu0 %v857
        %2759 = vmatprep.subr.bf16.mxu0 %v854
        %2760 = vmatpush1.bf16.msra.mxu0 %v853
        %2761 = vmatprep.subr.bf16.mxu0 %v914
        %2762 = vmatpush2.bf16.msra.mxu0 %v913
        %2763 = vmatprep.subr.bf16.mxu0 %v910
        %2764 = vmatpush2.bf16.msra.mxu0 %v909
        %2765 = vmatprep.subr.bf16.mxu0 %v906
        %2766 = vmatpush2.bf16.msra.mxu0 %v905
        %2767 = vmatprep.subr.bf16.mxu0 %v902
        %2768 = vmatpush2.bf16.msra.mxu0 %v901
        %2769 = vmatprep.subr.bf16.mxu0 %v898
        %2770 = vmatpush2.bf16.msra.mxu0 %v897
        %2771 = vmatprep.subr.bf16.mxu0 %v894
        %2772 = vmatpush2.bf16.msra.mxu0 %v893
        %2773 = vmatprep.subr.bf16.mxu0 %v890
        %2774 = vmatpush2.bf16.msra.mxu0 %v889
        %2775 = vmatprep.subr.bf16.mxu0 %v886
        %2776 = vmatpush2.bf16.msra.mxu0 %v885
        %2777 = vmatprep.mubr.bf16.mxu0 %v1867
        %2778 = vmatmul.mubr.bf16.gmra.mxu0 %v1865
        %v2779 = vpop.f32.mrf.mxu0
        %v2780 = vadd.f32 %v2739, %v2779
        %v2781 = vpop.f32.mrf.mxu0
        %v2782 = vadd.f32 %v2741, %v2781
        %v2783 = vpop.f32.mrf.mxu0
        %v2784 = vpop.f32.mrf.mxu0
        %2785 = vdwg.mxu0
        %2786 = vmatprep.subr.bf16.mxu0 %v946
        %2787 = vmatpush1.bf16.msra.mxu0 %v945
        %2788 = vmatprep.subr.bf16.mxu0 %v942
        %2789 = vmatpush1.bf16.msra.mxu0 %v941
        %2790 = vmatprep.subr.bf16.mxu0 %v938
        %2791 = vmatpush1.bf16.msra.mxu0 %v937
        %2792 = vmatprep.subr.bf16.mxu0 %v934
        %2793 = vmatpush1.bf16.msra.mxu0 %v933
        %2794 = vmatprep.subr.bf16.mxu0 %v930
        %2795 = vmatpush1.bf16.msra.mxu0 %v929
        %2796 = vmatprep.subr.bf16.mxu0 %v926
        %2797 = vmatpush1.bf16.msra.mxu0 %v925
        %2798 = vmatprep.subr.bf16.mxu0 %v922
        %2799 = vmatpush1.bf16.msra.mxu0 %v921
        %2800 = vmatprep.subr.bf16.mxu0 %v918
        %2801 = vmatpush1.bf16.msra.mxu0 %v917
        %2802 = vmatprep.subr.bf16.mxu0 %v978
        %2803 = vmatpush2.bf16.msra.mxu0 %v977
        %2804 = vmatprep.subr.bf16.mxu0 %v974
        %2805 = vmatpush2.bf16.msra.mxu0 %v973
        %2806 = vmatprep.subr.bf16.mxu0 %v970
        %2807 = vmatpush2.bf16.msra.mxu0 %v969
        %2808 = vmatprep.subr.bf16.mxu0 %v966
        %2809 = vmatpush2.bf16.msra.mxu0 %v965
        %2810 = vmatprep.subr.bf16.mxu0 %v962
        %2811 = vmatpush2.bf16.msra.mxu0 %v961
        %2812 = vmatprep.subr.bf16.mxu0 %v958
        %2813 = vmatpush2.bf16.msra.mxu0 %v957
        %2814 = vmatprep.subr.bf16.mxu0 %v954
        %2815 = vmatpush2.bf16.msra.mxu0 %v953
        %2816 = vmatprep.subr.bf16.mxu0 %v950
        %2817 = vmatpush2.bf16.msra.mxu0 %v949
        %2818 = vmatprep.mubr.bf16.mxu0 %v1864
        %2819 = vmatmul.mubr.bf16.gmra.mxu0 %v1850
        %v2820 = vpop.f32.mrf.mxu0
        %v2821 = vadd.f32 %v2780, %v2820
        %v2822 = vpop.f32.mrf.mxu0
        %v2823 = vadd.f32 %v2782, %v2822
        %v2824 = vpop.f32.mrf.mxu0
        %v2825 = vpop.f32.mrf.mxu0
        %2826 = vdwg.mxu0
        %2827 = vmatprep.subr.bf16.mxu0 %v1010
        %2828 = vmatpush1.bf16.msra.mxu0 %v1009
        %2829 = vmatprep.subr.bf16.mxu0 %v1006
        %2830 = vmatpush1.bf16.msra.mxu0 %v1005
        %2831 = vmatprep.subr.bf16.mxu0 %v1002
        %2832 = vmatpush1.bf16.msra.mxu0 %v1001
        %2833 = vmatprep.subr.bf16.mxu0 %v998
        %2834 = vmatpush1.bf16.msra.mxu0 %v997
        %2835 = vmatprep.subr.bf16.mxu0 %v994
        %2836 = vmatpush1.bf16.msra.mxu0 %v993
        %2837 = vmatprep.subr.bf16.mxu0 %v990
        %2838 = vmatpush1.bf16.msra.mxu0 %v989
        %2839 = vmatprep.subr.bf16.mxu0 %v986
        %2840 = vmatpush1.bf16.msra.mxu0 %v985
        %2841 = vmatprep.subr.bf16.mxu0 %v982
        %2842 = vmatpush1.bf16.msra.mxu0 %v981
        %2843 = vmatprep.subr.bf16.mxu0 %v1042
        %2844 = vmatpush2.bf16.msra.mxu0 %v1041
        %2845 = vmatprep.subr.bf16.mxu0 %v1038
        %2846 = vmatpush2.bf16.msra.mxu0 %v1037
        %2847 = vmatprep.subr.bf16.mxu0 %v1034
        %2848 = vmatpush2.bf16.msra.mxu0 %v1033
        %2849 = vmatprep.subr.bf16.mxu0 %v1030
        %2850 = vmatpush2.bf16.msra.mxu0 %v1029
        %2851 = vmatprep.subr.bf16.mxu0 %v1026
        %2852 = vmatpush2.bf16.msra.mxu0 %v1025
        %2853 = vmatprep.subr.bf16.mxu0 %v1022
        %2854 = vmatpush2.bf16.msra.mxu0 %v1021
        %2855 = vmatprep.subr.bf16.mxu0 %v1018
        %2856 = vmatpush2.bf16.msra.mxu0 %v1017
        %2857 = vmatprep.subr.bf16.mxu0 %v1014
        %2858 = vmatpush2.bf16.msra.mxu0 %v1013
        %2859 = vmatprep.mubr.bf16.mxu0 %v1868
        %2860 = vmatmul.mubr.bf16.gmra.mxu0 %v1866
        %v2861 = vpop.f32.mrf.mxu0
        %v2862 = vadd.f32 %v2821, %v2861
        %v2863 = vpop.f32.mrf.mxu0
        %v2864 = vadd.f32 %v2823, %v2863
        %v2865 = vpop.f32.mrf.mxu0
        %v2866 = vpop.f32.mrf.mxu0
        %2867 = vdwg.mxu0
        %2868 = vmatprep.subr.bf16.mxu0 %v1074
        %2869 = vmatpush1.bf16.msra.mxu0 %v1073
        %2870 = vmatprep.subr.bf16.mxu0 %v1070
        %2871 = vmatpush1.bf16.msra.mxu0 %v1069
        %2872 = vmatprep.subr.bf16.mxu0 %v1066
        %2873 = vmatpush1.bf16.msra.mxu0 %v1065
        %2874 = vmatprep.subr.bf16.mxu0 %v1062
        %2875 = vmatpush1.bf16.msra.mxu0 %v1061
        %2876 = vmatprep.subr.bf16.mxu0 %v1058
        %2877 = vmatpush1.bf16.msra.mxu0 %v1057
        %2878 = vmatprep.subr.bf16.mxu0 %v1054
        %2879 = vmatpush1.bf16.msra.mxu0 %v1053
        %2880 = vmatprep.subr.bf16.mxu0 %v1050
        %2881 = vmatpush1.bf16.msra.mxu0 %v1049
        %2882 = vmatprep.subr.bf16.mxu0 %v1046
        %2883 = vmatpush1.bf16.msra.mxu0 %v1045
        %2884 = vmatprep.subr.bf16.mxu0 %v1106
        %2885 = vmatpush2.bf16.msra.mxu0 %v1105
        %2886 = vmatprep.subr.bf16.mxu0 %v1102
        %2887 = vmatpush2.bf16.msra.mxu0 %v1101
        %2888 = vmatprep.subr.bf16.mxu0 %v1098
        %2889 = vmatpush2.bf16.msra.mxu0 %v1097
        %2890 = vmatprep.subr.bf16.mxu0 %v1094
        %2891 = vmatpush2.bf16.msra.mxu0 %v1093
        %2892 = vmatprep.subr.bf16.mxu0 %v1090
        %2893 = vmatpush2.bf16.msra.mxu0 %v1089
        %2894 = vmatprep.subr.bf16.mxu0 %v1086
        %2895 = vmatpush2.bf16.msra.mxu0 %v1085
        %2896 = vmatprep.subr.bf16.mxu0 %v1082
        %2897 = vmatpush2.bf16.msra.mxu0 %v1081
        %2898 = vmatprep.subr.bf16.mxu0 %v1078
        %2899 = vmatpush2.bf16.msra.mxu0 %v1077
        %2900 = vmatprep.mubr.bf16.mxu0 %v1906
        %2901 = vmatmul.mubr.bf16.gmra.mxu0 %v1892
        %v2902 = vpop.f32.mrf.mxu0
        %v2903 = vadd.f32 %v2862, %v2902
        %v2904 = vpop.f32.mrf.mxu0
        %v2905 = vadd.f32 %v2864, %v2904
        %v2906 = vpop.f32.mrf.mxu0
        %v2907 = vpop.f32.mrf.mxu0
        %2908 = vdwg.mxu0
        %2909 = vmatprep.subr.bf16.mxu0 %v1138
        %2910 = vmatpush1.bf16.msra.mxu0 %v1137
        %2911 = vmatprep.subr.bf16.mxu0 %v1134
        %2912 = vmatpush1.bf16.msra.mxu0 %v1133
        %2913 = vmatprep.subr.bf16.mxu0 %v1130
        %2914 = vmatpush1.bf16.msra.mxu0 %v1129
        %2915 = vmatprep.subr.bf16.mxu0 %v1126
        %2916 = vmatpush1.bf16.msra.mxu0 %v1125
        %2917 = vmatprep.subr.bf16.mxu0 %v1122
        %2918 = vmatpush1.bf16.msra.mxu0 %v1121
        %2919 = vmatprep.subr.bf16.mxu0 %v1118
        %2920 = vmatpush1.bf16.msra.mxu0 %v1117
        %2921 = vmatprep.subr.bf16.mxu0 %v1114
        %2922 = vmatpush1.bf16.msra.mxu0 %v1113
        %2923 = vmatprep.subr.bf16.mxu0 %v1110
        %2924 = vmatpush1.bf16.msra.mxu0 %v1109
        %2925 = vmatprep.subr.bf16.mxu0 %v1170
        %2926 = vmatpush2.bf16.msra.mxu0 %v1169
        %2927 = vmatprep.subr.bf16.mxu0 %v1166
        %2928 = vmatpush2.bf16.msra.mxu0 %v1165
        %2929 = vmatprep.subr.bf16.mxu0 %v1162
        %2930 = vmatpush2.bf16.msra.mxu0 %v1161
        %2931 = vmatprep.subr.bf16.mxu0 %v1158
        %2932 = vmatpush2.bf16.msra.mxu0 %v1157
        %2933 = vmatprep.subr.bf16.mxu0 %v1154
        %2934 = vmatpush2.bf16.msra.mxu0 %v1153
        %2935 = vmatprep.subr.bf16.mxu0 %v1150
        %2936 = vmatpush2.bf16.msra.mxu0 %v1149
        %2937 = vmatprep.subr.bf16.mxu0 %v1146
        %2938 = vmatpush2.bf16.msra.mxu0 %v1145
        %2939 = vmatprep.subr.bf16.mxu0 %v1142
        %2940 = vmatpush2.bf16.msra.mxu0 %v1141
        %2941 = vmatprep.mubr.bf16.mxu0 %v1916
        %2942 = vmatmul.mubr.bf16.gmra.mxu0 %v1914
        %v2943 = vpop.f32.mrf.mxu0
        %v2944 = vadd.f32 %v2903, %v2943
        %v2945 = vpop.f32.mrf.mxu0
        %v2946 = vadd.f32 %v2905, %v2945
        %v2947 = vpop.f32.mrf.mxu0
        %v2948 = vpop.f32.mrf.mxu0
        %2949 = vdwg.mxu0
        %2950 = vmatprep.subr.bf16.mxu0 %v1202
        %2951 = vmatpush1.bf16.msra.mxu0 %v1201
        %2952 = vmatprep.subr.bf16.mxu0 %v1198
        %2953 = vmatpush1.bf16.msra.mxu0 %v1197
        %2954 = vmatprep.subr.bf16.mxu0 %v1194
        %2955 = vmatpush1.bf16.msra.mxu0 %v1193
        %2956 = vmatprep.subr.bf16.mxu0 %v1190
        %2957 = vmatpush1.bf16.msra.mxu0 %v1189
        %2958 = vmatprep.subr.bf16.mxu0 %v1186
        %2959 = vmatpush1.bf16.msra.mxu0 %v1185
        %2960 = vmatprep.subr.bf16.mxu0 %v1182
        %2961 = vmatpush1.bf16.msra.mxu0 %v1181
        %2962 = vmatprep.subr.bf16.mxu0 %v1178
        %2963 = vmatpush1.bf16.msra.mxu0 %v1177
        %2964 = vmatprep.subr.bf16.mxu0 %v1174
        %2965 = vmatpush1.bf16.msra.mxu0 %v1173
        %2966 = vmatprep.subr.bf16.mxu0 %v1234
        %2967 = vmatpush2.bf16.msra.mxu0 %v1233
        %2968 = vmatprep.subr.bf16.mxu0 %v1230
        %2969 = vmatpush2.bf16.msra.mxu0 %v1229
        %2970 = vmatprep.subr.bf16.mxu0 %v1226
        %2971 = vmatpush2.bf16.msra.mxu0 %v1225
        %2972 = vmatprep.subr.bf16.mxu0 %v1222
        %2973 = vmatpush2.bf16.msra.mxu0 %v1221
        %2974 = vmatprep.subr.bf16.mxu0 %v1218
        %2975 = vmatpush2.bf16.msra.mxu0 %v1217
        %2976 = vmatprep.subr.bf16.mxu0 %v1214
        %2977 = vmatpush2.bf16.msra.mxu0 %v1213
        %2978 = vmatprep.subr.bf16.mxu0 %v1210
        %2979 = vmatpush2.bf16.msra.mxu0 %v1209
        %2980 = vmatprep.subr.bf16.mxu0 %v1206
        %2981 = vmatpush2.bf16.msra.mxu0 %v1205
        %2982 = vmatprep.mubr.bf16.mxu0 %v1913
        %2983 = vmatmul.mubr.bf16.gmra.mxu0 %v1899
        %v2984 = vpop.f32.mrf.mxu0
        %v2985 = vadd.f32 %v2944, %v2984
        %v2986 = vpop.f32.mrf.mxu0
        %v2987 = vadd.f32 %v2946, %v2986
        %v2988 = vpop.f32.mrf.mxu0
        %v2989 = vpop.f32.mrf.mxu0
        %2990 = vdwg.mxu0
        %2991 = vmatprep.subr.bf16.mxu0 %v1266
        %2992 = vmatpush1.bf16.msra.mxu0 %v1265
        %2993 = vmatprep.subr.bf16.mxu0 %v1262
        %2994 = vmatpush1.bf16.msra.mxu0 %v1261
        %2995 = vmatprep.subr.bf16.mxu0 %v1258
        %2996 = vmatpush1.bf16.msra.mxu0 %v1257
        %2997 = vmatprep.subr.bf16.mxu0 %v1254
        %2998 = vmatpush1.bf16.msra.mxu0 %v1253
        %2999 = vmatprep.subr.bf16.mxu0 %v1250
        %3000 = vmatpush1.bf16.msra.mxu0 %v1249
        %3001 = vmatprep.subr.bf16.mxu0 %v1246
        %3002 = vmatpush1.bf16.msra.mxu0 %v1245
        %3003 = vmatprep.subr.bf16.mxu0 %v1242
        %3004 = vmatpush1.bf16.msra.mxu0 %v1241
        %3005 = vmatprep.subr.bf16.mxu0 %v1238
        %3006 = vmatpush1.bf16.msra.mxu0 %v1237
        %3007 = vmatprep.subr.bf16.mxu0 %v1298
        %3008 = vmatpush2.bf16.msra.mxu0 %v1297
        %3009 = vmatprep.subr.bf16.mxu0 %v1294
        %3010 = vmatpush2.bf16.msra.mxu0 %v1293
        %3011 = vmatprep.subr.bf16.mxu0 %v1290
        %3012 = vmatpush2.bf16.msra.mxu0 %v1289
        %3013 = vmatprep.subr.bf16.mxu0 %v1286
        %3014 = vmatpush2.bf16.msra.mxu0 %v1285
        %3015 = vmatprep.subr.bf16.mxu0 %v1282
        %3016 = vmatpush2.bf16.msra.mxu0 %v1281
        %3017 = vmatprep.subr.bf16.mxu0 %v1278
        %3018 = vmatpush2.bf16.msra.mxu0 %v1277
        %3019 = vmatprep.subr.bf16.mxu0 %v1274
        %3020 = vmatpush2.bf16.msra.mxu0 %v1273
        %3021 = vmatprep.subr.bf16.mxu0 %v1270
        %3022 = vmatpush2.bf16.msra.mxu0 %v1269
        %3023 = vmatprep.mubr.bf16.mxu0 %v1917
        %3024 = vmatmul.mubr.bf16.gmra.mxu0 %v1915
        %v3025 = vpop.f32.mrf.mxu0
        %v3026 = vadd.f32 %v2985, %v3025
        %v3027 = vpop.f32.mrf.mxu0
        %v3028 = vadd.f32 %v2987, %v3027
        %v3029 = vpop.f32.mrf.mxu0
        %v3030 = vpop.f32.mrf.mxu0
        %3031 = vdwg.mxu0
        %3032 = vmatprep.subr.bf16.mxu0 %v1330
        %3033 = vmatpush1.bf16.msra.mxu0 %v1329
        %3034 = vmatprep.subr.bf16.mxu0 %v1326
        %3035 = vmatpush1.bf16.msra.mxu0 %v1325
        %3036 = vmatprep.subr.bf16.mxu0 %v1322
        %3037 = vmatpush1.bf16.msra.mxu0 %v1321
        %3038 = vmatprep.subr.bf16.mxu0 %v1318
        %3039 = vmatpush1.bf16.msra.mxu0 %v1317
        %3040 = vmatprep.subr.bf16.mxu0 %v1314
        %3041 = vmatpush1.bf16.msra.mxu0 %v1313
        %3042 = vmatprep.subr.bf16.mxu0 %v1310
        %3043 = vmatpush1.bf16.msra.mxu0 %v1309
        %3044 = vmatprep.subr.bf16.mxu0 %v1306
        %3045 = vmatpush1.bf16.msra.mxu0 %v1305
        %3046 = vmatprep.subr.bf16.mxu0 %v1302
        %3047 = vmatpush1.bf16.msra.mxu0 %v1301
        %3048 = vmatprep.subr.bf16.mxu0 %v1362
        %3049 = vmatpush2.bf16.msra.mxu0 %v1361
        %3050 = vmatprep.subr.bf16.mxu0 %v1358
        %3051 = vmatpush2.bf16.msra.mxu0 %v1357
        %3052 = vmatprep.subr.bf16.mxu0 %v1354
        %3053 = vmatpush2.bf16.msra.mxu0 %v1353
        %3054 = vmatprep.subr.bf16.mxu0 %v1350
        %3055 = vmatpush2.bf16.msra.mxu0 %v1349
        %3056 = vmatprep.subr.bf16.mxu0 %v1346
        %3057 = vmatpush2.bf16.msra.mxu0 %v1345
        %3058 = vmatprep.subr.bf16.mxu0 %v1342
        %3059 = vmatpush2.bf16.msra.mxu0 %v1341
        %3060 = vmatprep.subr.bf16.mxu0 %v1338
        %3061 = vmatpush2.bf16.msra.mxu0 %v1337
        %3062 = vmatprep.subr.bf16.mxu0 %v1334
        %3063 = vmatpush2.bf16.msra.mxu0 %v1333
        %3064 = vmatprep.mubr.bf16.mxu0 %v1955
        %3065 = vmatmul.mubr.bf16.gmra.mxu0 %v1941
        %v3066 = vpop.f32.mrf.mxu0
        %v3067 = vadd.f32 %v3026, %v3066
        %v3068 = vpop.f32.mrf.mxu0
        %v3069 = vadd.f32 %v3028, %v3068
        %v3070 = vpop.f32.mrf.mxu0
        %v3071 = vpop.f32.mrf.mxu0
        %3072 = vdwg.mxu0
        %3073 = vmatprep.subr.bf16.mxu0 %v1394
        %3074 = vmatpush1.bf16.msra.mxu0 %v1393
        %3075 = vmatprep.subr.bf16.mxu0 %v1390
        %3076 = vmatpush1.bf16.msra.mxu0 %v1389
        %3077 = vmatprep.subr.bf16.mxu0 %v1386
        %3078 = vmatpush1.bf16.msra.mxu0 %v1385
        %3079 = vmatprep.subr.bf16.mxu0 %v1382
        %3080 = vmatpush1.bf16.msra.mxu0 %v1381
        %3081 = vmatprep.subr.bf16.mxu0 %v1378
        %3082 = vmatpush1.bf16.msra.mxu0 %v1377
        %3083 = vmatprep.subr.bf16.mxu0 %v1374
        %3084 = vmatpush1.bf16.msra.mxu0 %v1373
        %3085 = vmatprep.subr.bf16.mxu0 %v1370
        %3086 = vmatpush1.bf16.msra.mxu0 %v1369
        %3087 = vmatprep.subr.bf16.mxu0 %v1366
        %3088 = vmatpush1.bf16.msra.mxu0 %v1365
        %3089 = vmatprep.subr.bf16.mxu0 %v1426
        %3090 = vmatpush2.bf16.msra.mxu0 %v1425
        %3091 = vmatprep.subr.bf16.mxu0 %v1422
        %3092 = vmatpush2.bf16.msra.mxu0 %v1421
        %3093 = vmatprep.subr.bf16.mxu0 %v1418
        %3094 = vmatpush2.bf16.msra.mxu0 %v1417
        %3095 = vmatprep.subr.bf16.mxu0 %v1414
        %3096 = vmatpush2.bf16.msra.mxu0 %v1413
        %3097 = vmatprep.subr.bf16.mxu0 %v1410
        %3098 = vmatpush2.bf16.msra.mxu0 %v1409
        %3099 = vmatprep.subr.bf16.mxu0 %v1406
        %3100 = vmatpush2.bf16.msra.mxu0 %v1405
        %3101 = vmatprep.subr.bf16.mxu0 %v1402
        %3102 = vmatpush2.bf16.msra.mxu0 %v1401
        %3103 = vmatprep.subr.bf16.mxu0 %v1398
        %3104 = vmatpush2.bf16.msra.mxu0 %v1397
        %3105 = vmatprep.mubr.bf16.mxu0 %v1965
        %3106 = vmatmul.mubr.bf16.gmra.mxu0 %v1963
        %v3107 = vpop.f32.mrf.mxu0
        %v3108 = vadd.f32 %v3067, %v3107
        %v3109 = vpop.f32.mrf.mxu0
        %v3110 = vadd.f32 %v3069, %v3109
        %v3111 = vpop.f32.mrf.mxu0
        %v3112 = vpop.f32.mrf.mxu0
        %3113 = vdwg.mxu0
        %3114 = vmatprep.subr.bf16.mxu0 %v1458
        %3115 = vmatpush1.bf16.msra.mxu0 %v1457
        %3116 = vmatprep.subr.bf16.mxu0 %v1454
        %3117 = vmatpush1.bf16.msra.mxu0 %v1453
        %3118 = vmatprep.subr.bf16.mxu0 %v1450
        %3119 = vmatpush1.bf16.msra.mxu0 %v1449
        %3120 = vmatprep.subr.bf16.mxu0 %v1446
        %3121 = vmatpush1.bf16.msra.mxu0 %v1445
        %3122 = vmatprep.subr.bf16.mxu0 %v1442
        %3123 = vmatpush1.bf16.msra.mxu0 %v1441
        %3124 = vmatprep.subr.bf16.mxu0 %v1438
        %3125 = vmatpush1.bf16.msra.mxu0 %v1437
        %3126 = vmatprep.subr.bf16.mxu0 %v1434
        %3127 = vmatpush1.bf16.msra.mxu0 %v1433
        %3128 = vmatprep.subr.bf16.mxu0 %v1430
        %3129 = vmatpush1.bf16.msra.mxu0 %v1429
        %3130 = vmatprep.subr.bf16.mxu0 %v1490
        %3131 = vmatpush2.bf16.msra.mxu0 %v1489
        %3132 = vmatprep.subr.bf16.mxu0 %v1486
        %3133 = vmatpush2.bf16.msra.mxu0 %v1485
        %3134 = vmatprep.subr.bf16.mxu0 %v1482
        %3135 = vmatpush2.bf16.msra.mxu0 %v1481
        %3136 = vmatprep.subr.bf16.mxu0 %v1478
        %3137 = vmatpush2.bf16.msra.mxu0 %v1477
        %3138 = vmatprep.subr.bf16.mxu0 %v1474
        %3139 = vmatpush2.bf16.msra.mxu0 %v1473
        %3140 = vmatprep.subr.bf16.mxu0 %v1470
        %3141 = vmatpush2.bf16.msra.mxu0 %v1469
        %3142 = vmatprep.subr.bf16.mxu0 %v1466
        %3143 = vmatpush2.bf16.msra.mxu0 %v1465
        %3144 = vmatprep.subr.bf16.mxu0 %v1462
        %3145 = vmatpush2.bf16.msra.mxu0 %v1461
        %3146 = vmatprep.mubr.bf16.mxu0 %v1962
        %3147 = vmatmul.mubr.bf16.gmra.mxu0 %v1948
        %v3148 = vpop.f32.mrf.mxu0
        %v3149 = vadd.f32 %v3108, %v3148
        %v3150 = vpop.f32.mrf.mxu0
        %v3151 = vadd.f32 %v3110, %v3150
        %v3152 = vpop.f32.mrf.mxu0
        %v3153 = vpop.f32.mrf.mxu0
        %3154 = vdwg.mxu0
        %3155 = vmatprep.subr.bf16.mxu0 %v1522
        %3156 = vmatpush1.bf16.msra.mxu0 %v1521
        %3157 = vmatprep.subr.bf16.mxu0 %v1518
        %3158 = vmatpush1.bf16.msra.mxu0 %v1517
        %3159 = vmatprep.subr.bf16.mxu0 %v1514
        %3160 = vmatpush1.bf16.msra.mxu0 %v1513
        %3161 = vmatprep.subr.bf16.mxu0 %v1510
        %3162 = vmatpush1.bf16.msra.mxu0 %v1509
        %3163 = vmatprep.subr.bf16.mxu0 %v1506
        %3164 = vmatpush1.bf16.msra.mxu0 %v1505
        %3165 = vmatprep.subr.bf16.mxu0 %v1502
        %3166 = vmatpush1.bf16.msra.mxu0 %v1501
        %3167 = vmatprep.subr.bf16.mxu0 %v1498
        %3168 = vmatpush1.bf16.msra.mxu0 %v1497
        %3169 = vmatprep.subr.bf16.mxu0 %v1494
        %3170 = vmatpush1.bf16.msra.mxu0 %v1493
        %3171 = vmatprep.subr.bf16.mxu0 %v1554
        %3172 = vmatpush2.bf16.msra.mxu0 %v1553
        %3173 = vmatprep.subr.bf16.mxu0 %v1550
        %3174 = vmatpush2.bf16.msra.mxu0 %v1549
        %3175 = vmatprep.subr.bf16.mxu0 %v1546
        %3176 = vmatpush2.bf16.msra.mxu0 %v1545
        %3177 = vmatprep.subr.bf16.mxu0 %v1542
        %3178 = vmatpush2.bf16.msra.mxu0 %v1541
        %3179 = vmatprep.subr.bf16.mxu0 %v1538
        %3180 = vmatpush2.bf16.msra.mxu0 %v1537
        %3181 = vmatprep.subr.bf16.mxu0 %v1534
        %3182 = vmatpush2.bf16.msra.mxu0 %v1533
        %3183 = vmatprep.subr.bf16.mxu0 %v1530
        %3184 = vmatpush2.bf16.msra.mxu0 %v1529
        %3185 = vmatprep.subr.bf16.mxu0 %v1526
        %3186 = vmatpush2.bf16.msra.mxu0 %v1525
        %3187 = vmatprep.mubr.bf16.mxu0 %v1966
        %3188 = vmatmul.mubr.bf16.gmra.mxu0 %v1964
        %v3189 = vpop.f32.mrf.mxu0
        %v3190 = vadd.f32 %v3149, %v3189
        %v3191 = vpop.f32.mrf.mxu0
        %v3192 = vadd.f32 %v3151, %v3191
        %v3193 = vpop.f32.mrf.mxu0
        %v3194 = vpop.f32.mrf.mxu0
        %3195 = vdwg.mxu0
        %3196 = vmatprep.subr.bf16.mxu0 %v1586
        %3197 = vmatpush1.bf16.msra.mxu0 %v1585
        %3198 = vmatprep.subr.bf16.mxu0 %v1582
        %3199 = vmatpush1.bf16.msra.mxu0 %v1581
        %3200 = vmatprep.subr.bf16.mxu0 %v1578
        %3201 = vmatpush1.bf16.msra.mxu0 %v1577
        %3202 = vmatprep.subr.bf16.mxu0 %v1574
        %3203 = vmatpush1.bf16.msra.mxu0 %v1573
        %3204 = vmatprep.subr.bf16.mxu0 %v1570
        %3205 = vmatpush1.bf16.msra.mxu0 %v1569
        %3206 = vmatprep.subr.bf16.mxu0 %v1566
        %3207 = vmatpush1.bf16.msra.mxu0 %v1565
        %3208 = vmatprep.subr.bf16.mxu0 %v1562
        %3209 = vmatpush1.bf16.msra.mxu0 %v1561
        %3210 = vmatprep.subr.bf16.mxu0 %v1558
        %3211 = vmatpush1.bf16.msra.mxu0 %v1557
        %3212 = vmatprep.subr.bf16.mxu0 %v1618
        %3213 = vmatpush2.bf16.msra.mxu0 %v1617
        %3214 = vmatprep.subr.bf16.mxu0 %v1614
        %3215 = vmatpush2.bf16.msra.mxu0 %v1613
        %3216 = vmatprep.subr.bf16.mxu0 %v1610
        %3217 = vmatpush2.bf16.msra.mxu0 %v1609
        %3218 = vmatprep.subr.bf16.mxu0 %v1606
        %3219 = vmatpush2.bf16.msra.mxu0 %v1605
        %3220 = vmatprep.subr.bf16.mxu0 %v1602
        %3221 = vmatpush2.bf16.msra.mxu0 %v1601
        %3222 = vmatprep.subr.bf16.mxu0 %v1598
        %3223 = vmatpush2.bf16.msra.mxu0 %v1597
        %3224 = vmatprep.subr.bf16.mxu0 %v1594
        %3225 = vmatpush2.bf16.msra.mxu0 %v1593
        %3226 = vmatprep.subr.bf16.mxu0 %v1590
        %3227 = vmatpush2.bf16.msra.mxu0 %v1589
        %3228 = vmatprep.mubr.bf16.mxu0 %v2004
        %3229 = vmatmul.mubr.bf16.gmra.mxu0 %v1990
        %v3230 = vpop.f32.mrf.mxu0
        %v3231 = vadd.f32 %v3190, %v3230
        %v3232 = vpop.f32.mrf.mxu0
        %v3233 = vadd.f32 %v3192, %v3232
        %v3234 = vpop.f32.mrf.mxu0
        %v3235 = vpop.f32.mrf.mxu0
        %3236 = vdwg.mxu0
        %3237 = vmatprep.subr.bf16.mxu0 %v1650
        %3238 = vmatpush1.bf16.msra.mxu0 %v1649
        %3239 = vmatprep.subr.bf16.mxu0 %v1646
        %3240 = vmatpush1.bf16.msra.mxu0 %v1645
        %3241 = vmatprep.subr.bf16.mxu0 %v1642
        %3242 = vmatpush1.bf16.msra.mxu0 %v1641
        %3243 = vmatprep.subr.bf16.mxu0 %v1638
        %3244 = vmatpush1.bf16.msra.mxu0 %v1637
        %3245 = vmatprep.subr.bf16.mxu0 %v1634
        %3246 = vmatpush1.bf16.msra.mxu0 %v1633
        %3247 = vmatprep.subr.bf16.mxu0 %v1630
        %3248 = vmatpush1.bf16.msra.mxu0 %v1629
        %3249 = vmatprep.subr.bf16.mxu0 %v1626
        %3250 = vmatpush1.bf16.msra.mxu0 %v1625
        %3251 = vmatprep.subr.bf16.mxu0 %v1622
        %3252 = vmatpush1.bf16.msra.mxu0 %v1621
        %3253 = vmatprep.subr.bf16.mxu0 %v1682
        %3254 = vmatpush2.bf16.msra.mxu0 %v1681
        %3255 = vmatprep.subr.bf16.mxu0 %v1678
        %3256 = vmatpush2.bf16.msra.mxu0 %v1677
        %3257 = vmatprep.subr.bf16.mxu0 %v1674
        %3258 = vmatpush2.bf16.msra.mxu0 %v1673
        %3259 = vmatprep.subr.bf16.mxu0 %v1670
        %3260 = vmatpush2.bf16.msra.mxu0 %v1669
        %3261 = vmatprep.subr.bf16.mxu0 %v1666
        %3262 = vmatpush2.bf16.msra.mxu0 %v1665
        %3263 = vmatprep.subr.bf16.mxu0 %v1662
        %3264 = vmatpush2.bf16.msra.mxu0 %v1661
        %3265 = vmatprep.subr.bf16.mxu0 %v1658
        %3266 = vmatpush2.bf16.msra.mxu0 %v1657
        %3267 = vmatprep.subr.bf16.mxu0 %v1654
        %3268 = vmatpush2.bf16.msra.mxu0 %v1653
        %3269 = vmatprep.mubr.bf16.mxu0 %v2014
        %3270 = vmatmul.mubr.bf16.gmra.mxu0 %v2012
        %v3271 = vpop.f32.mrf.mxu0
        %v3272 = vadd.f32 %v3231, %v3271
        %v3273 = vpop.f32.mrf.mxu0
        %v3274 = vadd.f32 %v3233, %v3273
        %v3275 = vpop.f32.mrf.mxu0
        %v3276 = vpop.f32.mrf.mxu0
        %3277 = vdwg.mxu0
        %3278 = vmatprep.subr.bf16.mxu0 %v1714
        %3279 = vmatpush1.bf16.msra.mxu0 %v1713
        %3280 = vmatprep.subr.bf16.mxu0 %v1710
        %3281 = vmatpush1.bf16.msra.mxu0 %v1709
        %3282 = vmatprep.subr.bf16.mxu0 %v1706
        %3283 = vmatpush1.bf16.msra.mxu0 %v1705
        %3284 = vmatprep.subr.bf16.mxu0 %v1702
        %3285 = vmatpush1.bf16.msra.mxu0 %v1701
        %3286 = vmatprep.subr.bf16.mxu0 %v1698
        %3287 = vmatpush1.bf16.msra.mxu0 %v1697
        %3288 = vmatprep.subr.bf16.mxu0 %v1694
        %3289 = vmatpush1.bf16.msra.mxu0 %v1693
        %3290 = vmatprep.subr.bf16.mxu0 %v1690
        %3291 = vmatpush1.bf16.msra.mxu0 %v1689
        %3292 = vmatprep.subr.bf16.mxu0 %v1686
        %3293 = vmatpush1.bf16.msra.mxu0 %v1685
        %3294 = vmatprep.subr.bf16.mxu0 %v1746
        %3295 = vmatpush2.bf16.msra.mxu0 %v1745
        %3296 = vmatprep.subr.bf16.mxu0 %v1742
        %3297 = vmatpush2.bf16.msra.mxu0 %v1741
        %3298 = vmatprep.subr.bf16.mxu0 %v1738
        %3299 = vmatpush2.bf16.msra.mxu0 %v1737
        %3300 = vmatprep.subr.bf16.mxu0 %v1734
        %3301 = vmatpush2.bf16.msra.mxu0 %v1733
        %3302 = vmatprep.subr.bf16.mxu0 %v1730
        %3303 = vmatpush2.bf16.msra.mxu0 %v1729
        %3304 = vmatprep.subr.bf16.mxu0 %v1726
        %3305 = vmatpush2.bf16.msra.mxu0 %v1725
        %3306 = vmatprep.subr.bf16.mxu0 %v1722
        %3307 = vmatpush2.bf16.msra.mxu0 %v1721
        %3308 = vmatprep.subr.bf16.mxu0 %v1718
        %3309 = vmatpush2.bf16.msra.mxu0 %v1717
        %3310 = vmatprep.mubr.bf16.mxu0 %v2011
        %3311 = vmatmul.mubr.bf16.gmra.mxu0 %v1997
        %v3312 = vpop.f32.mrf.mxu0
        %v3313 = vadd.f32 %v3272, %v3312
        %v3314 = vpop.f32.mrf.mxu0
        %v3315 = vadd.f32 %v3274, %v3314
        %v3316 = vpop.f32.mrf.mxu0
        %v3317 = vpop.f32.mrf.mxu0
        %3318 = vdwg.mxu0
        %3319 = vmatprep.subr.bf16.mxu0 %v1778
        %3320 = vmatpush1.bf16.msra.mxu0 %v1777
        %3321 = vmatprep.subr.bf16.mxu0 %v1774
        %3322 = vmatpush1.bf16.msra.mxu0 %v1773
        %3323 = vmatprep.subr.bf16.mxu0 %v1770
        %3324 = vmatpush1.bf16.msra.mxu0 %v1769
        %3325 = vmatprep.subr.bf16.mxu0 %v1766
        %3326 = vmatpush1.bf16.msra.mxu0 %v1765
        %3327 = vmatprep.subr.bf16.mxu0 %v1762
        %3328 = vmatpush1.bf16.msra.mxu0 %v1761
        %3329 = vmatprep.subr.bf16.mxu0 %v1758
        %3330 = vmatpush1.bf16.msra.mxu0 %v1757
        %3331 = vmatprep.subr.bf16.mxu0 %v1754
        %3332 = vmatpush1.bf16.msra.mxu0 %v1753
        %3333 = vmatprep.subr.bf16.mxu0 %v1750
        %3334 = vmatpush1.bf16.msra.mxu0 %v1749
        %3335 = vmatprep.subr.bf16.mxu0 %v1810
        %3336 = vmatpush2.bf16.msra.mxu0 %v1809
        %3337 = vmatprep.subr.bf16.mxu0 %v1806
        %3338 = vmatpush2.bf16.msra.mxu0 %v1805
        %3339 = vmatprep.subr.bf16.mxu0 %v1802
        %3340 = vmatpush2.bf16.msra.mxu0 %v1801
        %3341 = vmatprep.subr.bf16.mxu0 %v1798
        %3342 = vmatpush2.bf16.msra.mxu0 %v1797
        %3343 = vmatprep.subr.bf16.mxu0 %v1794
        %3344 = vmatpush2.bf16.msra.mxu0 %v1793
        %3345 = vmatprep.subr.bf16.mxu0 %v1790
        %3346 = vmatpush2.bf16.msra.mxu0 %v1789
        %3347 = vmatprep.subr.bf16.mxu0 %v1786
        %3348 = vmatpush2.bf16.msra.mxu0 %v1785
        %3349 = vmatprep.subr.bf16.mxu0 %v1782
        %3350 = vmatpush2.bf16.msra.mxu0 %v1781
        %3351 = vmatprep.mubr.bf16.mxu0 %v2015
        %3352 = vmatmul.mubr.bf16.gmra.mxu0 %v2013
        %v3353 = vpop.f32.mrf.mxu0
        %v3354 = vadd.f32 %v3313, %v3353
        %v3355 = vpop.f32.mrf.mxu0
        %v3356 = vadd.f32 %v3315, %v3355
        %v3357 = vpop.f32.mrf.mxu0
        %v3358 = vpop.f32.mrf.mxu0
        %3359 = vdwg.mxu0
        %v3364 = vcombine.low %v2698, %v2700
        %v3365 = vcombine.low %v3354, %v3356
        %v3367 = vunpack.c.l.s4 1983009808
        %v3368 = vunpack.c.0.s8 %v3367
        %v3369 = vlaneseq
        %v3370 = vshrl.u32 %v3369, 7
        %v3371 = vsub.s32 %v3368, %v3370
        %v3372 = vrot.slane %v3364, %v3371
        %v3374 = vunpack.c.l.s4 1983009808
        %v3375 = vunpack.c.0.s8 %v3374
        %v3376 = vlaneseq
        %v3377 = vshrl.u32 %v3376, 7
        %v3378 = vsub.s32 %v3375, %v3377
        %v3379 = vrot.slane %v3365, %v3378
        %v3380 = vcombine.low %v3372, %v3379
        %v3382 = vadd.f32 %v1811, %v3380
        %vm3383 = vcmask 1041408
        %vm3384 = vcmask 1043458
        %vm3385 = vmor %vm3384, %vm3383
        %vm3386 = vcmask 1045508
        %vm3387 = vmor %vm3386, %vm3385
        %vm3388 = vcmask 130054
        %vm3389 = vmor %vm3388, %vm3387
        %3390 = vst.msk [vmem:[#allocation2] sm:$0xff] %vm3389, %v3382
        %p3391 = scmp.eq.s32.totalorder %s18, 1
        // Predicated region
        $region49: #{cnn_dqn_forward.1} parent=43 // pred_check
          %p3392 = pneg %p3391
        $region50: #{cnn_dqn_forward.1} parent=43 // pred_check_branch
          %3394 = sbr.rel (%p3392) target = $region52
        $region51: #{cnn_dqn_forward.1} parent=43 // pred_region
          %v3395 = vld [vmem:[#allocation2] sm:$0xff]
          %v3396 = vld [vmem:[%s2] sm:$0xf]
          %v3398 = vlaneseq
          %v3399 = vshrl.u32 %v3398, 7
          %v3400 = vsub.s32 0, %v3399
          %v3401 = vrot.slane %v3396, %v3400
          %v3402 = vlaneseq
          %v3403 = vshrl.u32 %v3402, 7
          %v3404 = vsub.s32 1, %v3403
          %v3405 = vrot.slane %v3396, %v3404
          %v3406 = vlaneseq
          %v3407 = vshrl.u32 %v3406, 7
          %v3408 = vsub.s32 2, %v3407
          %v3409 = vrot.slane %v3396, %v3408
          %v3410 = vlaneseq
          %v3411 = vshrl.u32 %v3410, 7
          %v3412 = vsub.s32 3, %v3411
          %v3413 = vrot.slane %v3396, %v3412
          %v3414 = vcombine.low %v3401, %v3405
          %v3415 = vcombine.low %v3409, %v3413
          %v3417 = vunpack.c.l.s4 1983009808
          %v3418 = vunpack.c.0.s8 %v3417
          %v3419 = vlaneseq
          %v3420 = vshrl.u32 %v3419, 7
          %v3421 = vsub.s32 %v3418, %v3420
          %v3422 = vrot.slane %v3414, %v3421
          %v3424 = vunpack.c.l.s4 1983009808
          %v3425 = vunpack.c.0.s8 %v3424
          %v3426 = vlaneseq
          %v3427 = vshrl.u32 %v3426, 7
          %v3428 = vsub.s32 %v3425, %v3427
          %v3429 = vrot.slane %v3415, %v3428
          %v3430 = vcombine.low %v3422, %v3429
          %v3432 = vmul.f32 %v3395, %v3430
          %v3433 = vld [vmem:[%s3] sm:$0xf]
          %v3435 = vlaneseq
          %v3436 = vshrl.u32 %v3435, 7
          %v3437 = vsub.s32 0, %v3436
          %v3438 = vrot.slane %v3433, %v3437
          %v3439 = vlaneseq
          %v3440 = vshrl.u32 %v3439, 7
          %v3441 = vsub.s32 1, %v3440
          %v3442 = vrot.slane %v3433, %v3441
          %v3443 = vlaneseq
          %v3444 = vshrl.u32 %v3443, 7
          %v3445 = vsub.s32 2, %v3444
          %v3446 = vrot.slane %v3433, %v3445
          %v3447 = vlaneseq
          %v3448 = vshrl.u32 %v3447, 7
          %v3449 = vsub.s32 3, %v3448
          %v3450 = vrot.slane %v3433, %v3449
          %v3451 = vcombine.low %v3438, %v3442
          %v3452 = vcombine.low %v3446, %v3450
          %v3454 = vunpack.c.l.s4 1983009808
          %v3455 = vunpack.c.0.s8 %v3454
          %v3456 = vlaneseq
          %v3457 = vshrl.u32 %v3456, 7
          %v3458 = vsub.s32 %v3455, %v3457
          %v3459 = vrot.slane %v3451, %v3458
          %v3461 = vunpack.c.l.s4 1983009808
          %v3462 = vunpack.c.0.s8 %v3461
          %v3463 = vlaneseq
          %v3464 = vshrl.u32 %v3463, 7
          %v3465 = vsub.s32 %v3462, %v3464
          %v3466 = vrot.slane %v3452, %v3465
          %v3467 = vcombine.low %v3459, %v3466
          %v3469 = vadd.f32 %v3432, %v3467
          %v3470 = vmax.f32 %v3469, 0.0
          %v3472 = vcombine.high %v3470, %v3470
          %v3474 = vunpack.c.l.s4 1983009808
          %v3475 = vunpack.c.0.s8 %v3474
          %v3476 = vlaneseq
          %v3477 = vshrl.u32 %v3476, 7
          %v3478 = vsub.s32 %v3475, %v3477
          %v3479 = vrot.slane %v3470, %v3478
          %v3481 = vunpack.c.l.s4 1983009808
          %v3482 = vunpack.c.0.s8 %v3481
          %v3483 = vlaneseq
          %v3484 = vshrl.u32 %v3483, 7
          %v3485 = vsub.s32 %v3482, %v3484
          %v3486 = vrot.slane %v3472, %v3485
          %v3487 = vcombine.high %v3479, %v3479
          %v3488 = vcombine.high %v3486, %v3486
          %v3493 = vpack.c.bf16 %v3479, %v3479
          %v3494 = vpack.c.bf16 %v3487, %v3487
          %v3495 = vpack.c.bf16 %v3486, %v3486
          %v3496 = vpack.c.bf16 %v3488, %v3488
          %v3497 = vld [vmem:[%s4] sm:$0xf]
          %v3498 = vld [vmem:[%s4 + $0x4] sm:$0xf]
          %v3499 = vld [vmem:[%s4 + $0x8] sm:$0xf]
          %v3500 = vld [vmem:[%s4 + $0xc] sm:$0xf]
          %v3501 = vld [vmem:[%s4 + $0x10] sm:$0xf]
          %v3502 = vld [vmem:[%s4 + $0x14] sm:$0xf]
          %v3503 = vld [vmem:[%s4 + $0x18] sm:$0xf]
          %v3504 = vld [vmem:[%s4 + $0x1c] sm:$0xf]
          %v3505 = vld [vmem:[%s4 + $0x20] sm:$0xf]
          %v3506 = vld [vmem:[%s4 + $0x24] sm:$0xf]
          %v3507 = vld [vmem:[%s4 + $0x28] sm:$0xf]
          %v3508 = vld [vmem:[%s4 + $0x2c] sm:$0xf]
          %v3509 = vld [vmem:[%s4 + $0x30] sm:$0xf]
          %v3510 = vld [vmem:[%s4 + $0x34] sm:$0xf]
          %v3511 = vld [vmem:[%s4 + $0x38] sm:$0xf]
          %v3512 = vld [vmem:[%s4 + $0x3c] sm:$0xf]
          %v3513 = vld [vmem:[%s4 + $0x40] sm:$0xf]
          %v3514 = vld [vmem:[%s4 + $0x44] sm:$0xf]
          %v3515 = vld [vmem:[%s4 + $0x48] sm:$0xf]
          %v3516 = vld [vmem:[%s4 + $0x4c] sm:$0xf]
          %v3517 = vld [vmem:[%s4 + $0x50] sm:$0xf]
          %v3518 = vld [vmem:[%s4 + $0x54] sm:$0xf]
          %v3519 = vld [vmem:[%s4 + $0x58] sm:$0xf]
          %v3520 = vld [vmem:[%s4 + $0x5c] sm:$0xf]
          %v3521 = vld [vmem:[%s4 + $0x60] sm:$0xf]
          %v3522 = vld [vmem:[%s4 + $0x64] sm:$0xf]
          %v3523 = vld [vmem:[%s4 + $0x68] sm:$0xf]
          %v3524 = vld [vmem:[%s4 + $0x6c] sm:$0xf]
          %v3525 = vld [vmem:[%s4 + $0x70] sm:$0xf]
          %v3526 = vld [vmem:[%s4 + $0x74] sm:$0xf]
          %v3527 = vld [vmem:[%s4 + $0x78] sm:$0xf]
          %v3528 = vld [vmem:[%s4 + $0x7c] sm:$0xf]
          %v3529 = vld [vmem:[%s4 + $0x80] sm:$0xf]
          %v3530 = vld [vmem:[%s4 + $0x84] sm:$0xf]
          %v3531 = vld [vmem:[%s4 + $0x88] sm:$0xf]
          %v3532 = vld [vmem:[%s4 + $0x8c] sm:$0xf]
          %v3533 = vld [vmem:[%s4 + $0x90] sm:$0xf]
          %v3534 = vld [vmem:[%s4 + $0x94] sm:$0xf]
          %v3535 = vld [vmem:[%s4 + $0x98] sm:$0xf]
          %v3536 = vld [vmem:[%s4 + $0x9c] sm:$0xf]
          %v3537 = vld [vmem:[%s4 + $0xa0] sm:$0xf]
          %v3538 = vld [vmem:[%s4 + $0xa4] sm:$0xf]
          %v3539 = vld [vmem:[%s4 + $0xa8] sm:$0xf]
          %v3540 = vld [vmem:[%s4 + $0xac] sm:$0xf]
          %v3541 = vld [vmem:[%s4 + $0xb0] sm:$0xf]
          %v3542 = vld [vmem:[%s4 + $0xb4] sm:$0xf]
          %v3543 = vld [vmem:[%s4 + $0xb8] sm:$0xf]
          %v3544 = vld [vmem:[%s4 + $0xbc] sm:$0xf]
          %v3545 = vld [vmem:[%s4 + $0xc0] sm:$0xf]
          %v3546 = vld [vmem:[%s4 + $0xc4] sm:$0xf]
          %v3547 = vld [vmem:[%s5] sm:$0x1]
          %v3549 = vlaneseq
          %v3550 = vshrl.u32 %v3549, 7
          %v3551 = vsub.s32 0, %v3550
          %v3552 = vrot.slane %v3547, %v3551
          %v3604 = vunpack.c.l.b16 %v3497
          %v3605 = vunpack.c.l.b16 %v3498
          %v3606 = vunpack.c.l.b16 %v3499
          %v3607 = vunpack.c.l.b16 %v3500
          %v3608 = vunpack.c.l.b16 %v3501
          %v3609 = vunpack.c.l.b16 %v3502
          %v3610 = vunpack.c.l.b16 %v3503
          %v3611 = vunpack.c.l.b16 %v3504
          %v3612 = vunpack.c.l.b16 %v3505
          %v3613 = vunpack.c.l.b16 %v3506
          %v3614 = vunpack.c.l.b16 %v3507
          %v3615 = vunpack.c.l.b16 %v3508
          %v3616 = vunpack.c.l.b16 %v3509
          %v3617 = vunpack.c.l.b16 %v3510
          %v3618 = vunpack.c.l.b16 %v3511
          %v3619 = vunpack.c.l.b16 %v3512
          %v3620 = vunpack.c.l.b16 %v3513
          %v3621 = vunpack.c.l.b16 %v3514
          %v3622 = vunpack.c.l.b16 %v3515
          %v3623 = vunpack.c.l.b16 %v3516
          %v3624 = vunpack.c.l.b16 %v3517
          %v3625 = vunpack.c.l.b16 %v3518
          %v3626 = vunpack.c.l.b16 %v3519
          %v3627 = vunpack.c.l.b16 %v3520
          %v3628 = vunpack.c.l.b16 %v3521
          %v3629 = vunpack.c.l.b16 %v3522
          %v3630 = vunpack.c.l.b16 %v3523
          %v3631 = vunpack.c.l.b16 %v3524
          %v3632 = vunpack.c.l.b16 %v3525
          %v3633 = vunpack.c.l.b16 %v3526
          %v3634 = vunpack.c.l.b16 %v3527
          %v3635 = vunpack.c.l.b16 %v3528
          %v3636 = vunpack.c.l.b16 %v3529
          %v3637 = vunpack.c.l.b16 %v3530
          %v3638 = vunpack.c.l.b16 %v3531
          %v3639 = vunpack.c.l.b16 %v3532
          %v3640 = vunpack.c.l.b16 %v3533
          %v3641 = vunpack.c.l.b16 %v3534
          %v3642 = vunpack.c.l.b16 %v3535
          %v3643 = vunpack.c.l.b16 %v3536
          %v3644 = vunpack.c.l.b16 %v3537
          %v3645 = vunpack.c.l.b16 %v3538
          %v3646 = vunpack.c.l.b16 %v3539
          %v3647 = vunpack.c.l.b16 %v3540
          %v3648 = vunpack.c.l.b16 %v3541
          %v3649 = vunpack.c.l.b16 %v3542
          %v3650 = vunpack.c.l.b16 %v3543
          %v3651 = vunpack.c.l.b16 %v3544
          %v3652 = vunpack.c.l.b16 %v3545
          %v3653 = vunpack.c.l.b16 %v3546
          %v3654 = vpack.c.b16 %v3605, %v3604
          %v3655 = vpack.c.b16 %v3607, %v3606
          %v3656 = vpack.c.b16 %v3609, %v3608
          %v3657 = vpack.c.b16 %v3611, %v3610
          %v3658 = vpack.c.b16 %v3613, %v3612
          %v3659 = vpack.c.b16 %v3615, %v3614
          %v3660 = vpack.c.b16 %v3617, %v3616
          %v3661 = vpack.c.b16 %v3619, %v3618
          %v3662 = vpack.c.b16 %v3621, %v3620
          %v3663 = vpack.c.b16 %v3623, %v3622
          %v3664 = vpack.c.b16 %v3625, %v3624
          %v3665 = vpack.c.b16 %v3627, %v3626
          %v3666 = vpack.c.b16 %v3629, %v3628
          %v3667 = vpack.c.b16 %v3631, %v3630
          %v3668 = vpack.c.b16 %v3633, %v3632
          %v3669 = vpack.c.b16 %v3635, %v3634
          %v3670 = vpack.c.b16 %v3637, %v3636
          %v3671 = vpack.c.b16 %v3639, %v3638
          %v3672 = vpack.c.b16 %v3641, %v3640
          %v3673 = vpack.c.b16 %v3643, %v3642
          %v3674 = vpack.c.b16 %v3645, %v3644
          %v3675 = vpack.c.b16 %v3647, %v3646
          %v3676 = vpack.c.b16 %v3649, %v3648
          %v3677 = vpack.c.b16 %v3651, %v3650
          %v3678 = vpack.c.b16 %v3653, %v3652
          %vm3704 = vcmask 130048
          %v3706 = vsel %vm3704, %v3496, 0
          %3708 = vmatprep.subr.bf16.mxu0 0
          %3709 = vmatpush1.bf16.msra.mxu0 %v3661
          %3710 = vmatprep.subr.bf16.mxu0 0
          %3711 = vmatpush1.bf16.msra.mxu0 %v3660
          %3712 = vmatprep.subr.bf16.mxu0 0
          %3713 = vmatpush1.bf16.msra.mxu0 %v3659
          %3714 = vmatprep.subr.bf16.mxu0 0
          %3715 = vmatpush1.bf16.msra.mxu0 %v3658
          %3716 = vmatprep.subr.bf16.mxu0 0
          %3717 = vmatpush1.bf16.msra.mxu0 %v3657
          %3718 = vmatprep.subr.bf16.mxu0 0
          %3719 = vmatpush1.bf16.msra.mxu0 %v3656
          %3720 = vmatprep.subr.bf16.mxu0 0
          %3721 = vmatpush1.bf16.msra.mxu0 %v3655
          %3722 = vmatprep.subr.bf16.mxu0 0
          %3723 = vmatpush1.bf16.msra.mxu0 %v3654
          %3724 = vmatprep.subr.bf16.mxu0 0
          %3725 = vmatpush2.bf16.msra.mxu0 %v3669
          %3726 = vmatprep.subr.bf16.mxu0 0
          %3727 = vmatpush2.bf16.msra.mxu0 %v3668
          %3728 = vmatprep.subr.bf16.mxu0 0
          %3729 = vmatpush2.bf16.msra.mxu0 %v3667
          %3730 = vmatprep.subr.bf16.mxu0 0
          %3731 = vmatpush2.bf16.msra.mxu0 %v3666
          %3732 = vmatprep.subr.bf16.mxu0 0
          %3733 = vmatpush2.bf16.msra.mxu0 %v3665
          %3734 = vmatprep.subr.bf16.mxu0 0
          %3735 = vmatpush2.bf16.msra.mxu0 %v3664
          %3736 = vmatprep.subr.bf16.mxu0 0
          %3737 = vmatpush2.bf16.msra.mxu0 %v3663
          %3738 = vmatprep.subr.bf16.mxu0 0
          %3739 = vmatpush2.bf16.msra.mxu0 %v3662
          %3740 = vmatprep.mubr.bf16.mxu0 %v3494
          %3741 = vmatmul.mubr.bf16.gmra.mxu0 %v3493
          %v3742 = vpop.f32.mrf.mxu0
          %v3743 = vadd.f32 %v3552, %v3742
          %v3744 = vpop.f32.mrf.mxu0
          %v3745 = vpop.f32.mrf.mxu0
          %v3746 = vpop.f32.mrf.mxu0
          %3747 = vdwg.mxu0
          %3748 = vmatprep.subr.bf16.mxu0 0
          %3749 = vmatpush1.bf16.msra.mxu0 %v3677
          %3750 = vmatprep.subr.bf16.mxu0 0
          %3751 = vmatpush1.bf16.msra.mxu0 %v3676
          %3752 = vmatprep.subr.bf16.mxu0 0
          %3753 = vmatpush1.bf16.msra.mxu0 %v3675
          %3754 = vmatprep.subr.bf16.mxu0 0
          %3755 = vmatpush1.bf16.msra.mxu0 %v3674
          %3756 = vmatprep.subr.bf16.mxu0 0
          %3757 = vmatpush1.bf16.msra.mxu0 %v3673
          %3758 = vmatprep.subr.bf16.mxu0 0
          %3759 = vmatpush1.bf16.msra.mxu0 %v3672
          %3760 = vmatprep.subr.bf16.mxu0 0
          %3761 = vmatpush1.bf16.msra.mxu0 %v3671
          %3762 = vmatprep.subr.bf16.mxu0 0
          %3763 = vmatpush1.bf16.msra.mxu0 %v3670
          %3764 = vmatprep.subr.bf16.mxu0 0
          %3765 = vmatpush2.bf16.msra.mxu0 0
          %3766 = vmatprep.subr.bf16.mxu0 0
          %3767 = vmatpush2.bf16.msra.mxu0 0
          %3768 = vmatprep.subr.bf16.mxu0 0
          %3769 = vmatpush2.bf16.msra.mxu0 0
          %3770 = vmatprep.subr.bf16.mxu0 0
          %3771 = vmatpush2.bf16.msra.mxu0 0
          %3772 = vmatprep.subr.bf16.mxu0 0
          %3773 = vmatpush2.bf16.msra.mxu0 0
          %3774 = vmatprep.subr.bf16.mxu0 0
          %3775 = vmatpush2.bf16.msra.mxu0 0
          %3776 = vmatprep.subr.bf16.mxu0 0
          %3777 = vmatpush2.bf16.msra.mxu0 0
          %3778 = vmatprep.subr.bf16.mxu0 0
          %3779 = vmatpush2.bf16.msra.mxu0 %v3678
          %3780 = vmatprep.mubr.bf16.mxu0 %v3706
          %3781 = vmatmul.mubr.bf16.gmra.mxu0 %v3495
          %v3782 = vpop.f32.mrf.mxu0
          %v3783 = vadd.f32 %v3743, %v3782
          %v3784 = vpop.f32.mrf.mxu0
          %v3785 = vpop.f32.mrf.mxu0
          %v3786 = vpop.f32.mrf.mxu0
          %3787 = vdwg.mxu0
          %vm3788 = vcmask 41984
          %3789 = vst.msk [vmem:[#allocation3] sm:$0x3] %vm3788, %v3783
        $region52: #{cnn_dqn_forward.1} parent=43 // pred_fallthru
          _
        // Predicated region
        $region53: #{cnn_dqn_forward.1} parent=43 // pred_check
          %p3790 = pneg %p167
        $region54: #{cnn_dqn_forward.1} parent=43 // pred_check_branch
          %3792 = sbr.rel (%p3790) target = $region56
        $region55: #{cnn_dqn_forward.1} parent=43 // pred_region
          %s3794 = ssub.s32 32, 32
          %3795 = vsyncadd [#allocation4], %s3794
          %s3797 = sshll.u32 [#allocation3], 4
          %s3798 = int_to_ptr.vmem [resolvable:$true] %s3797
          %3800 = dma.vmem_to_hbm [thread:$0]  %s3798, 32, %s6, [#allocation4]
        $region56: #{cnn_dqn_forward.1} parent=43 // pred_fallthru
          _
        // Predicated region
        $region57: #{cnn_dqn_forward.1} parent=43 // pred_check
          %p3801 = pneg %p167
        $region58: #{cnn_dqn_forward.1} parent=43 // pred_check_branch
          %3803 = sbr.rel (%p3801) target = $region60
        $region59: #{cnn_dqn_forward.1} parent=43 // pred_region
          %3804 = dma.done [#allocation4], 32
        $region60: #{cnn_dqn_forward.1} parent=43 // pred_fallthru
          _
      $region44: #{cnn_dqn_forward.1} parent=5 // pred_fallthru
        _
      %p3805 = scmp.le.s32.totalorder 2, %s13
      // Predicated region
      $region61: #{cnn_dqn_forward.1} parent=5 // pred_check
        %p3806 = pneg %p3805
      $region62: #{cnn_dqn_forward.1} parent=5 // pred_check_branch
        %3808 = sbr.rel (%p3806) target = $region64
      $region63: #{cnn_dqn_forward.1} parent=5 // pred_region
        %s3809 = ssub.s32 %s13, 2
      $region64: #{cnn_dqn_forward.1} parent=5 // pred_fallthru
        _
    $region6: #{cnn_dqn_forward.1} parent=1 // loop_footer
      %s17 = sadd.s32 1, %s13
    $region7: #{cnn_dqn_forward.1} parent=1 // loop_footer_branch
      %12 = sbr.rel target = $region3
    $region8: #{cnn_dqn_forward.1} parent=1 // loop_exit
      _
    %3810 = vsyncpa [#allocation4], 1
    %s3811 = scalar_lea.sflag [#allocation4], 1
    %3812 = vsyncpa %s3811, 1

</llo_original>
